<compile_context>
chip_gen: v7x
topology: tpu7x:2x2x1
jax: 0.10.0
libtpu: 0.0.40
codegen_flags: <defaults>
</compile_context>

<pallas_src>
import functools

import jax
import jax.numpy as jnp
from jax.experimental import pallas as pl
from jax.experimental.pallas import tpu as pltpu


# ----------------------------------------------------------------------------
# Kernels
# ----------------------------------------------------------------------------
def _backbone_kernel(x_ref, w_ref, b_ref, o_ref, *, H, W, Cpad):
    """Fused (normalize +) 3x3 conv + ReLU for one image, transposed output.

    x_ref: (1, H+2, W+2, Cpad)  mean-subtracted, zero-padded raw image tile
    w_ref: (9*Cpad, Cfeat)      conv weights with 1/pixel_std folded in
    b_ref: (1, Cfeat)           conv bias
    o_ref: (1, Cfeat, H*W)      channels-first ("NCHW-ready") feature map
    """
    x = x_ref[0]                                          # (H+2, W+2, Cpad)
    cols = []
    for dy in range(3):                                   # static unroll: im2col in VMEM
        for dx in range(3):
            cols.append(x[dy:dy + H, dx:dx + W, :].reshape(H * W, Cpad))
    xcol = jnp.concatenate(cols, axis=-1)                 # (H*W, 9*Cpad)
    acc = jnp.dot(xcol, w_ref[...], preferred_element_type=jnp.float32)
    acc = jnp.maximum(acc + b_ref[...], 0.0)              # (H*W, Cfeat)
    o_ref[0] = acc.T                                      # lane-dense (Cfeat, H*W)


def _heads_kernel(f_ref, pf_ref,
                  sem_hw, sem_hb, sem_pw, sem_pb,
                  ins_hw, ins_hb, ins_pw, ins_pb,
                  prev_hwc, prev_hwp, prev_hb, prev_pw, prev_pb,
                  sem_o, ins_o, prev_o):
    """All heads fused.  Everything is in transposed (C, N) layout so matmul
    outputs are lane-dense and map directly onto NCHW results.

    f_ref / pf_ref : (1, Cfeat, T)   current / previous 'res5' feature tiles
    sem_o          : (1, num_classes, T)
    ins_o          : (1, 3, T)       row 0 = center, rows 1..2 = offset
    prev_o         : (1, 2, T)
    """
    f = f_ref[0]                                          # (Cfeat, T)
    pf = pf_ref[0]                                        # (Cfeat, T)

    # sem_seg head: 1x1 conv + ReLU + predictor, hidden stays on-chip.
    h = jnp.maximum(
        jnp.dot(sem_hw[...], f, preferred_element_type=jnp.float32) + sem_hb[...], 0.0)
    sem_o[0] = jnp.dot(sem_pw[...], h, preferred_element_type=jnp.float32) + sem_pb[...]

    # ins_embed head: shared trunk, fused center(1) + offset(2) predictor.
    h = jnp.maximum(
        jnp.dot(ins_hw[...], f, preferred_element_type=jnp.float32) + ins_hb[...], 0.0)
    ins_o[0] = jnp.dot(ins_pw[...], h, preferred_element_type=jnp.float32) + ins_pb[...]

    # prev_offset head: concat([feats, prev_feats]) replaced by split weights.
    h = jnp.maximum(
        jnp.dot(prev_hwc[...], f, preferred_element_type=jnp.float32)
        + jnp.dot(prev_hwp[...], pf, preferred_element_type=jnp.float32)
        + prev_hb[...], 0.0)
    prev_o[0] = jnp.dot(prev_pw[...], h, preferred_element_type=jnp.float32) + prev_pb[...]


# ----------------------------------------------------------------------------
# pallas_call wrappers
# ----------------------------------------------------------------------------
def _backbone_call(xp, w_flat, b_row, H, W):
    """xp: (NB, H+2, W+2, Cpad) prepped images -> (NB, Cfeat, H*W) features."""
    NB, Hp, Wp2, Cpad = xp.shape
    Cfeat = w_flat.shape[1]
    kernel = functools.partial(_backbone_kernel, H=H, W=W, Cpad=Cpad)
    return pl.pallas_call(
        kernel,
        out_shape=jax.ShapeDtypeStruct((NB, Cfeat, H * W), jnp.float32),
        grid=(NB,),
        in_specs=[
            pl.BlockSpec((1, Hp, Wp2, Cpad), lambda i: (i, 0, 0, 0)),
            pl.BlockSpec((9 * Cpad, Cfeat), lambda i: (0, 0)),
            pl.BlockSpec((1, Cfeat), lambda i: (0, 0)),
        ],
        out_specs=pl.BlockSpec((1, Cfeat, H * W), lambda i: (i, 0, 0)),
        compiler_params=pltpu.CompilerParams(dimension_semantics=("parallel",)),
    )(xp, w_flat, b_row)


def _heads_call(kp, feats_all, B, H, W, num_classes):
    """feats_all: (2B, Cfeat, HW); rows [0,B) = current, [B,2B) = previous."""
    _, Cfeat, HW = feats_all.shape
    T = HW if HW <= 2048 else 2048          # spatial tile (lane axis), VMEM-safe
    nt = pl.cdiv(HW, T)
    const2 = lambda b, t: (0, 0)

    weight_names = ["sem_hw", "sem_hb", "sem_pw", "sem_pb",
                    "ins_hw", "ins_hb", "ins_pw", "ins_pb",
                    "prev_hwc", "prev_hwp", "prev_hb", "prev_pw", "prev_pb"]
    weights = [kp[n] for n in weight_names]

    in_specs = [
        pl.BlockSpec((1, Cfeat, T), lambda b, t: (b, 0, t)),        # current feats
        pl.BlockSpec((1, Cfeat, T), lambda b, t: (b + B, 0, t)),    # previous feats
    ] + [pl.BlockSpec(wa.shape, const2) for wa in weights]

    out_shape = (
        jax.ShapeDtypeStruct((B, num_classes, HW), jnp.float32),
        jax.ShapeDtypeStruct((B, 3, HW), jnp.float32),
        jax.ShapeDtypeStruct((B, 2, HW), jnp.float32),
    )
    out_specs = [
        pl.BlockSpec((1, num_classes, T), lambda b, t: (b, 0, t)),
        pl.BlockSpec((1, 3, T), lambda b, t: (b, 0, t)),
        pl.BlockSpec((1, 2, T), lambda b, t: (b, 0, t)),
    ]
    return pl.pallas_call(
        _heads_kernel,
        out_shape=out_shape,
        grid=(B, nt),
        in_specs=in_specs,
        out_specs=out_specs,
        compiler_params=pltpu.CompilerParams(
            dimension_semantics=("parallel", "parallel")),
    )(feats_all, feats_all, *weights)


# ----------------------------------------------------------------------------
# Parameters (PyTorch-equivalent shapes) + kernel-layout preparation
# ----------------------------------------------------------------------------
def init_params(key, c_in=3, c_in_pad=8, c_feat=32, head_dim=32, num_classes=8):
    ks = jax.random.split(key, 16)

    def nrm(k, shape, scale=0.05):
        return scale * jax.random.normal(k, shape, jnp.float32)

    z = lambda c: jnp.zeros((1, c), jnp.float32)
    return {
        # register_buffer('pixel_mean'/'pixel_std') equivalents
        "pixel_mean": jnp.array([123.675, 116.28, 103.53], jnp.float32),
        "pixel_std": jnp.array([58.395, 57.12, 57.375], jnp.float32),
        # backbone stem (input channels zero-padded 3 -> 8 for MXU friendliness)
        "backbone_w": nrm(ks[0], (3, 3, c_in_pad, c_feat)),
        "backbone_b": z(c_feat),
        # sem_seg_head
        "sem_h_w": nrm(ks[1], (c_feat, head_dim)), "sem_h_b": z(head_dim),
        "sem_p_w": nrm(ks[2], (head_dim, num_classes)), "sem_p_b": z(num_classes),
        # ins_embed_head: shared trunk, center (1ch) + offset (2ch) predictors
        "ins_h_w": nrm(ks[3], (c_feat, head_dim)), "ins_h_b": z(head_dim),
        "ctr_p_w": nrm(ks[4], (head_dim, 1)), "ctr_p_b": z(1),
        "off_p_w": nrm(ks[5], (head_dim, 2)), "off_p_b": z(2),
        # prev_offset_head: consumes concat([res5, prev_res5]) -> 2*c_feat channels
        "prev_h_w": nrm(ks[6], (2 * c_feat, head_dim)), "prev_h_b": z(head_dim),
        "prev_p_w": nrm(ks[7], (head_dim, 2)), "prev_p_b": z(2),
    }


def prepare_kernel_params(params):
    """Fold normalization into backbone weights, transpose all head weights
    into (Cout, Cin) form, fuse center+offset predictors, split prev weights."""
    C = params["pixel_mean"].shape[0]
    Cpad, Cfeat = params["backbone_w"].shape[2], params["backbone_w"].shape[3]
    inv_std = jnp.concatenate(
        [1.0 / params["pixel_std"], jnp.ones((Cpad - C,), jnp.float32)])
    scale = jnp.tile(inv_std, 9)                                   # (9*Cpad,)
    return {
        "bb_w": params["backbone_w"].reshape(9 * Cpad, Cfeat) * scale[:, None],
        "bb_b": params["backbone_b"].reshape(1, Cfeat),
        "sem_hw": params["sem_h_w"].T, "sem_hb": params["sem_h_b"].reshape(-1, 1),
        "sem_pw": params["sem_p_w"].T, "sem_pb": params["sem_p_b"].reshape(-1, 1),
        "ins_hw": params["ins_h_w"].T, "ins_hb": params["ins_h_b"].reshape(-1, 1),
        "ins_pw": jnp.concatenate([params["ctr_p_w"], params["off_p_w"]], axis=1).T,
        "ins_pb": jnp.concatenate([params["ctr_p_b"], params["off_p_b"]], axis=1).reshape(-1, 1),
        "prev_hwc": params["prev_h_w"][:Cfeat].T,
        "prev_hwp": params["prev_h_w"][Cfeat:].T,
        "prev_hb": params["prev_h_b"].reshape(-1, 1),
        "prev_pw": params["prev_p_w"].T, "prev_pb": params["prev_p_b"].reshape(-1, 1),
    }


# ----------------------------------------------------------------------------
# Forward (inference path of Post.forward)
# ----------------------------------------------------------------------------
def post_forward(params, image_nchw, prev_image_nchw):
    B, C, H, W = image_nchw.shape
    Cpad = params["backbone_w"].shape[2]
    num_classes = params["sem_p_w"].shape[1]
    kp = prepare_kernel_params(params)

    # images = [(x - pixel_mean) / pixel_std ...]: mean subtracted here (fuses
    # with the transpose/pad copy in XLA), 1/std folded into kp["bb_w"].
    mean = params["pixel_mean"].reshape(1, C, 1, 1)
    x_all = jnp.concatenate([image_nchw, prev_image_nchw], axis=0)   # (2B,C,H,W)
    x_all = (x_all - mean).astype(jnp.float32)
    x_all = jnp.transpose(x_all, (0, 2, 3, 1))                       # NHWC
    x_all = jnp.pad(x_all, ((0, 0), (1, 1), (1, 1), (0, Cpad - C)))  # halo + chan pad

    # features / prev_features = backbone(...) in ONE call over 2*B images.
    feats_all = _backbone_call(x_all, kp["bb_w"], kp["bb_b"], H, W)  # (2B,Cfeat,HW)

    # sem_seg_head + ins_embed_head + prev_offset_head, fused, tiled over HW.
    sem_o, ins_o, prev_o = _heads_call(kp, feats_all, B, H, W, num_classes)

    # Already channels-first: just reshape (free) — no output transposes.
    return {
        "sem_seg": sem_o.reshape(B, num_classes, H, W),
        "center": ins_o[:, 0:1, :].reshape(B, 1, H, W),
        "offset": ins_o[:, 1:3, :].reshape(B, 2, H, W),
        "prev_offset": prev_o.reshape(B, 2, H, W),
    }


# ----------------------------------------------------------------------------
# Pure-JAX reference (original math) for a correctness check
# ----------------------------------------------------------------------------
def ref_forward(params, image, prev_image):
    C = params["pixel_mean"].shape[0]
    Cpad = params["backbone_w"].shape[2]
    mean = params["pixel_mean"].reshape(1, C, 1, 1)
    std = params["pixel_std"].reshape(1, C, 1, 1)
    hp = jax.lax.Precision.HIGHEST
    relu = lambda t: jnp.maximum(t, 0.0)

    def backbone(img):
        B, _, H, W = img.shape
        xn = (img - mean) / std
        x = jnp.transpose(xn, (0, 2, 3, 1))
        x = jnp.pad(x, ((0, 0), (1, 1), (1, 1), (0, Cpad - C)))
        cols = [x[:, dy:dy + H, dx:dx + W, :] for dy in range(3) for dx in range(3)]
        xcol = jnp.concatenate(cols, axis=-1)
        wf = params["backbone_w"].reshape(9 * Cpad, -1)
        f = jnp.einsum("bhwk,kc->bhwc", xcol, wf, precision=hp) + params["backbone_b"]
        return relu(f)

    feats, pfeats = backbone(image), backbone(prev_image)

    h = relu(jnp.einsum("bhwc,cd->bhwd", feats, params["sem_h_w"], precision=hp)
             + params["sem_h_b"])
    sem = jnp.einsum("bhwd,dk->bhwk", h, params["sem_p_w"], precision=hp) + params["sem_p_b"]

    h = relu(jnp.einsum("bhwc,cd->bhwd", feats, params["ins_h_w"], precision=hp)
             + params["ins_h_b"])
    center = jnp.einsum("bhwd,dk->bhwk", h, params["ctr_p_w"], precision=hp) + params["ctr_p_b"]
    offset = jnp.einsum("bhwd,dk->bhwk", h, params["off_p_w"], precision=hp) + params["off_p_b"]

    cat = jnp.concatenate([feats, pfeats], axis=-1)
    h = relu(jnp.einsum("bhwc,cd->bhwd", cat, params["prev_h_w"], precision=hp)
             + params["prev_h_b"])
    prev_off = jnp.einsum("bhwd,dk->bhwk", h, params["prev_p_w"], precision=hp) + params["prev_p_b"]

    to_nchw = lambda t: jnp.transpose(t, (0, 3, 1, 2))
    return {"sem_seg": to_nchw(sem), "center": to_nchw(center),
            "offset": to_nchw(offset), "prev_offset": to_nchw(prev_off)}


# ----------------------------------------------------------------------------
if __name__ == "__main__":
    B, C, H, W = 2, 3, 16, 16
    key = jax.random.PRNGKey(0)
    k_img, k_prev = jax.random.split(key)
    image = jax.random.uniform(k_img, (B, C, H, W), jnp.float32) * 255.0
    prev_image = jax.random.uniform(k_prev, (B, C, H, W), jnp.float32) * 255.0

    params = init_params(jax.random.PRNGKey(42))

    out = jax.jit(post_forward)(params, image, prev_image)
    out = jax.tree_util.tree_map(jax.block_until_ready, out)

    assert out["sem_seg"].shape == (B, 8, H, W)
    assert out["center"].shape == (B, 1, H, W)
    assert out["offset"].shape == (B, 2, H, W)
    assert out["prev_offset"].shape == (B, 2, H, W)

    ref = jax.jit(ref_forward)(params, image, prev_image)
    for name in out:
        err = float(jnp.max(jnp.abs(out[name] - ref[name])))
        assert err < 5e-3, (name, err)

    print("KERNEL_OK")
</pallas_src>

<mosaic_0001>
module attributes {stable_mosaic.version = 11 : i64} {
  func.func @_backbone_kernel(%arg0: i32, %arg1: memref<1x18x18x8xf32, #tpu.memory_space<vmem>>, %arg2: memref<72x32xf32, #tpu.memory_space<vmem>>, %arg3: memref<1x32xf32, #tpu.memory_space<vmem>>, %arg4: memref<1x32x256xf32, #tpu.memory_space<vmem>>) attributes {dimension_semantics = [#tpu.dimension_semantics<parallel>], iteration_bounds = array<i64: 4>, scalar_prefetch = 0 : i64, scratch_operands = 0 : i64, tpu.core_type = #tpu.core_type<tc>, window_params = [{transform_indices = @transform_0, window_bounds = array<i64: 1, 18, 18, 8>}, {pipeline_mode = #tpu.pipeline_mode<synchronous>, transform_indices = @transform_1, window_bounds = array<i64: 72, 32>}, {pipeline_mode = #tpu.pipeline_mode<synchronous>, transform_indices = @transform_2, window_bounds = array<i64: 1, 32>}, {transform_indices = @transform_3, window_bounds = array<i64: 1, 32, 256>}]} {
    %c0 = arith.constant 0 : index
    %c0_0 = arith.constant 0 : index
    %c0_1 = arith.constant 0 : index
    %c0_2 = arith.constant 0 : index
    %0 = vector.load %arg1[%c0, %c0_0, %c0_1, %c0_2] : memref<1x18x18x8xf32, #tpu.memory_space<vmem>>, vector<1x18x18x8xf32>
    %1 = vector.shape_cast %0 : vector<1x18x18x8xf32> to vector<18x18x8xf32>
    %2 = vector.extract_strided_slice %1 {offsets = [0, 0, 0], sizes = [16, 16, 8], strides = [1, 1, 1]} : vector<18x18x8xf32> to vector<16x16x8xf32>
    %3 = vector.shape_cast %2 : vector<16x16x8xf32> to vector<256x8xf32>
    %4 = vector.extract_strided_slice %1 {offsets = [0, 1, 0], sizes = [16, 16, 8], strides = [1, 1, 1]} : vector<18x18x8xf32> to vector<16x16x8xf32>
    %5 = vector.shape_cast %4 : vector<16x16x8xf32> to vector<256x8xf32>
    %6 = vector.extract_strided_slice %1 {offsets = [0, 2, 0], sizes = [16, 16, 8], strides = [1, 1, 1]} : vector<18x18x8xf32> to vector<16x16x8xf32>
    %7 = vector.shape_cast %6 : vector<16x16x8xf32> to vector<256x8xf32>
    %8 = vector.extract_strided_slice %1 {offsets = [1, 0, 0], sizes = [16, 16, 8], strides = [1, 1, 1]} : vector<18x18x8xf32> to vector<16x16x8xf32>
    %9 = vector.shape_cast %8 : vector<16x16x8xf32> to vector<256x8xf32>
    %10 = vector.extract_strided_slice %1 {offsets = [1, 1, 0], sizes = [16, 16, 8], strides = [1, 1, 1]} : vector<18x18x8xf32> to vector<16x16x8xf32>
    %11 = vector.shape_cast %10 : vector<16x16x8xf32> to vector<256x8xf32>
    %12 = vector.extract_strided_slice %1 {offsets = [1, 2, 0], sizes = [16, 16, 8], strides = [1, 1, 1]} : vector<18x18x8xf32> to vector<16x16x8xf32>
    %13 = vector.shape_cast %12 : vector<16x16x8xf32> to vector<256x8xf32>
    %14 = vector.extract_strided_slice %1 {offsets = [2, 0, 0], sizes = [16, 16, 8], strides = [1, 1, 1]} : vector<18x18x8xf32> to vector<16x16x8xf32>
    %15 = vector.shape_cast %14 : vector<16x16x8xf32> to vector<256x8xf32>
    %16 = vector.extract_strided_slice %1 {offsets = [2, 1, 0], sizes = [16, 16, 8], strides = [1, 1, 1]} : vector<18x18x8xf32> to vector<16x16x8xf32>
    %17 = vector.shape_cast %16 : vector<16x16x8xf32> to vector<256x8xf32>
    %18 = vector.extract_strided_slice %1 {offsets = [2, 2, 0], sizes = [16, 16, 8], strides = [1, 1, 1]} : vector<18x18x8xf32> to vector<16x16x8xf32>
    %19 = vector.shape_cast %18 : vector<16x16x8xf32> to vector<256x8xf32>
    %20 = tpu.concatenate %3, %5, %7, %9, %11, %13, %15, %17, %19 in 1 : vector<256x8xf32>, vector<256x8xf32>, vector<256x8xf32>, vector<256x8xf32>, vector<256x8xf32>, vector<256x8xf32>, vector<256x8xf32>, vector<256x8xf32>, vector<256x8xf32> -> vector<256x72xf32>
    %c0_3 = arith.constant 0 : index
    %c0_4 = arith.constant 0 : index
    %21 = vector.load %arg2[%c0_3, %c0_4] : memref<72x32xf32, #tpu.memory_space<vmem>>, vector<72x32xf32>
    %cst = arith.constant dense<0.000000e+00> : vector<256x32xf32>
    %22 = tpu.matmul %20, %21, %cst {dimension_numbers = #tpu.dot_dimension_numbers<[1], [0], [0], [1], [0, 0, 1, 1], [], []>} : vector<256x72xf32>, vector<72x32xf32>, vector<256x32xf32> -> vector<256x32xf32>
    %c0_5 = arith.constant 0 : index
    %c0_6 = arith.constant 0 : index
    %23 = vector.load %arg3[%c0_5, %c0_6] : memref<1x32xf32, #tpu.memory_space<vmem>>, vector<1x32xf32>
    %24 = vector.broadcast %23 : vector<1x32xf32> to vector<256x32xf32>
    %25 = arith.addf %22, %24 : vector<256x32xf32>
    %cst_7 = arith.constant 0.000000e+00 : f32
    %26 = vector.broadcast %cst_7 : f32 to vector<256x32xf32>
    %27 = arith.maximumf %25, %26 : vector<256x32xf32>
    %28 = tpu.transpose %27, [1, 0] : vector<256x32xf32> -> vector<32x256xf32>
    %c0_8 = arith.constant 0 : index
    %c0_9 = arith.constant 0 : index
    %c0_10 = arith.constant 0 : index
    %29 = vector.load %arg4[%c0_8, %c0_9, %c0_10] : memref<1x32x256xf32, #tpu.memory_space<vmem>>, vector<1x32x256xf32>
    %30 = vector.shape_cast %29 : vector<1x32x256xf32> to vector<32x256xf32>
    %31 = vector.shape_cast %28 : vector<32x256xf32> to vector<1x32x256xf32>
    tpu.vector_store %arg4[%c0_8, %c0_9, %c0_10], %31 {strides = array<i32>} : memref<1x32x256xf32, #tpu.memory_space<vmem>>, vector<1x32x256xf32>,
    return
  }
  func.func @transform_0(%arg0: i32) -> (i32, i32, i32, i32) {
    %c0_i32 = arith.constant 0 : i32
    %c0_i32_0 = arith.constant 0 : i32
    %c0_i32_1 = arith.constant 0 : i32
    %c0_i32_2 = arith.constant 0 : i32
    return %arg0, %c0_i32, %c0_i32_0, %c0_i32_1 : i32, i32, i32, i32
  }
  func.func @transform_1(%arg0: i32) -> (i32, i32) {
    %c0_i32 = arith.constant 0 : i32
    %c0_i32_0 = arith.constant 0 : i32
    %c0_i32_1 = arith.constant 0 : i32
    return %c0_i32, %c0_i32_0 : i32, i32
  }
  func.func @transform_2(%arg0: i32) -> (i32, i32) {
    %c0_i32 = arith.constant 0 : i32
    %c0_i32_0 = arith.constant 0 : i32
    %c0_i32_1 = arith.constant 0 : i32
    return %c0_i32, %c0_i32_0 : i32, i32
  }
  func.func @transform_3(%arg0: i32) -> (i32, i32, i32) {
    %c0_i32 = arith.constant 0 : i32
    %c0_i32_0 = arith.constant 0 : i32
    %c0_i32_1 = arith.constant 0 : i32
    return %arg0, %c0_i32, %c0_i32_0 : i32, i32, i32
  }
}

module attributes {stable_mosaic.version = 11 : i64} {
  func.func @_heads_kernel(%arg0: i32, %arg1: i32, %arg2: memref<1x32x256xf32, #tpu.memory_space<vmem>>, %arg3: memref<1x32x256xf32, #tpu.memory_space<vmem>>, %arg4: memref<32x32xf32, #tpu.memory_space<vmem>>, %arg5: memref<32x1xf32, #tpu.memory_space<vmem>>, %arg6: memref<8x32xf32, #tpu.memory_space<vmem>>, %arg7: memref<8x1xf32, #tpu.memory_space<vmem>>, %arg8: memref<32x32xf32, #tpu.memory_space<vmem>>, %arg9: memref<32x1xf32, #tpu.memory_space<vmem>>, %arg10: memref<3x32xf32, #tpu.memory_space<vmem>>, %arg11: memref<3x1xf32, #tpu.memory_space<vmem>>, %arg12: memref<32x32xf32, #tpu.memory_space<vmem>>, %arg13: memref<32x32xf32, #tpu.memory_space<vmem>>, %arg14: memref<32x1xf32, #tpu.memory_space<vmem>>, %arg15: memref<2x32xf32, #tpu.memory_space<vmem>>, %arg16: memref<2x1xf32, #tpu.memory_space<vmem>>, %arg17: memref<1x8x256xf32, #tpu.memory_space<vmem>>, %arg18: memref<1x3x256xf32, #tpu.memory_space<vmem>>, %arg19: memref<1x2x256xf32, #tpu.memory_space<vmem>>) attributes {dimension_semantics = [#tpu.dimension_semantics<parallel>, #tpu.dimension_semantics<parallel>], iteration_bounds = array<i64: 2, 1>, scalar_prefetch = 0 : i64, scratch_operands = 0 : i64, tpu.core_type = #tpu.core_type<tc>, window_params = [{transform_indices = @transform_0, window_bounds = array<i64: 1, 32, 256>}, {transform_indices = @transform_1, window_bounds = array<i64: 1, 32, 256>}, {pipeline_mode = #tpu.pipeline_mode<synchronous>, transform_indices = @transform_2, window_bounds = array<i64: 32, 32>}, {pipeline_mode = #tpu.pipeline_mode<synchronous>, transform_indices = @transform_3, window_bounds = array<i64: 32, 1>}, {pipeline_mode = #tpu.pipeline_mode<synchronous>, transform_indices = @transform_4, window_bounds = array<i64: 8, 32>}, {pipeline_mode = #tpu.pipeline_mode<synchronous>, transform_indices = @transform_5, window_bounds = array<i64: 8, 1>}, {pipeline_mode = #tpu.pipeline_mode<synchronous>, transform_indices = @transform_6, window_bounds = array<i64: 32, 32>}, {pipeline_mode = #tpu.pipeline_mode<synchronous>, transform_indices = @transform_7, window_bounds = array<i64: 32, 1>}, {pipeline_mode = #tpu.pipeline_mode<synchronous>, transform_indices = @transform_8, window_bounds = array<i64: 3, 32>}, {pipeline_mode = #tpu.pipeline_mode<synchronous>, transform_indices = @transform_9, window_bounds = array<i64: 3, 1>}, {pipeline_mode = #tpu.pipeline_mode<synchronous>, transform_indices = @transform_10, window_bounds = array<i64: 32, 32>}, {pipeline_mode = #tpu.pipeline_mode<synchronous>, transform_indices = @transform_11, window_bounds = array<i64: 32, 32>}, {pipeline_mode = #tpu.pipeline_mode<synchronous>, transform_indices = @transform_12, window_bounds = array<i64: 32, 1>}, {pipeline_mode = #tpu.pipeline_mode<synchronous>, transform_indices = @transform_13, window_bounds = array<i64: 2, 32>}, {pipeline_mode = #tpu.pipeline_mode<synchronous>, transform_indices = @transform_14, window_bounds = array<i64: 2, 1>}, {transform_indices = @transform_15, window_bounds = array<i64: 1, 8, 256>}, {transform_indices = @transform_16, window_bounds = array<i64: 1, 3, 256>}, {transform_indices = @transform_17, window_bounds = array<i64: 1, 2, 256>}]} {
    %c0 = arith.constant 0 : index
    %c0_0 = arith.constant 0 : index
    %c0_1 = arith.constant 0 : index
    %0 = vector.load %arg2[%c0, %c0_0, %c0_1] : memref<1x32x256xf32, #tpu.memory_space<vmem>>, vector<1x32x256xf32>
    %1 = vector.shape_cast %0 : vector<1x32x256xf32> to vector<32x256xf32>
    %c0_2 = arith.constant 0 : index
    %c0_3 = arith.constant 0 : index
    %c0_4 = arith.constant 0 : index
    %2 = vector.load %arg3[%c0_2, %c0_3, %c0_4] : memref<1x32x256xf32, #tpu.memory_space<vmem>>, vector<1x32x256xf32>
    %3 = vector.shape_cast %2 : vector<1x32x256xf32> to vector<32x256xf32>
    %c0_5 = arith.constant 0 : index
    %c0_6 = arith.constant 0 : index
    %4 = vector.load %arg4[%c0_5, %c0_6] : memref<32x32xf32, #tpu.memory_space<vmem>>, vector<32x32xf32>
    %cst = arith.constant dense<0.000000e+00> : vector<32x256xf32>
    %5 = tpu.matmul %4, %1, %cst {dimension_numbers = #tpu.dot_dimension_numbers<[1], [0], [0], [1], [0, 0, 1, 1], [], []>} : vector<32x32xf32>, vector<32x256xf32>, vector<32x256xf32> -> vector<32x256xf32>
    %c0_7 = arith.constant 0 : index
    %c0_8 = arith.constant 0 : index
    %6 = vector.load %arg5[%c0_7, %c0_8] : memref<32x1xf32, #tpu.memory_space<vmem>>, vector<32x1xf32>
    %7 = vector.broadcast %6 : vector<32x1xf32> to vector<32x256xf32>
    %8 = arith.addf %5, %7 : vector<32x256xf32>
    %cst_9 = arith.constant 0.000000e+00 : f32
    %9 = vector.broadcast %cst_9 : f32 to vector<32x256xf32>
    %10 = arith.maximumf %8, %9 : vector<32x256xf32>
    %c0_10 = arith.constant 0 : index
    %c0_11 = arith.constant 0 : index
    %11 = vector.load %arg6[%c0_10, %c0_11] : memref<8x32xf32, #tpu.memory_space<vmem>>, vector<8x32xf32>
    %cst_12 = arith.constant dense<0.000000e+00> : vector<8x256xf32>
    %12 = tpu.matmul %11, %10, %cst_12 {dimension_numbers = #tpu.dot_dimension_numbers<[1], [0], [0], [1], [0, 0, 1, 1], [], []>} : vector<8x32xf32>, vector<32x256xf32>, vector<8x256xf32> -> vector<8x256xf32>
    %c0_13 = arith.constant 0 : index
    %c0_14 = arith.constant 0 : index
    %13 = vector.load %arg7[%c0_13, %c0_14] : memref<8x1xf32, #tpu.memory_space<vmem>>, vector<8x1xf32>
    %14 = vector.broadcast %13 : vector<8x1xf32> to vector<8x256xf32>
    %15 = arith.addf %12, %14 : vector<8x256xf32>
    %c0_15 = arith.constant 0 : index
    %c0_16 = arith.constant 0 : index
    %c0_17 = arith.constant 0 : index
    %16 = vector.load %arg17[%c0_15, %c0_16, %c0_17] : memref<1x8x256xf32, #tpu.memory_space<vmem>>, vector<1x8x256xf32>
    %17 = vector.shape_cast %16 : vector<1x8x256xf32> to vector<8x256xf32>
    %18 = vector.shape_cast %15 : vector<8x256xf32> to vector<1x8x256xf32>
    tpu.vector_store %arg17[%c0_15, %c0_16, %c0_17], %18 {strides = array<i32>} : memref<1x8x256xf32, #tpu.memory_space<vmem>>, vector<1x8x256xf32>,
    %c0_18 = arith.constant 0 : index
    %c0_19 = arith.constant 0 : index
    %19 = vector.load %arg8[%c0_18, %c0_19] : memref<32x32xf32, #tpu.memory_space<vmem>>, vector<32x32xf32>
    %cst_20 = arith.constant dense<0.000000e+00> : vector<32x256xf32>
    %20 = tpu.matmul %19, %1, %cst_20 {dimension_numbers = #tpu.dot_dimension_numbers<[1], [0], [0], [1], [0, 0, 1, 1], [], []>} : vector<32x32xf32>, vector<32x256xf32>, vector<32x256xf32> -> vector<32x256xf32>
    %c0_21 = arith.constant 0 : index
    %c0_22 = arith.constant 0 : index
    %21 = vector.load %arg9[%c0_21, %c0_22] : memref<32x1xf32, #tpu.memory_space<vmem>>, vector<32x1xf32>
    %22 = vector.broadcast %21 : vector<32x1xf32> to vector<32x256xf32>
    %23 = arith.addf %20, %22 : vector<32x256xf32>
    %cst_23 = arith.constant 0.000000e+00 : f32
    %24 = vector.broadcast %cst_23 : f32 to vector<32x256xf32>
    %25 = arith.maximumf %23, %24 : vector<32x256xf32>
    %c0_24 = arith.constant 0 : index
    %c0_25 = arith.constant 0 : index
    %26 = vector.load %arg10[%c0_24, %c0_25] : memref<3x32xf32, #tpu.memory_space<vmem>>, vector<3x32xf32>
    %cst_26 = arith.constant dense<0.000000e+00> : vector<3x256xf32>
    %27 = tpu.matmul %26, %25, %cst_26 {dimension_numbers = #tpu.dot_dimension_numbers<[1], [0], [0], [1], [0, 0, 1, 1], [], []>} : vector<3x32xf32>, vector<32x256xf32>, vector<3x256xf32> -> vector<3x256xf32>
    %c0_27 = arith.constant 0 : index
    %c0_28 = arith.constant 0 : index
    %28 = vector.load %arg11[%c0_27, %c0_28] : memref<3x1xf32, #tpu.memory_space<vmem>>, vector<3x1xf32>
    %29 = vector.broadcast %28 : vector<3x1xf32> to vector<3x256xf32>
    %30 = arith.addf %27, %29 : vector<3x256xf32>
    %c0_29 = arith.constant 0 : index
    %c0_30 = arith.constant 0 : index
    %c0_31 = arith.constant 0 : index
    %31 = vector.load %arg18[%c0_29, %c0_30, %c0_31] : memref<1x3x256xf32, #tpu.memory_space<vmem>>, vector<1x3x256xf32>
    %32 = vector.shape_cast %31 : vector<1x3x256xf32> to vector<3x256xf32>
    %33 = vector.shape_cast %30 : vector<3x256xf32> to vector<1x3x256xf32>
    tpu.vector_store %arg18[%c0_29, %c0_30, %c0_31], %33 {strides = array<i32>} : memref<1x3x256xf32, #tpu.memory_space<vmem>>, vector<1x3x256xf32>,
    %c0_32 = arith.constant 0 : index
    %c0_33 = arith.constant 0 : index
    %34 = vector.load %arg12[%c0_32, %c0_33] : memref<32x32xf32, #tpu.memory_space<vmem>>, vector<32x32xf32>
    %cst_34 = arith.constant dense<0.000000e+00> : vector<32x256xf32>
    %35 = tpu.matmul %34, %1, %cst_34 {dimension_numbers = #tpu.dot_dimension_numbers<[1], [0], [0], [1], [0, 0, 1, 1], [], []>} : vector<32x32xf32>, vector<32x256xf32>, vector<32x256xf32> -> vector<32x256xf32>
    %c0_35 = arith.constant 0 : index
    %c0_36 = arith.constant 0 : index
    %36 = vector.load %arg13[%c0_35, %c0_36] : memref<32x32xf32, #tpu.memory_space<vmem>>, vector<32x32xf32>
    %cst_37 = arith.constant dense<0.000000e+00> : vector<32x256xf32>
    %37 = tpu.matmul %36, %3, %cst_37 {dimension_numbers = #tpu.dot_dimension_numbers<[1], [0], [0], [1], [0, 0, 1, 1], [], []>} : vector<32x32xf32>, vector<32x256xf32>, vector<32x256xf32> -> vector<32x256xf32>
    %38 = arith.addf %35, %37 : vector<32x256xf32>
    %c0_38 = arith.constant 0 : index
    %c0_39 = arith.constant 0 : index
    %39 = vector.load %arg14[%c0_38, %c0_39] : memref<32x1xf32, #tpu.memory_space<vmem>>, vector<32x1xf32>
    %40 = vector.broadcast %39 : vector<32x1xf32> to vector<32x256xf32>
    %41 = arith.addf %38, %40 : vector<32x256xf32>
    %cst_40 = arith.constant 0.000000e+00 : f32
    %42 = vector.broadcast %cst_40 : f32 to vector<32x256xf32>
    %43 = arith.maximumf %41, %42 : vector<32x256xf32>
    %c0_41 = arith.constant 0 : index
    %c0_42 = arith.constant 0 : index
    %44 = vector.load %arg15[%c0_41, %c0_42] : memref<2x32xf32, #tpu.memory_space<vmem>>, vector<2x32xf32>
    %cst_43 = arith.constant dense<0.000000e+00> : vector<2x256xf32>
    %45 = tpu.matmul %44, %43, %cst_43 {dimension_numbers = #tpu.dot_dimension_numbers<[1], [0], [0], [1], [0, 0, 1, 1], [], []>} : vector<2x32xf32>, vector<32x256xf32>, vector<2x256xf32> -> vector<2x256xf32>
    %c0_44 = arith.constant 0 : index
    %c0_45 = arith.constant 0 : index
    %46 = vector.load %arg16[%c0_44, %c0_45] : memref<2x1xf32, #tpu.memory_space<vmem>>, vector<2x1xf32>
    %47 = vector.broadcast %46 : vector<2x1xf32> to vector<2x256xf32>
    %48 = arith.addf %45, %47 : vector<2x256xf32>
    %c0_46 = arith.constant 0 : index
    %c0_47 = arith.constant 0 : index
    %c0_48 = arith.constant 0 : index
    %49 = vector.load %arg19[%c0_46, %c0_47, %c0_48] : memref<1x2x256xf32, #tpu.memory_space<vmem>>, vector<1x2x256xf32>
    %50 = vector.shape_cast %49 : vector<1x2x256xf32> to vector<2x256xf32>
    %51 = vector.shape_cast %48 : vector<2x256xf32> to vector<1x2x256xf32>
    tpu.vector_store %arg19[%c0_46, %c0_47, %c0_48], %51 {strides = array<i32>} : memref<1x2x256xf32, #tpu.memory_space<vmem>>, vector<1x2x256xf32>,
    return
  }
  func.func @transform_0(%arg0: i32, %arg1: i32) -> (i32, i32, i32) {
    %c0_i32 = arith.constant 0 : i32
    %c0_i32_0 = arith.constant 0 : i32
    return %arg0, %c0_i32, %arg1 : i32, i32, i32
  }
  func.func @transform_1(%arg0: i32, %arg1: i32) -> (i32, i32, i32) {
    %c2_i32 = arith.constant 2 : i32
    %0 = arith.addi %arg0, %c2_i32 : i32
    %c0_i32 = arith.constant 0 : i32
    %c0_i32_0 = arith.constant 0 : i32
    return %0, %c0_i32, %arg1 : i32, i32, i32
  }
  func.func @transform_2(%arg0: i32, %arg1: i32) -> (i32, i32) {
    %c0_i32 = arith.constant 0 : i32
    %c0_i32_0 = arith.constant 0 : i32
    %c0_i32_1 = arith.constant 0 : i32
    return %c0_i32, %c0_i32_0 : i32, i32
  }
  func.func @transform_3(%arg0: i32, %arg1: i32) -> (i32, i32) {
    %c0_i32 = arith.constant 0 : i32
    %c0_i32_0 = arith.constant 0 : i32
    %c0_i32_1 = arith.constant 0 : i32
    return %c0_i32, %c0_i32_0 : i32, i32
  }
  func.func @transform_4(%arg0: i32, %arg1: i32) -> (i32, i32) {
    %c0_i32 = arith.constant 0 : i32
    %c0_i32_0 = arith.constant 0 : i32
    %c0_i32_1 = arith.constant 0 : i32
    return %c0_i32, %c0_i32_0 : i32, i32
  }
  func.func @transform_5(%arg0: i32, %arg1: i32) -> (i32, i32) {
    %c0_i32 = arith.constant 0 : i32
    %c0_i32_0 = arith.constant 0 : i32
    %c0_i32_1 = arith.constant 0 : i32
    return %c0_i32, %c0_i32_0 : i32, i32
  }
  func.func @transform_6(%arg0: i32, %arg1: i32) -> (i32, i32) {
    %c0_i32 = arith.constant 0 : i32
    %c0_i32_0 = arith.constant 0 : i32
    %c0_i32_1 = arith.constant 0 : i32
    return %c0_i32, %c0_i32_0 : i32, i32
  }
  func.func @transform_7(%arg0: i32, %arg1: i32) -> (i32, i32) {
    %c0_i32 = arith.constant 0 : i32
    %c0_i32_0 = arith.constant 0 : i32
    %c0_i32_1 = arith.constant 0 : i32
    return %c0_i32, %c0_i32_0 : i32, i32
  }
  func.func @transform_8(%arg0: i32, %arg1: i32) -> (i32, i32) {
    %c0_i32 = arith.constant 0 : i32
    %c0_i32_0 = arith.constant 0 : i32
    %c0_i32_1 = arith.constant 0 : i32
    return %c0_i32, %c0_i32_0 : i32, i32
  }
  func.func @transform_9(%arg0: i32, %arg1: i32) -> (i32, i32) {
    %c0_i32 = arith.constant 0 : i32
    %c0_i32_0 = arith.constant 0 : i32
    %c0_i32_1 = arith.constant 0 : i32
    return %c0_i32, %c0_i32_0 : i32, i32
  }
  func.func @transform_10(%arg0: i32, %arg1: i32) -> (i32, i32) {
    %c0_i32 = arith.constant 0 : i32
    %c0_i32_0 = arith.constant 0 : i32
    %c0_i32_1 = arith.constant 0 : i32
    return %c0_i32, %c0_i32_0 : i32, i32
  }
  func.func @transform_11(%arg0: i32, %arg1: i32) -> (i32, i32) {
    %c0_i32 = arith.constant 0 : i32
    %c0_i32_0 = arith.constant 0 : i32
    %c0_i32_1 = arith.constant 0 : i32
    return %c0_i32, %c0_i32_0 : i32, i32
  }
  func.func @transform_12(%arg0: i32, %arg1: i32) -> (i32, i32) {
    %c0_i32 = arith.constant 0 : i32
    %c0_i32_0 = arith.constant 0 : i32
    %c0_i32_1 = arith.constant 0 : i32
    return %c0_i32, %c0_i32_0 : i32, i32
  }
  func.func @transform_13(%arg0: i32, %arg1: i32) -> (i32, i32) {
    %c0_i32 = arith.constant 0 : i32
    %c0_i32_0 = arith.constant 0 : i32
    %c0_i32_1 = arith.constant 0 : i32
    return %c0_i32, %c0_i32_0 : i32, i32
  }
  func.func @transform_14(%arg0: i32, %arg1: i32) -> (i32, i32) {
    %c0_i32 = arith.constant 0 : i32
    %c0_i32_0 = arith.constant 0 : i32
    %c0_i32_1 = arith.constant 0 : i32
    return %c0_i32, %c0_i32_0 : i32, i32
  }
  func.func @transform_15(%arg0: i32, %arg1: i32) -> (i32, i32, i32) {
    %c0_i32 = arith.constant 0 : i32
    %c0_i32_0 = arith.constant 0 : i32
    return %arg0, %c0_i32, %arg1 : i32, i32, i32
  }
  func.func @transform_16(%arg0: i32, %arg1: i32) -> (i32, i32, i32) {
    %c0_i32 = arith.constant 0 : i32
    %c0_i32_0 = arith.constant 0 : i32
    return %arg0, %c0_i32, %arg1 : i32, i32, i32
  }
  func.func @transform_17(%arg0: i32, %arg1: i32) -> (i32, i32, i32) {
    %c0_i32 = arith.constant 0 : i32
    %c0_i32_0 = arith.constant 0 : i32
    return %arg0, %c0_i32, %arg1 : i32, i32, i32
  }
}

</mosaic_0001>

<llo_original>
// kernel: tile.8
$region0: #{tile.8}
  #allocation0 [shape = 's32[1]{0}', space=sflag, size = 0x4, scoped, tag = 'scoped memory for tile.8']
  %s0 = inlined_call_operand.vmem [shape: f32[8], index: 0, kind: input, shape index: {}]
  %s1 = inlined_call_operand.vmem [shape: f32[9,8], index: 1, kind: output, shape index: {}]
  // Predicated region
  $region2: #{tile.8} parent=0 // pred_check
    _
  $region3: #{tile.8} parent=0 // pred_check_branch
    %3 = sbr.rel (0) target = $region5
  $region4: #{tile.8} parent=0 // pred_region
    _
  $region5: #{tile.8} parent=0 // pred_fallthru
    _
  %v4 = vld [vmem:[%s0] ss:$0 sm:$0xff]
  %5 = vst [vmem:[%s1] sm:$0xff] %v4
  %s6 = scalar_lea.vmem %s1, 8
  %7 = vst [vmem:[%s6] sm:$0xff] %v4

// kernel: mul.5
$region0: #{mul.5}
  %s0 = inlined_call_operand.vmem [shape: f32[9,8], index: 0, kind: input, shape index: {}]
  %s1 = inlined_call_operand.vmem [shape: f32[72], index: 1, kind: output, shape index: {}]
  $region1: #{mul.5} parent=0
    #allocation0 [shape = 'u8[4096]{0}', space=vmem, size = 0x1000, scoped, tag = 'scoped mem for output reshape']
    %v2 = vld [vmem:[%s0] sm:$0x1]
    %vm3 = vcmask 64512
    %4 = vst.msk [vmem:[#allocation0] sm:$0x1] %vm3, %v2
    %s5 = scalar_lea.vmem %s0, 8
    %v6 = vld [vmem:[%s5] sm:$0x1]
    %7 = vrot.lane.b32.xlu0 %v6, 64
    %v8 = vpop.permute.xlu0 %7
    %vm9 = vcmask 589312
    %10 = vst.msk [vmem:[#allocation0] sm:$0x1] %vm9, %v8
    %s11 = scalar_lea.vmem %s0, 7
    %v12 = vld [vmem:[%s11] sm:$0x1]
    %13 = vrot.lane.b32.xlu0 %v12, 56
    %v14 = vpop.permute.xlu0 %13
    %vm15 = vcmask 523712
    %16 = vst.msk [vmem:[#allocation0] sm:$0x1] %vm15, %v14
    %s17 = scalar_lea.vmem %s0, 6
    %v18 = vld [vmem:[%s17] sm:$0x1]
    %19 = vrot.lane.b32.xlu0 %v18, 48
    %v20 = vpop.permute.xlu0 %19
    %vm21 = vcmask 458112
    %22 = vst.msk [vmem:[#allocation0] sm:$0x1] %vm21, %v20
    %s23 = scalar_lea.vmem %s0, 5
    %v24 = vld [vmem:[%s23] sm:$0x1]
    %25 = vrot.lane.b32.xlu0 %v24, 40
    %v26 = vpop.permute.xlu0 %25
    %vm27 = vcmask 392512
    %28 = vst.msk [vmem:[#allocation0] sm:$0x1] %vm27, %v26
    %s29 = scalar_lea.vmem %s0, 4
    %v30 = vld [vmem:[%s29] sm:$0x1]
    %31 = vrot.lane.b32.xlu0 %v30, 32
    %v32 = vpop.permute.xlu0 %31
    %vm33 = vcmask 326912
    %34 = vst.msk [vmem:[#allocation0] sm:$0x1] %vm33, %v32
    %s35 = scalar_lea.vmem %s0, 3
    %v36 = vld [vmem:[%s35] sm:$0x1]
    %37 = vrot.lane.b32.xlu0 %v36, 24
    %v38 = vpop.permute.xlu0 %37
    %vm39 = vcmask 261312
    %40 = vst.msk [vmem:[#allocation0] sm:$0x1] %vm39, %v38
    %s41 = scalar_lea.vmem %s0, 2
    %v42 = vld [vmem:[%s41] sm:$0x1]
    %43 = vrot.lane.b32.xlu0 %v42, 16
    %v44 = vpop.permute.xlu0 %43
    %vm45 = vcmask 195712
    %46 = vst.msk [vmem:[#allocation0] sm:$0x1] %vm45, %v44
    %s47 = scalar_lea.vmem %s0, 1
    %v48 = vld [vmem:[%s47] sm:$0x1]
    %49 = vrot.lane.b32.xlu0 %v48, 8
    %v50 = vpop.permute.xlu0 %49
    %vm51 = vcmask 130112
    %52 = vst.msk [vmem:[#allocation0] sm:$0x1] %vm51, %v50
    %s54 = sshllo.u32 0, 1
    %v56 = vld [vmem:[#allocation0] sm:%s54]
    %s57 = sshllo.u32 0, 1
    %58 = vst [vmem:[%s1] sm:%s57] %v56

// kernel: post_forward.3
$region0: #{post_forward.3}
  #allocation0 [shape = 'u32[]', space=smem, size = 0x4, offset = 0x4, fixed_abs, tag = 'smem constant byte address 0x4 - core index']
  #allocation1 [shape = 'u32[144,128]{1,0:T(1,128)}', space=vmem, size = 0x12000, scoped, tag = 'internal scratch']
  %s0 = inlined_call_operand.vmem [shape: f32[4,32,256], index: 0, kind: input, shape index: {}, may-alias: {0,1}]
  %s1 = inlined_call_operand.vmem [shape: f32[4,32,256], index: 1, kind: input, shape index: {}, may-alias: {0,1}]
  %s2 = inlined_call_operand.vmem [shape: f32[32,32], index: 2, kind: input, shape index: {}]
  %s3 = inlined_call_operand.vmem [shape: f32[32,1], index: 3, kind: input, shape index: {}]
  %s4 = inlined_call_operand.vmem [shape: f32[8,32], index: 4, kind: input, shape index: {}]
  %s5 = inlined_call_operand.vmem [shape: f32[8,1], index: 5, kind: input, shape index: {}]
  %s6 = inlined_call_operand.vmem [shape: f32[32,32], index: 6, kind: input, shape index: {}]
  %s7 = inlined_call_operand.vmem [shape: f32[32,1], index: 7, kind: input, shape index: {}]
  %s8 = inlined_call_operand.vmem [shape: f32[3,32], index: 8, kind: input, shape index: {}]
  %s9 = inlined_call_operand.vmem [shape: f32[3,1], index: 9, kind: input, shape index: {}]
  %s10 = inlined_call_operand.vmem [shape: f32[32,32], index: 10, kind: input, shape index: {}]
  %s11 = inlined_call_operand.vmem [shape: f32[32,32], index: 11, kind: input, shape index: {}]
  %s12 = inlined_call_operand.vmem [shape: f32[32,1], index: 12, kind: input, shape index: {}]
  %s13 = inlined_call_operand.vmem [shape: f32[2,32], index: 13, kind: input, shape index: {}]
  %s14 = inlined_call_operand.vmem [shape: f32[2,1], index: 14, kind: input, shape index: {}]
  %s15 = inlined_call_operand.vmem [shape: f32[2,8,256], index: 15, kind: output, shape index: {0}]
  %s16 = inlined_call_operand.vmem [shape: f32[2,3,256], index: 16, kind: output, shape index: {1}]
  %s17 = inlined_call_operand.vmem [shape: f32[2,2,256], index: 17, kind: output, shape index: {2}]
  %18 = xla_tuple %s15, %s16, %s17
  %s19 = sld [smem:[#allocation0]]
  $region109: #{post_forward.3} parent=0
    _
  %s21 = ssub.s32 1, %s19
  %s22 = scalar_select 0, %s21, %s19
  loop: start=0, step=1, limit=4
  $region2: #{post_forward.3} parent=0 // loop_pre_header
    _
  $region3: #{post_forward.3} parent=0 // loop_header
    %s24 = sphi 0, %s28
    %p25 = scmp.ge.s32.totalorder %s24, 4
    %s31 = sphi 0, %s43
    %s32 = sphi 0, %s39
    %s33 = sphi 0, %s31
    %s34 = sphi 0, %s32
    %s35 = sphi 0, %s33
    %s36 = sphi 0, %s34
    %s48 = sphi 0, %s50
    %s51 = sphi 0, %s48
    %s52 = sphi 0, %s51
    %s68 = sphi 0, %s52
    %s78 = sphi 0, %s80
    %s81 = sphi 0, %s78
    %s82 = sphi 0, %s81
    %s98 = sphi 0, %s82
    %s102 = sphi 0, %s102
    %s104 = sphi 0, %s102
    %s105 = sphi 0, %s104
    %s119 = sphi 0, %s105
    %s123 = sphi 0, %s123
    %s125 = sphi 0, %s123
    %s126 = sphi 0, %s125
    %s140 = sphi 0, %s126
    %s144 = sphi 0, %s144
    %s146 = sphi 0, %s144
    %s147 = sphi 0, %s146
    %s161 = sphi 0, %s147
    %s165 = sphi 0, %s165
    %s167 = sphi 0, %s165
    %s168 = sphi 0, %s167
    %s182 = sphi 0, %s168
    %s186 = sphi 0, %s186
    %s188 = sphi 0, %s186
    %s189 = sphi 0, %s188
    %s203 = sphi 0, %s189
    %s207 = sphi 0, %s207
    %s209 = sphi 0, %s207
    %s210 = sphi 0, %s209
    %s224 = sphi 0, %s210
    %s228 = sphi 0, %s228
    %s230 = sphi 0, %s228
    %s231 = sphi 0, %s230
    %s245 = sphi 0, %s231
    %s249 = sphi 0, %s249
    %s251 = sphi 0, %s249
    %s252 = sphi 0, %s251
    %s266 = sphi 0, %s252
    %s270 = sphi 0, %s270
    %s272 = sphi 0, %s270
    %s273 = sphi 0, %s272
    %s287 = sphi 0, %s273
    %s291 = sphi 0, %s291
    %s293 = sphi 0, %s291
    %s294 = sphi 0, %s293
    %s308 = sphi 0, %s294
    %s312 = sphi 0, %s312
    %s314 = sphi 0, %s312
    %s315 = sphi 0, %s314
    %s329 = sphi 0, %s315
    %s333 = sphi 0, %s333
    %s335 = sphi 0, %s333
    %s336 = sphi 0, %s335
    %s350 = sphi 0, %s336
    %s354 = sphi 0, %s354
    %s356 = sphi 0, %s354
    %s357 = sphi 0, %s356
    %s371 = sphi 0, %s357
    %s379 = sphi 0, %s381
    %s382 = sphi 0, %s379
    %s383 = sphi 0, %s382
    %s399 = sphi 0, %s383
    %s407 = sphi 0, %s409
    %s410 = sphi 0, %s407
    %s411 = sphi 0, %s410
    %s427 = sphi 0, %s411
    %s435 = sphi 0, %s437
    %s438 = sphi 0, %s435
    %s439 = sphi 0, %s438
    %s455 = sphi 0, %s439
  $region4: #{post_forward.3} parent=0 // loop_header_branch
    %27 = sbr.rel (%p25) target = $region8
  $region5: #{post_forward.3} parent=0 // loop_body
    %s29 = ssub.s32 %s24, 1
    %s30 = ssub.s32 %s24, 2
    %s37 = sadd.s32 1, %s32
    %p38 = scmp.ge.s32.totalorder %s37, 1
    %s39 = scalar_select %p38, 0, %s37
    %s40 = sadd.s32 1, %s31
    %s41 = scalar_select %p38, %s40, %s31
    %p42 = scmp.ge.s32.totalorder %s41, 2
    %s43 = scalar_select %p42, 0, %s41
    %s44 = ssub.s32 %s31, %s43
    %s45 = ssub.s32 %s32, %s39
    %s46 = sor.u32 %s44, %s45
    %p47 = scmp.eq.s32.totalorder %s46, 0
    %s49 = sadd.s32 %s48, 1
    %s50 = scalar_select %p47, %s48, %s49
    %p53 = pneg %p47
    %p54 = scmp.eq.s32.totalorder %s24, 1
    %p55 = por %p53, %p54
    %p56 = scmp.ne.s32.totalorder %s48, %s51
    %p57 = scmp.eq.s32.totalorder %s24, 0
    %p58 = por %p56, %p57
    %p59 = scmp.ne.s32.totalorder %s48, %s51
    %p60 = scmp.eq.s32.totalorder %s29, 1
    %p61 = por %p59, %p60
    %p62 = scmp.ne.s32.totalorder %s51, %s52
    %p63 = scmp.eq.s32.totalorder %s29, 0
    %p64 = por %p62, %p63
    %p65 = scmp.ne.s32.totalorder %s51, %s52
    %p66 = scmp.eq.s32.totalorder %s30, 1
    %p67 = por %p65, %p66
    %p69 = scmp.ne.s32.totalorder %s52, %s68
    %p70 = scmp.eq.s32.totalorder %s30, 0
    %p71 = por %p69, %p70
    %s72 = sadd.s32 %s31, 2
    %s73 = sadd.s32 %s43, 2
    %s74 = ssub.s32 %s72, %s73
    %s75 = ssub.s32 %s32, %s39
    %s76 = sor.u32 %s74, %s75
    %p77 = scmp.eq.s32.totalorder %s76, 0
    %s79 = sadd.s32 %s78, 1
    %s80 = scalar_select %p77, %s78, %s79
    %p83 = pneg %p77
    %p84 = scmp.eq.s32.totalorder %s24, 1
    %p85 = por %p83, %p84
    %p86 = scmp.ne.s32.totalorder %s78, %s81
    %p87 = scmp.eq.s32.totalorder %s24, 0
    %p88 = por %p86, %p87
    %p89 = scmp.ne.s32.totalorder %s78, %s81
    %p90 = scmp.eq.s32.totalorder %s29, 1
    %p91 = por %p89, %p90
    %p92 = scmp.ne.s32.totalorder %s81, %s82
    %p93 = scmp.eq.s32.totalorder %s29, 0
    %p94 = por %p92, %p93
    %p95 = scmp.ne.s32.totalorder %s81, %s82
    %p96 = scmp.eq.s32.totalorder %s30, 1
    %p97 = por %p95, %p96
    %p99 = scmp.ne.s32.totalorder %s82, %s98
    %p100 = scmp.eq.s32.totalorder %s30, 0
    %p101 = por %p99, %p100
    %s103 = sadd.s32 %s102, 1
    %p106 = scmp.eq.s32.totalorder %s24, 1
    %p107 = scmp.ne.s32.totalorder %s102, %s104
    %p108 = scmp.eq.s32.totalorder %s24, 0
    %p109 = por %p107, %p108
    %p110 = scmp.ne.s32.totalorder %s102, %s104
    %p111 = scmp.eq.s32.totalorder %s29, 1
    %p112 = por %p110, %p111
    %p113 = scmp.ne.s32.totalorder %s104, %s105
    %p114 = scmp.eq.s32.totalorder %s29, 0
    %p115 = por %p113, %p114
    %p116 = scmp.ne.s32.totalorder %s104, %s105
    %p117 = scmp.eq.s32.totalorder %s30, 1
    %p118 = por %p116, %p117
    %p120 = scmp.ne.s32.totalorder %s105, %s119
    %p121 = scmp.eq.s32.totalorder %s30, 0
    %p122 = por %p120, %p121
    %s124 = sadd.s32 %s123, 1
    %p127 = scmp.eq.s32.totalorder %s24, 1
    %p128 = scmp.ne.s32.totalorder %s123, %s125
    %p129 = scmp.eq.s32.totalorder %s24, 0
    %p130 = por %p128, %p129
    %p131 = scmp.ne.s32.totalorder %s123, %s125
    %p132 = scmp.eq.s32.totalorder %s29, 1
    %p133 = por %p131, %p132
    %p134 = scmp.ne.s32.totalorder %s125, %s126
    %p135 = scmp.eq.s32.totalorder %s29, 0
    %p136 = por %p134, %p135
    %p137 = scmp.ne.s32.totalorder %s125, %s126
    %p138 = scmp.eq.s32.totalorder %s30, 1
    %p139 = por %p137, %p138
    %p141 = scmp.ne.s32.totalorder %s126, %s140
    %p142 = scmp.eq.s32.totalorder %s30, 0
    %p143 = por %p141, %p142
    %s145 = sadd.s32 %s144, 1
    %p148 = scmp.eq.s32.totalorder %s24, 1
    %p149 = scmp.ne.s32.totalorder %s144, %s146
    %p150 = scmp.eq.s32.totalorder %s24, 0
    %p151 = por %p149, %p150
    %p152 = scmp.ne.s32.totalorder %s144, %s146
    %p153 = scmp.eq.s32.totalorder %s29, 1
    %p154 = por %p152, %p153
    %p155 = scmp.ne.s32.totalorder %s146, %s147
    %p156 = scmp.eq.s32.totalorder %s29, 0
    %p157 = por %p155, %p156
    %p158 = scmp.ne.s32.totalorder %s146, %s147
    %p159 = scmp.eq.s32.totalorder %s30, 1
    %p160 = por %p158, %p159
    %p162 = scmp.ne.s32.totalorder %s147, %s161
    %p163 = scmp.eq.s32.totalorder %s30, 0
    %p164 = por %p162, %p163
    %s166 = sadd.s32 %s165, 1
    %p169 = scmp.eq.s32.totalorder %s24, 1
    %p170 = scmp.ne.s32.totalorder %s165, %s167
    %p171 = scmp.eq.s32.totalorder %s24, 0
    %p172 = por %p170, %p171
    %p173 = scmp.ne.s32.totalorder %s165, %s167
    %p174 = scmp.eq.s32.totalorder %s29, 1
    %p175 = por %p173, %p174
    %p176 = scmp.ne.s32.totalorder %s167, %s168
    %p177 = scmp.eq.s32.totalorder %s29, 0
    %p178 = por %p176, %p177
    %p179 = scmp.ne.s32.totalorder %s167, %s168
    %p180 = scmp.eq.s32.totalorder %s30, 1
    %p181 = por %p179, %p180
    %p183 = scmp.ne.s32.totalorder %s168, %s182
    %p184 = scmp.eq.s32.totalorder %s30, 0
    %p185 = por %p183, %p184
    %s187 = sadd.s32 %s186, 1
    %p190 = scmp.eq.s32.totalorder %s24, 1
    %p191 = scmp.ne.s32.totalorder %s186, %s188
    %p192 = scmp.eq.s32.totalorder %s24, 0
    %p193 = por %p191, %p192
    %p194 = scmp.ne.s32.totalorder %s186, %s188
    %p195 = scmp.eq.s32.totalorder %s29, 1
    %p196 = por %p194, %p195
    %p197 = scmp.ne.s32.totalorder %s188, %s189
    %p198 = scmp.eq.s32.totalorder %s29, 0
    %p199 = por %p197, %p198
    %p200 = scmp.ne.s32.totalorder %s188, %s189
    %p201 = scmp.eq.s32.totalorder %s30, 1
    %p202 = por %p200, %p201
    %p204 = scmp.ne.s32.totalorder %s189, %s203
    %p205 = scmp.eq.s32.totalorder %s30, 0
    %p206 = por %p204, %p205
    %s208 = sadd.s32 %s207, 1
    %p211 = scmp.eq.s32.totalorder %s24, 1
    %p212 = scmp.ne.s32.totalorder %s207, %s209
    %p213 = scmp.eq.s32.totalorder %s24, 0
    %p214 = por %p212, %p213
    %p215 = scmp.ne.s32.totalorder %s207, %s209
    %p216 = scmp.eq.s32.totalorder %s29, 1
    %p217 = por %p215, %p216
    %p218 = scmp.ne.s32.totalorder %s209, %s210
    %p219 = scmp.eq.s32.totalorder %s29, 0
    %p220 = por %p218, %p219
    %p221 = scmp.ne.s32.totalorder %s209, %s210
    %p222 = scmp.eq.s32.totalorder %s30, 1
    %p223 = por %p221, %p222
    %p225 = scmp.ne.s32.totalorder %s210, %s224
    %p226 = scmp.eq.s32.totalorder %s30, 0
    %p227 = por %p225, %p226
    %s229 = sadd.s32 %s228, 1
    %p232 = scmp.eq.s32.totalorder %s24, 1
    %p233 = scmp.ne.s32.totalorder %s228, %s230
    %p234 = scmp.eq.s32.totalorder %s24, 0
    %p235 = por %p233, %p234
    %p236 = scmp.ne.s32.totalorder %s228, %s230
    %p237 = scmp.eq.s32.totalorder %s29, 1
    %p238 = por %p236, %p237
    %p239 = scmp.ne.s32.totalorder %s230, %s231
    %p240 = scmp.eq.s32.totalorder %s29, 0
    %p241 = por %p239, %p240
    %p242 = scmp.ne.s32.totalorder %s230, %s231
    %p243 = scmp.eq.s32.totalorder %s30, 1
    %p244 = por %p242, %p243
    %p246 = scmp.ne.s32.totalorder %s231, %s245
    %p247 = scmp.eq.s32.totalorder %s30, 0
    %p248 = por %p246, %p247
    %s250 = sadd.s32 %s249, 1
    %p253 = scmp.eq.s32.totalorder %s24, 1
    %p254 = scmp.ne.s32.totalorder %s249, %s251
    %p255 = scmp.eq.s32.totalorder %s24, 0
    %p256 = por %p254, %p255
    %p257 = scmp.ne.s32.totalorder %s249, %s251
    %p258 = scmp.eq.s32.totalorder %s29, 1
    %p259 = por %p257, %p258
    %p260 = scmp.ne.s32.totalorder %s251, %s252
    %p261 = scmp.eq.s32.totalorder %s29, 0
    %p262 = por %p260, %p261
    %p263 = scmp.ne.s32.totalorder %s251, %s252
    %p264 = scmp.eq.s32.totalorder %s30, 1
    %p265 = por %p263, %p264
    %p267 = scmp.ne.s32.totalorder %s252, %s266
    %p268 = scmp.eq.s32.totalorder %s30, 0
    %p269 = por %p267, %p268
    %s271 = sadd.s32 %s270, 1
    %p274 = scmp.eq.s32.totalorder %s24, 1
    %p275 = scmp.ne.s32.totalorder %s270, %s272
    %p276 = scmp.eq.s32.totalorder %s24, 0
    %p277 = por %p275, %p276
    %p278 = scmp.ne.s32.totalorder %s270, %s272
    %p279 = scmp.eq.s32.totalorder %s29, 1
    %p280 = por %p278, %p279
    %p281 = scmp.ne.s32.totalorder %s272, %s273
    %p282 = scmp.eq.s32.totalorder %s29, 0
    %p283 = por %p281, %p282
    %p284 = scmp.ne.s32.totalorder %s272, %s273
    %p285 = scmp.eq.s32.totalorder %s30, 1
    %p286 = por %p284, %p285
    %p288 = scmp.ne.s32.totalorder %s273, %s287
    %p289 = scmp.eq.s32.totalorder %s30, 0
    %p290 = por %p288, %p289
    %s292 = sadd.s32 %s291, 1
    %p295 = scmp.eq.s32.totalorder %s24, 1
    %p296 = scmp.ne.s32.totalorder %s291, %s293
    %p297 = scmp.eq.s32.totalorder %s24, 0
    %p298 = por %p296, %p297
    %p299 = scmp.ne.s32.totalorder %s291, %s293
    %p300 = scmp.eq.s32.totalorder %s29, 1
    %p301 = por %p299, %p300
    %p302 = scmp.ne.s32.totalorder %s293, %s294
    %p303 = scmp.eq.s32.totalorder %s29, 0
    %p304 = por %p302, %p303
    %p305 = scmp.ne.s32.totalorder %s293, %s294
    %p306 = scmp.eq.s32.totalorder %s30, 1
    %p307 = por %p305, %p306
    %p309 = scmp.ne.s32.totalorder %s294, %s308
    %p310 = scmp.eq.s32.totalorder %s30, 0
    %p311 = por %p309, %p310
    %s313 = sadd.s32 %s312, 1
    %p316 = scmp.eq.s32.totalorder %s24, 1
    %p317 = scmp.ne.s32.totalorder %s312, %s314
    %p318 = scmp.eq.s32.totalorder %s24, 0
    %p319 = por %p317, %p318
    %p320 = scmp.ne.s32.totalorder %s312, %s314
    %p321 = scmp.eq.s32.totalorder %s29, 1
    %p322 = por %p320, %p321
    %p323 = scmp.ne.s32.totalorder %s314, %s315
    %p324 = scmp.eq.s32.totalorder %s29, 0
    %p325 = por %p323, %p324
    %p326 = scmp.ne.s32.totalorder %s314, %s315
    %p327 = scmp.eq.s32.totalorder %s30, 1
    %p328 = por %p326, %p327
    %p330 = scmp.ne.s32.totalorder %s315, %s329
    %p331 = scmp.eq.s32.totalorder %s30, 0
    %p332 = por %p330, %p331
    %s334 = sadd.s32 %s333, 1
    %p337 = scmp.eq.s32.totalorder %s24, 1
    %p338 = scmp.ne.s32.totalorder %s333, %s335
    %p339 = scmp.eq.s32.totalorder %s24, 0
    %p340 = por %p338, %p339
    %p341 = scmp.ne.s32.totalorder %s333, %s335
    %p342 = scmp.eq.s32.totalorder %s29, 1
    %p343 = por %p341, %p342
    %p344 = scmp.ne.s32.totalorder %s335, %s336
    %p345 = scmp.eq.s32.totalorder %s29, 0
    %p346 = por %p344, %p345
    %p347 = scmp.ne.s32.totalorder %s335, %s336
    %p348 = scmp.eq.s32.totalorder %s30, 1
    %p349 = por %p347, %p348
    %p351 = scmp.ne.s32.totalorder %s336, %s350
    %p352 = scmp.eq.s32.totalorder %s30, 0
    %p353 = por %p351, %p352
    %s355 = sadd.s32 %s354, 1
    %p358 = scmp.eq.s32.totalorder %s24, 1
    %p359 = scmp.ne.s32.totalorder %s354, %s356
    %p360 = scmp.eq.s32.totalorder %s24, 0
    %p361 = por %p359, %p360
    %p362 = scmp.ne.s32.totalorder %s354, %s356
    %p363 = scmp.eq.s32.totalorder %s29, 1
    %p364 = por %p362, %p363
    %p365 = scmp.ne.s32.totalorder %s356, %s357
    %p366 = scmp.eq.s32.totalorder %s29, 0
    %p367 = por %p365, %p366
    %p368 = scmp.ne.s32.totalorder %s356, %s357
    %p369 = scmp.eq.s32.totalorder %s30, 1
    %p370 = por %p368, %p369
    %p372 = scmp.ne.s32.totalorder %s357, %s371
    %p373 = scmp.eq.s32.totalorder %s30, 0
    %p374 = por %p372, %p373
    %s375 = ssub.s32 %s31, %s43
    %s376 = ssub.s32 %s32, %s39
    %s377 = sor.u32 %s375, %s376
    %p378 = scmp.eq.s32.totalorder %s377, 0
    %s380 = sadd.s32 %s379, 1
    %s381 = scalar_select %p378, %s379, %s380
    %p384 = pneg %p378
    %p385 = scmp.eq.s32.totalorder %s24, 1
    %p386 = por %p384, %p385
    %p387 = scmp.ne.s32.totalorder %s379, %s382
    %p388 = scmp.eq.s32.totalorder %s24, 0
    %p389 = por %p387, %p388
    %p390 = scmp.ne.s32.totalorder %s379, %s382
    %p391 = scmp.eq.s32.totalorder %s29, 1
    %p392 = por %p390, %p391
    %p393 = scmp.ne.s32.totalorder %s382, %s383
    %p394 = scmp.eq.s32.totalorder %s29, 0
    %p395 = por %p393, %p394
    %p396 = scmp.ne.s32.totalorder %s382, %s383
    %p397 = scmp.eq.s32.totalorder %s30, 1
    %p398 = por %p396, %p397
    %p400 = scmp.ne.s32.totalorder %s383, %s399
    %p401 = scmp.eq.s32.totalorder %s30, 0
    %p402 = por %p400, %p401
    %s403 = ssub.s32 %s31, %s43
    %s404 = ssub.s32 %s32, %s39
    %s405 = sor.u32 %s403, %s404
    %p406 = scmp.eq.s32.totalorder %s405, 0
    %s408 = sadd.s32 %s407, 1
    %s409 = scalar_select %p406, %s407, %s408
    %p412 = pneg %p406
    %p413 = scmp.eq.s32.totalorder %s24, 1
    %p414 = por %p412, %p413
    %p415 = scmp.ne.s32.totalorder %s407, %s410
    %p416 = scmp.eq.s32.totalorder %s24, 0
    %p417 = por %p415, %p416
    %p418 = scmp.ne.s32.totalorder %s407, %s410
    %p419 = scmp.eq.s32.totalorder %s29, 1
    %p420 = por %p418, %p419
    %p421 = scmp.ne.s32.totalorder %s410, %s411
    %p422 = scmp.eq.s32.totalorder %s29, 0
    %p423 = por %p421, %p422
    %p424 = scmp.ne.s32.totalorder %s410, %s411
    %p425 = scmp.eq.s32.totalorder %s30, 1
    %p426 = por %p424, %p425
    %p428 = scmp.ne.s32.totalorder %s411, %s427
    %p429 = scmp.eq.s32.totalorder %s30, 0
    %p430 = por %p428, %p429
    %s431 = ssub.s32 %s31, %s43
    %s432 = ssub.s32 %s32, %s39
    %s433 = sor.u32 %s431, %s432
    %p434 = scmp.eq.s32.totalorder %s433, 0
    %s436 = sadd.s32 %s435, 1
    %s437 = scalar_select %p434, %s435, %s436
    %p440 = pneg %p434
    %p441 = scmp.eq.s32.totalorder %s24, 1
    %p442 = por %p440, %p441
    %p443 = scmp.ne.s32.totalorder %s435, %s438
    %p444 = scmp.eq.s32.totalorder %s24, 0
    %p445 = por %p443, %p444
    %p446 = scmp.ne.s32.totalorder %s435, %s438
    %p447 = scmp.eq.s32.totalorder %s29, 1
    %p448 = por %p446, %p447
    %p449 = scmp.ne.s32.totalorder %s438, %s439
    %p450 = scmp.eq.s32.totalorder %s29, 0
    %p451 = por %p449, %p450
    %p452 = scmp.ne.s32.totalorder %s438, %s439
    %p453 = scmp.eq.s32.totalorder %s30, 1
    %p454 = por %p452, %p453
    %p456 = scmp.ne.s32.totalorder %s439, %s455
    %p457 = scmp.eq.s32.totalorder %s30, 0
    %p458 = por %p456, %p457
    %p459 = scmp.le.s32.totalorder 1, %s24
    %p460 = scmp.lt.s32.totalorder %s24, 3
    %p461 = pnand %p459, %p460
    %p462 = pneg %p461
    // Predicated region
    $region9: #{post_forward.3} parent=5 // pred_check
      _
    $region10: #{post_forward.3} parent=5 // pred_check_branch
      %464 = sbr.rel (%p461) target = $region12
    $region11: #{post_forward.3} parent=5 // pred_region
      %s465 = ssub.s32 %s24, 1
      // Predicated region
      $region13: #{post_forward.3} parent=11 // pred_check
        %p466 = pneg %p115
      $region14: #{post_forward.3} parent=11 // pred_check_branch
        %468 = sbr.rel (%p466) target = $region16
      $region15: #{post_forward.3} parent=11 // pred_region
        _
      $region16: #{post_forward.3} parent=11 // pred_fallthru
        _
      // Predicated region
      $region17: #{post_forward.3} parent=11 // pred_check
        %p469 = pneg %p136
      $region18: #{post_forward.3} parent=11 // pred_check_branch
        %471 = sbr.rel (%p469) target = $region20
      $region19: #{post_forward.3} parent=11 // pred_region
        _
      $region20: #{post_forward.3} parent=11 // pred_fallthru
        _
      // Predicated region
      $region21: #{post_forward.3} parent=11 // pred_check
        %p472 = pneg %p157
      $region22: #{post_forward.3} parent=11 // pred_check_branch
        %474 = sbr.rel (%p472) target = $region24
      $region23: #{post_forward.3} parent=11 // pred_region
        _
      $region24: #{post_forward.3} parent=11 // pred_fallthru
        _
      // Predicated region
      $region25: #{post_forward.3} parent=11 // pred_check
        %p475 = pneg %p178
      $region26: #{post_forward.3} parent=11 // pred_check_branch
        %477 = sbr.rel (%p475) target = $region28
      $region27: #{post_forward.3} parent=11 // pred_region
        _
      $region28: #{post_forward.3} parent=11 // pred_fallthru
        _
      // Predicated region
      $region29: #{post_forward.3} parent=11 // pred_check
        %p478 = pneg %p199
      $region30: #{post_forward.3} parent=11 // pred_check_branch
        %480 = sbr.rel (%p478) target = $region32
      $region31: #{post_forward.3} parent=11 // pred_region
        _
      $region32: #{post_forward.3} parent=11 // pred_fallthru
        _
      // Predicated region
      $region33: #{post_forward.3} parent=11 // pred_check
        %p481 = pneg %p220
      $region34: #{post_forward.3} parent=11 // pred_check_branch
        %483 = sbr.rel (%p481) target = $region36
      $region35: #{post_forward.3} parent=11 // pred_region
        _
      $region36: #{post_forward.3} parent=11 // pred_fallthru
        _
      // Predicated region
      $region37: #{post_forward.3} parent=11 // pred_check
        %p484 = pneg %p241
      $region38: #{post_forward.3} parent=11 // pred_check_branch
        %486 = sbr.rel (%p484) target = $region40
      $region39: #{post_forward.3} parent=11 // pred_region
        _
      $region40: #{post_forward.3} parent=11 // pred_fallthru
        _
      // Predicated region
      $region41: #{post_forward.3} parent=11 // pred_check
        %p487 = pneg %p262
      $region42: #{post_forward.3} parent=11 // pred_check_branch
        %489 = sbr.rel (%p487) target = $region44
      $region43: #{post_forward.3} parent=11 // pred_region
        _
      $region44: #{post_forward.3} parent=11 // pred_fallthru
        _
      // Predicated region
      $region45: #{post_forward.3} parent=11 // pred_check
        %p490 = pneg %p283
      $region46: #{post_forward.3} parent=11 // pred_check_branch
        %492 = sbr.rel (%p490) target = $region48
      $region47: #{post_forward.3} parent=11 // pred_region
        _
      $region48: #{post_forward.3} parent=11 // pred_fallthru
        _
      // Predicated region
      $region49: #{post_forward.3} parent=11 // pred_check
        %p493 = pneg %p304
      $region50: #{post_forward.3} parent=11 // pred_check_branch
        %495 = sbr.rel (%p493) target = $region52
      $region51: #{post_forward.3} parent=11 // pred_region
        _
      $region52: #{post_forward.3} parent=11 // pred_fallthru
        _
      // Predicated region
      $region53: #{post_forward.3} parent=11 // pred_check
        %p496 = pneg %p325
      $region54: #{post_forward.3} parent=11 // pred_check_branch
        %498 = sbr.rel (%p496) target = $region56
      $region55: #{post_forward.3} parent=11 // pred_region
        _
      $region56: #{post_forward.3} parent=11 // pred_fallthru
        _
      // Predicated region
      $region57: #{post_forward.3} parent=11 // pred_check
        %p499 = pneg %p346
      $region58: #{post_forward.3} parent=11 // pred_check_branch
        %501 = sbr.rel (%p499) target = $region60
      $region59: #{post_forward.3} parent=11 // pred_region
        _
      $region60: #{post_forward.3} parent=11 // pred_fallthru
        _
      // Predicated region
      $region61: #{post_forward.3} parent=11 // pred_check
        %p502 = pneg %p367
      $region62: #{post_forward.3} parent=11 // pred_check_branch
        %504 = sbr.rel (%p502) target = $region64
      $region63: #{post_forward.3} parent=11 // pred_region
        _
      $region64: #{post_forward.3} parent=11 // pred_fallthru
        _
    $region12: #{post_forward.3} parent=5 // pred_fallthru
      _
    %p505 = scmp.lt.s32.totalorder %s24, 2
    // Predicated region
    $region65: #{post_forward.3} parent=5 // pred_check
      %p506 = pneg %p505
    $region66: #{post_forward.3} parent=5 // pred_check_branch
      %508 = sbr.rel (%p506) target = $region68
    $region67: #{post_forward.3} parent=5 // pred_region
      // Predicated region
      $region69: #{post_forward.3} parent=67 // pred_check
        %p509 = pneg %p58
      $region70: #{post_forward.3} parent=67 // pred_check_branch
        %511 = sbr.rel (%p509) target = $region72
      $region71: #{post_forward.3} parent=67 // pred_region
        %s512 = smul.u32 2, %s32
        %p513 = scmp.lt.s32.totalorder %s31, 3
        %s514 = scalar_select %p513, %s31, 3
        %p515 = scmp.lt.s32.totalorder %s512, 1
        %s516 = scalar_select %p515, %s512, 1
        %s517 = smul.addr %s514, 8
        %s518 = sadd.s32 %s516, %s517
        %s519 = smul.addr %s518, 8
        %s520 = scalar_lea.vmem %s0, %s519
        %s521 = smul.u32 2, %s32
      $region72: #{post_forward.3} parent=67 // pred_fallthru
        _
      // Predicated region
      $region73: #{post_forward.3} parent=67 // pred_check
        %p522 = pneg %p88
      $region74: #{post_forward.3} parent=67 // pred_check_branch
        %524 = sbr.rel (%p522) target = $region76
      $region75: #{post_forward.3} parent=67 // pred_region
        %s525 = sadd.s32 %s31, 2
        %s526 = smul.u32 2, %s32
        %p527 = scmp.lt.s32.totalorder %s525, 3
        %s528 = scalar_select %p527, %s525, 3
        %p529 = scmp.lt.s32.totalorder %s526, 1
        %s530 = scalar_select %p529, %s526, 1
        %s531 = smul.addr %s528, 8
        %s532 = sadd.s32 %s530, %s531
        %s533 = smul.addr %s532, 8
        %s534 = scalar_lea.vmem %s1, %s533
        %s535 = sadd.s32 %s31, 2
        %s536 = smul.u32 2, %s32
      $region76: #{post_forward.3} parent=67 // pred_fallthru
        _
    $region68: #{post_forward.3} parent=5 // pred_fallthru
      _
    %p537 = scmp.le.s32.totalorder 1, %s24
    %p538 = scmp.lt.s32.totalorder %s24, 3
    %p539 = pnand %p537, %p538
    %p540 = pneg %p539
    // Predicated region
    $region77: #{post_forward.3} parent=5 // pred_check
      _
    $region78: #{post_forward.3} parent=5 // pred_check_branch
      %542 = sbr.rel (%p539) target = $region80
    $region79: #{post_forward.3} parent=5 // pred_region
      %s543 = ssub.s32 %s24, 1
      %s544 = smul.u32 2, %s34
      %p545 = scmp.lt.s32.totalorder %s33, 3
      %s546 = scalar_select %p545, %s33, 3
      %p547 = scmp.lt.s32.totalorder %s544, 1
      %s548 = scalar_select %p547, %s544, 1
      %s549 = smul.addr %s546, 8
      %s550 = sadd.s32 %s548, %s549
      %s551 = smul.addr %s550, 8
      %s552 = scalar_lea.vmem %s0, %s551
      %p553 = pneg %p64
      %p554 = pneg %p61
      %s555 = sadd.s32 %s33, 2
      %s556 = smul.u32 2, %s34
      %p557 = scmp.lt.s32.totalorder %s555, 3
      %s558 = scalar_select %p557, %s555, 3
      %p559 = scmp.lt.s32.totalorder %s556, 1
      %s560 = scalar_select %p559, %s556, 1
      %s561 = smul.addr %s558, 8
      %s562 = sadd.s32 %s560, %s561
      %s563 = smul.addr %s562, 8
      %s564 = scalar_lea.vmem %s1, %s563
      %p565 = pneg %p94
      %p566 = pneg %p91
      %p567 = pneg %p115
      %p568 = pneg %p112
      %p569 = pneg %p136
      %p570 = pneg %p133
      %p571 = pneg %p157
      %p572 = pneg %p154
      %p573 = pneg %p178
      %p574 = pneg %p175
      %p575 = pneg %p199
      %p576 = pneg %p196
      %p577 = pneg %p220
      %p578 = pneg %p217
      %p579 = pneg %p241
      %p580 = pneg %p238
      %p581 = pneg %p262
      %p582 = pneg %p259
      %p583 = pneg %p283
      %p584 = pneg %p280
      %p585 = pneg %p304
      %p586 = pneg %p301
      %p587 = pneg %p325
      %p588 = pneg %p322
      %p589 = pneg %p346
      %p590 = pneg %p343
      %p591 = pneg %p367
      %p592 = pneg %p364
      %p593 = pneg %p395
      %p594 = pneg %p392
      %s595 = smul.u32 2, %s34
      %p596 = scmp.lt.s32.totalorder %s33, 1
      %s597 = scalar_select %p596, %s33, 1
      %p598 = scmp.lt.s32.totalorder %s595, 1
      %s599 = scalar_select %p598, %s595, 1
      %s600 = smul.addr %s597, 2
      %s601 = sadd.s32 %s599, %s600
      %s602 = smul.addr %s601, 8
      %s603 = scalar_lea.vmem %s15, %s602
      %p604 = pneg %p423
      %p605 = pneg %p420
      %s606 = smul.u32 2, %s34
      %p607 = scmp.lt.s32.totalorder %s33, 1
      %s608 = scalar_select %p607, %s33, 1
      %p609 = scmp.lt.s32.totalorder %s606, 1
      %s610 = scalar_select %p609, %s606, 1
      %s611 = smul.addr %s608, 2
      %s612 = sadd.s32 %s610, %s611
      %s613 = smul.addr %s612, 4
      %s614 = scalar_lea.vmem %s16, %s613
      %p615 = pneg %p451
      %p616 = pneg %p448
      %s617 = smul.u32 2, %s34
      %p618 = scmp.lt.s32.totalorder %s33, 1
      %s619 = scalar_select %p618, %s33, 1
      %p620 = scmp.lt.s32.totalorder %s617, 1
      %s621 = scalar_select %p620, %s617, 1
      %s622 = smul.addr %s619, 2
      %s623 = sadd.s32 %s621, %s622
      %s624 = smul.addr %s623, 2
      %s625 = scalar_lea.vmem %s17, %s624
      %s626 = smul.u32 2, %s34
      %p627 = scmp.lt.s32.totalorder %s33, 3
      %s628 = scalar_select %p627, %s33, 3
      %p629 = scmp.lt.s32.totalorder %s626, 1
      %s630 = scalar_select %p629, %s626, 1
      %s631 = smul.addr %s628, 8
      %s632 = sadd.s32 %s630, %s631
      %s633 = smul.addr %s632, 8
      %s634 = scalar_lea.vmem %s0, %s633
      %s635 = smul.u32 2, %s34
      %s636 = sadd.s32 %s33, 2
      %s637 = smul.u32 2, %s34
      %p638 = scmp.lt.s32.totalorder %s636, 3
      %s639 = scalar_select %p638, %s636, 3
      %p640 = scmp.lt.s32.totalorder %s637, 1
      %s641 = scalar_select %p640, %s637, 1
      %s642 = smul.addr %s639, 8
      %s643 = sadd.s32 %s641, %s642
      %s644 = smul.addr %s643, 8
      %s645 = scalar_lea.vmem %s1, %s644
      %s646 = sadd.s32 %s33, 2
      %s647 = smul.u32 2, %s34
      %s648 = smul.u32 2, %s34
      %p649 = scmp.lt.s32.totalorder %s33, 1
      %s650 = scalar_select %p649, %s33, 1
      %p651 = scmp.lt.s32.totalorder %s648, 1
      %s652 = scalar_select %p651, %s648, 1
      %s653 = smul.addr %s650, 2
      %s654 = sadd.s32 %s652, %s653
      %s655 = smul.addr %s654, 8
      %s656 = scalar_lea.vmem %s15, %s655
      %s657 = smul.u32 2, %s34
      %s658 = smul.u32 2, %s34
      %p659 = scmp.lt.s32.totalorder %s33, 1
      %s660 = scalar_select %p659, %s33, 1
      %p661 = scmp.lt.s32.totalorder %s658, 1
      %s662 = scalar_select %p661, %s658, 1
      %s663 = smul.addr %s660, 2
      %s664 = sadd.s32 %s662, %s663
      %s665 = smul.addr %s664, 4
      %s666 = scalar_lea.vmem %s16, %s665
      %s667 = smul.u32 2, %s34
      %s668 = smul.u32 2, %s34
      %p669 = scmp.lt.s32.totalorder %s33, 1
      %s670 = scalar_select %p669, %s33, 1
      %p671 = scmp.lt.s32.totalorder %s668, 1
      %s672 = scalar_select %p671, %s668, 1
      %s673 = smul.addr %s670, 2
      %s674 = sadd.s32 %s672, %s673
      %s675 = smul.addr %s674, 2
      %s676 = scalar_lea.vmem %s17, %s675
      %s677 = smul.u32 2, %s34
      %v678 = vld [vmem:[%s634] sm:$0xff]
      %v679 = vld [vmem:[%s634 + $0x8] sm:$0xff]
      %v680 = vld [vmem:[%s634 + $0x10] sm:$0xff]
      %v681 = vld [vmem:[%s634 + $0x18] sm:$0xff]
      %v682 = vld [vmem:[%s634 + $0x20] sm:$0xff]
      %v683 = vld [vmem:[%s634 + $0x28] sm:$0xff]
      %v684 = vld [vmem:[%s634 + $0x30] sm:$0xff]
      %v685 = vld [vmem:[%s634 + $0x38] sm:$0xff]
      %v686 = vld [vmem:[%s645] sm:$0xff]
      %v687 = vld [vmem:[%s645 + $0x8] sm:$0xff]
      %v688 = vld [vmem:[%s645 + $0x10] sm:$0xff]
      %v689 = vld [vmem:[%s645 + $0x18] sm:$0xff]
      %v690 = vld [vmem:[%s645 + $0x20] sm:$0xff]
      %v691 = vld [vmem:[%s645 + $0x28] sm:$0xff]
      %v692 = vld [vmem:[%s645 + $0x30] sm:$0xff]
      %v693 = vld [vmem:[%s645 + $0x38] sm:$0xff]
      %v694 = vld [vmem:[%s2] sm:$0xff]
      %v695 = vld [vmem:[%s2 + $0x8] sm:$0xff]
      %v696 = vld [vmem:[%s2 + $0x10] sm:$0xff]
      %v697 = vld [vmem:[%s2 + $0x18] sm:$0xff]
      %v698 = vld [vmem:[%s3] sm:$0xff]
      %v699 = vld [vmem:[%s3 + $0x8] sm:$0xff]
      %v700 = vld [vmem:[%s3 + $0x10] sm:$0xff]
      %v701 = vld [vmem:[%s3 + $0x18] sm:$0xff]
      %703 = vset.pattern.permute.xlu0 0
      %704 = vperm.xlu0 %703, %v698
      %v705 = vpop.permute.xlu0 %704
      %708 = vset.pattern.permute.xlu0 0
      %709 = vperm.xlu0 %708, %v699
      %v710 = vpop.permute.xlu0 %709
      %713 = vset.pattern.permute.xlu0 0
      %714 = vperm.xlu0 %713, %v700
      %v715 = vpop.permute.xlu0 %714
      %718 = vset.pattern.permute.xlu0 0
      %719 = vperm.xlu0 %718, %v701
      %v720 = vpop.permute.xlu0 %719
      %vm722 = vcmask 261120
      %v724 = vsel %vm722, %v694, 0
      %v727 = vsel %vm722, %v695, 0
      %v730 = vsel %vm722, %v696, 0
      %v733 = vsel %vm722, %v697, 0
      %735 = vmatprep.subr.mxu0 %v679
      %736 = vmatpush1.msra.mxu0 %v678
      %737 = vmatprep.subr.mxu0 %v681
      %738 = vmatpush1.msra.mxu0 %v680
      %739 = vmatprep.subr.mxu0 %v683
      %740 = vmatpush1.msra.mxu0 %v682
      %741 = vmatprep.subr.mxu0 %v685
      %742 = vmatpush1.msra.mxu0 %v684
      %743 = vmatprep.subr.mxu0 0.0
      %744 = vmatpush1.msra.mxu0 0.0
      %745 = vmatprep.subr.mxu0 0.0
      %746 = vmatpush1.msra.mxu0 0.0
      %747 = vmatprep.subr.mxu0 0.0
      %748 = vmatpush1.msra.mxu0 0.0
      %749 = vmatprep.subr.mxu0 0.0
      %750 = vmatpush1.msra.mxu0 0.0
      %751 = vmatprep.subr.mxu0 0.0
      %752 = vmatpush1.msra.mxu0 0.0
      %753 = vmatprep.subr.mxu0 0.0
      %754 = vmatpush1.msra.mxu0 0.0
      %755 = vmatprep.subr.mxu0 0.0
      %756 = vmatpush1.msra.mxu0 0.0
      %757 = vmatprep.subr.mxu0 0.0
      %758 = vmatpush1.msra.mxu0 0.0
      %759 = vmatprep.subr.mxu0 0.0
      %760 = vmatpush1.msra.mxu0 0.0
      %761 = vmatprep.subr.mxu0 0.0
      %762 = vmatpush1.msra.mxu0 0.0
      %763 = vmatprep.subr.mxu0 0.0
      %764 = vmatpush1.msra.mxu0 0.0
      %765 = vmatprep.subr.mxu0 0.0
      %766 = vmatpush1.msra.mxu0 0.0
      %767 = vmatprep.subr.mxu0 0.0
      %768 = vmatpush1.msra.mxu0 0.0
      %769 = vmatprep.subr.mxu0 0.0
      %770 = vmatpush1.msra.mxu0 0.0
      %771 = vmatprep.subr.mxu0 0.0
      %772 = vmatpush1.msra.mxu0 0.0
      %773 = vmatprep.subr.mxu0 0.0
      %774 = vmatpush1.msra.mxu0 0.0
      %775 = vmatprep.subr.mxu0 0.0
      %776 = vmatpush1.msra.mxu0 0.0
      %777 = vmatprep.subr.mxu0 0.0
      %778 = vmatpush1.msra.mxu0 0.0
      %779 = vmatprep.subr.mxu0 0.0
      %780 = vmatpush1.msra.mxu0 0.0
      %781 = vmatprep.subr.mxu0 0.0
      %782 = vmatpush1.msra.mxu0 0.0
      %783 = vmatprep.subr.mxu0 0.0
      %784 = vmatpush1.msra.mxu0 0.0
      %785 = vmatprep.subr.mxu0 0.0
      %786 = vmatpush1.msra.mxu0 0.0
      %787 = vmatprep.subr.mxu0 0.0
      %788 = vmatpush1.msra.mxu0 0.0
      %789 = vmatprep.subr.mxu0 0.0
      %790 = vmatpush1.msra.mxu0 0.0
      %791 = vmatprep.subr.mxu0 0.0
      %792 = vmatpush1.msra.mxu0 0.0
      %793 = vmatprep.subr.mxu0 0.0
      %794 = vmatpush1.msra.mxu0 0.0
      %795 = vmatprep.subr.mxu0 0.0
      %796 = vmatpush1.msra.mxu0 0.0
      %797 = vmatprep.subr.mxu0 0.0
      %798 = vmatpush1.msra.mxu0 0.0
      %799 = vmatprep.mubr.f32.mxu0 0.0
      %800 = vmatmul.mubr.f32.gmra.mrb[0].mxu0 %v724
      %v801 = vpop.f32.mrb[0].mxu0
      %v802 = vadd.f32 %v705, %v801
      %v803 = vpop.f32.mrb[0].mxu0
      %v804 = vadd.f32 %v705, %v803
      %805 = vmatprep.mubr.f32.mxu0 0.0
      %806 = vmatmul.mubr.f32.gmra.mrb[0].mxu0 %v727
      %v807 = vpop.f32.mrb[0].mxu0
      %v808 = vadd.f32 %v710, %v807
      %v809 = vpop.f32.mrb[0].mxu0
      %v810 = vadd.f32 %v710, %v809
      %811 = vmatprep.mubr.f32.mxu0 0.0
      %812 = vmatmul.mubr.f32.gmra.mrb[0].mxu0 %v730
      %v813 = vpop.f32.mrb[0].mxu0
      %v814 = vadd.f32 %v715, %v813
      %v815 = vpop.f32.mrb[0].mxu0
      %v816 = vadd.f32 %v715, %v815
      %817 = vmatprep.mubr.f32.mxu0 0.0
      %818 = vmatmul.mubr.f32.gmra.mrb[0].mxu0 %v733
      %v819 = vpop.f32.mrb[0].mxu0
      %v820 = vadd.f32 %v720, %v819
      %v821 = vpop.f32.mrb[0].mxu0
      %v822 = vadd.f32 %v720, %v821
      %823 = vdwg.mxu0
      %v824 = vmax.f32 %v802, 0.0
      %v825 = vmax.f32 %v804, 0.0
      %v826 = vmax.f32 %v808, 0.0
      %v827 = vmax.f32 %v810, 0.0
      %v828 = vmax.f32 %v814, 0.0
      %v829 = vmax.f32 %v816, 0.0
      %v830 = vmax.f32 %v820, 0.0
      %v831 = vmax.f32 %v822, 0.0
      %v832 = vld [vmem:[%s4] sm:$0xff]
      %v833 = vld [vmem:[%s5] sm:$0xff]
      %835 = vset.pattern.permute.xlu0 0
      %836 = vperm.xlu0 %835, %v833
      %v837 = vpop.permute.xlu0 %836
      %v840 = vsel %vm722, %v832, 0
      %842 = vmatprep.subr.mxu0 %v825
      %843 = vmatpush1.msra.mxu0 %v824
      %844 = vmatprep.subr.mxu0 %v827
      %845 = vmatpush1.msra.mxu0 %v826
      %846 = vmatprep.subr.mxu0 %v829
      %847 = vmatpush1.msra.mxu0 %v828
      %848 = vmatprep.subr.mxu0 %v831
      %849 = vmatpush1.msra.mxu0 %v830
      %850 = vmatprep.subr.mxu0 0.0
      %851 = vmatpush1.msra.mxu0 0.0
      %852 = vmatprep.subr.mxu0 0.0
      %853 = vmatpush1.msra.mxu0 0.0
      %854 = vmatprep.subr.mxu0 0.0
      %855 = vmatpush1.msra.mxu0 0.0
      %856 = vmatprep.subr.mxu0 0.0
      %857 = vmatpush1.msra.mxu0 0.0
      %858 = vmatprep.subr.mxu0 0.0
      %859 = vmatpush1.msra.mxu0 0.0
      %860 = vmatprep.subr.mxu0 0.0
      %861 = vmatpush1.msra.mxu0 0.0
      %862 = vmatprep.subr.mxu0 0.0
      %863 = vmatpush1.msra.mxu0 0.0
      %864 = vmatprep.subr.mxu0 0.0
      %865 = vmatpush1.msra.mxu0 0.0
      %866 = vmatprep.subr.mxu0 0.0
      %867 = vmatpush1.msra.mxu0 0.0
      %868 = vmatprep.subr.mxu0 0.0
      %869 = vmatpush1.msra.mxu0 0.0
      %870 = vmatprep.subr.mxu0 0.0
      %871 = vmatpush1.msra.mxu0 0.0
      %872 = vmatprep.subr.mxu0 0.0
      %873 = vmatpush1.msra.mxu0 0.0
      %874 = vmatprep.subr.mxu0 0.0
      %875 = vmatpush1.msra.mxu0 0.0
      %876 = vmatprep.subr.mxu0 0.0
      %877 = vmatpush1.msra.mxu0 0.0
      %878 = vmatprep.subr.mxu0 0.0
      %879 = vmatpush1.msra.mxu0 0.0
      %880 = vmatprep.subr.mxu0 0.0
      %881 = vmatpush1.msra.mxu0 0.0
      %882 = vmatprep.subr.mxu0 0.0
      %883 = vmatpush1.msra.mxu0 0.0
      %884 = vmatprep.subr.mxu0 0.0
      %885 = vmatpush1.msra.mxu0 0.0
      %886 = vmatprep.subr.mxu0 0.0
      %887 = vmatpush1.msra.mxu0 0.0
      %888 = vmatprep.subr.mxu0 0.0
      %889 = vmatpush1.msra.mxu0 0.0
      %890 = vmatprep.subr.mxu0 0.0
      %891 = vmatpush1.msra.mxu0 0.0
      %892 = vmatprep.subr.mxu0 0.0
      %893 = vmatpush1.msra.mxu0 0.0
      %894 = vmatprep.subr.mxu0 0.0
      %895 = vmatpush1.msra.mxu0 0.0
      %896 = vmatprep.subr.mxu0 0.0
      %897 = vmatpush1.msra.mxu0 0.0
      %898 = vmatprep.subr.mxu0 0.0
      %899 = vmatpush1.msra.mxu0 0.0
      %900 = vmatprep.subr.mxu0 0.0
      %901 = vmatpush1.msra.mxu0 0.0
      %902 = vmatprep.subr.mxu0 0.0
      %903 = vmatpush1.msra.mxu0 0.0
      %904 = vmatprep.subr.mxu0 0.0
      %905 = vmatpush1.msra.mxu0 0.0
      %906 = vmatprep.mubr.f32.mxu0 0.0
      %907 = vmatmul.mubr.f32.gmra.mrb[0].mxu0 %v840
      %v908 = vpop.f32.mrb[0].mxu0
      %v909 = vadd.f32 %v837, %v908
      %v910 = vpop.f32.mrb[0].mxu0
      %v911 = vadd.f32 %v837, %v910
      %912 = vdwg.mxu0
      %913 = vst [vmem:[%s656] sm:$0xff] %v909
      %914 = vst [vmem:[%s656 + $0x8] sm:$0xff] %v911
      %v915 = vld [vmem:[%s6] sm:$0xff]
      %v916 = vld [vmem:[%s6 + $0x8] sm:$0xff]
      %v917 = vld [vmem:[%s6 + $0x10] sm:$0xff]
      %v918 = vld [vmem:[%s6 + $0x18] sm:$0xff]
      %v919 = vld [vmem:[%s7] sm:$0xff]
      %v920 = vld [vmem:[%s7 + $0x8] sm:$0xff]
      %v921 = vld [vmem:[%s7 + $0x10] sm:$0xff]
      %v922 = vld [vmem:[%s7 + $0x18] sm:$0xff]
      %924 = vset.pattern.permute.xlu0 0
      %925 = vperm.xlu0 %924, %v919
      %v926 = vpop.permute.xlu0 %925
      %929 = vset.pattern.permute.xlu0 0
      %930 = vperm.xlu0 %929, %v920
      %v931 = vpop.permute.xlu0 %930
      %934 = vset.pattern.permute.xlu0 0
      %935 = vperm.xlu0 %934, %v921
      %v936 = vpop.permute.xlu0 %935
      %939 = vset.pattern.permute.xlu0 0
      %940 = vperm.xlu0 %939, %v922
      %v941 = vpop.permute.xlu0 %940
      %v944 = vsel %vm722, %v915, 0
      %v947 = vsel %vm722, %v916, 0
      %v950 = vsel %vm722, %v917, 0
      %v953 = vsel %vm722, %v918, 0
      %955 = vmatprep.subr.mxu0 %v679
      %956 = vmatpush1.msra.mxu0 %v678
      %957 = vmatprep.subr.mxu0 %v681
      %958 = vmatpush1.msra.mxu0 %v680
      %959 = vmatprep.subr.mxu0 %v683
      %960 = vmatpush1.msra.mxu0 %v682
      %961 = vmatprep.subr.mxu0 %v685
      %962 = vmatpush1.msra.mxu0 %v684
      %963 = vmatprep.subr.mxu0 0.0
      %964 = vmatpush1.msra.mxu0 0.0
      %965 = vmatprep.subr.mxu0 0.0
      %966 = vmatpush1.msra.mxu0 0.0
      %967 = vmatprep.subr.mxu0 0.0
      %968 = vmatpush1.msra.mxu0 0.0
      %969 = vmatprep.subr.mxu0 0.0
      %970 = vmatpush1.msra.mxu0 0.0
      %971 = vmatprep.subr.mxu0 0.0
      %972 = vmatpush1.msra.mxu0 0.0
      %973 = vmatprep.subr.mxu0 0.0
      %974 = vmatpush1.msra.mxu0 0.0
      %975 = vmatprep.subr.mxu0 0.0
      %976 = vmatpush1.msra.mxu0 0.0
      %977 = vmatprep.subr.mxu0 0.0
      %978 = vmatpush1.msra.mxu0 0.0
      %979 = vmatprep.subr.mxu0 0.0
      %980 = vmatpush1.msra.mxu0 0.0
      %981 = vmatprep.subr.mxu0 0.0
      %982 = vmatpush1.msra.mxu0 0.0
      %983 = vmatprep.subr.mxu0 0.0
      %984 = vmatpush1.msra.mxu0 0.0
      %985 = vmatprep.subr.mxu0 0.0
      %986 = vmatpush1.msra.mxu0 0.0
      %987 = vmatprep.subr.mxu0 0.0
      %988 = vmatpush1.msra.mxu0 0.0
      %989 = vmatprep.subr.mxu0 0.0
      %990 = vmatpush1.msra.mxu0 0.0
      %991 = vmatprep.subr.mxu0 0.0
      %992 = vmatpush1.msra.mxu0 0.0
      %993 = vmatprep.subr.mxu0 0.0
      %994 = vmatpush1.msra.mxu0 0.0
      %995 = vmatprep.subr.mxu0 0.0
      %996 = vmatpush1.msra.mxu0 0.0
      %997 = vmatprep.subr.mxu0 0.0
      %998 = vmatpush1.msra.mxu0 0.0
      %999 = vmatprep.subr.mxu0 0.0
      %1000 = vmatpush1.msra.mxu0 0.0
      %1001 = vmatprep.subr.mxu0 0.0
      %1002 = vmatpush1.msra.mxu0 0.0
      %1003 = vmatprep.subr.mxu0 0.0
      %1004 = vmatpush1.msra.mxu0 0.0
      %1005 = vmatprep.subr.mxu0 0.0
      %1006 = vmatpush1.msra.mxu0 0.0
      %1007 = vmatprep.subr.mxu0 0.0
      %1008 = vmatpush1.msra.mxu0 0.0
      %1009 = vmatprep.subr.mxu0 0.0
      %1010 = vmatpush1.msra.mxu0 0.0
      %1011 = vmatprep.subr.mxu0 0.0
      %1012 = vmatpush1.msra.mxu0 0.0
      %1013 = vmatprep.subr.mxu0 0.0
      %1014 = vmatpush1.msra.mxu0 0.0
      %1015 = vmatprep.subr.mxu0 0.0
      %1016 = vmatpush1.msra.mxu0 0.0
      %1017 = vmatprep.subr.mxu0 0.0
      %1018 = vmatpush1.msra.mxu0 0.0
      %1019 = vmatprep.mubr.f32.mxu0 0.0
      %1020 = vmatmul.mubr.f32.gmra.mrb[0].mxu0 %v944
      %v1021 = vpop.f32.mrb[0].mxu0
      %v1022 = vadd.f32 %v926, %v1021
      %v1023 = vpop.f32.mrb[0].mxu0
      %v1024 = vadd.f32 %v926, %v1023
      %1025 = vmatprep.mubr.f32.mxu0 0.0
      %1026 = vmatmul.mubr.f32.gmra.mrb[0].mxu0 %v947
      %v1027 = vpop.f32.mrb[0].mxu0
      %v1028 = vadd.f32 %v931, %v1027
      %v1029 = vpop.f32.mrb[0].mxu0
      %v1030 = vadd.f32 %v931, %v1029
      %1031 = vmatprep.mubr.f32.mxu0 0.0
      %1032 = vmatmul.mubr.f32.gmra.mrb[0].mxu0 %v950
      %v1033 = vpop.f32.mrb[0].mxu0
      %v1034 = vadd.f32 %v936, %v1033
      %v1035 = vpop.f32.mrb[0].mxu0
      %v1036 = vadd.f32 %v936, %v1035
      %1037 = vmatprep.mubr.f32.mxu0 0.0
      %1038 = vmatmul.mubr.f32.gmra.mrb[0].mxu0 %v953
      %v1039 = vpop.f32.mrb[0].mxu0
      %v1040 = vadd.f32 %v941, %v1039
      %v1041 = vpop.f32.mrb[0].mxu0
      %v1042 = vadd.f32 %v941, %v1041
      %1043 = vdwg.mxu0
      %v1044 = vmax.f32 %v1022, 0.0
      %v1045 = vmax.f32 %v1024, 0.0
      %v1046 = vmax.f32 %v1028, 0.0
      %v1047 = vmax.f32 %v1030, 0.0
      %v1048 = vmax.f32 %v1034, 0.0
      %v1049 = vmax.f32 %v1036, 0.0
      %v1050 = vmax.f32 %v1040, 0.0
      %v1051 = vmax.f32 %v1042, 0.0
      %v1052 = vld [vmem:[%s8] sm:$0x7]
      %v1053 = vld [vmem:[%s9] sm:$0x7]
      %1055 = vset.pattern.permute.xlu0 0
      %1056 = vperm.xlu0 %1055, %v1053
      %v1057 = vpop.permute.xlu0 %1056
      %v1060 = vsel %vm722, %v1052, 0
      %1062 = vmatprep.subr.mxu0 %v1045
      %1063 = vmatpush1.msra.mxu0 %v1044
      %1064 = vmatprep.subr.mxu0 %v1047
      %1065 = vmatpush1.msra.mxu0 %v1046
      %1066 = vmatprep.subr.mxu0 %v1049
      %1067 = vmatpush1.msra.mxu0 %v1048
      %1068 = vmatprep.subr.mxu0 %v1051
      %1069 = vmatpush1.msra.mxu0 %v1050
      %1070 = vmatprep.subr.mxu0 0.0
      %1071 = vmatpush1.msra.mxu0 0.0
      %1072 = vmatprep.subr.mxu0 0.0
      %1073 = vmatpush1.msra.mxu0 0.0
      %1074 = vmatprep.subr.mxu0 0.0
      %1075 = vmatpush1.msra.mxu0 0.0
      %1076 = vmatprep.subr.mxu0 0.0
      %1077 = vmatpush1.msra.mxu0 0.0
      %1078 = vmatprep.subr.mxu0 0.0
      %1079 = vmatpush1.msra.mxu0 0.0
      %1080 = vmatprep.subr.mxu0 0.0
      %1081 = vmatpush1.msra.mxu0 0.0
      %1082 = vmatprep.subr.mxu0 0.0
      %1083 = vmatpush1.msra.mxu0 0.0
      %1084 = vmatprep.subr.mxu0 0.0
      %1085 = vmatpush1.msra.mxu0 0.0
      %1086 = vmatprep.subr.mxu0 0.0
      %1087 = vmatpush1.msra.mxu0 0.0
      %1088 = vmatprep.subr.mxu0 0.0
      %1089 = vmatpush1.msra.mxu0 0.0
      %1090 = vmatprep.subr.mxu0 0.0
      %1091 = vmatpush1.msra.mxu0 0.0
      %1092 = vmatprep.subr.mxu0 0.0
      %1093 = vmatpush1.msra.mxu0 0.0
      %1094 = vmatprep.subr.mxu0 0.0
      %1095 = vmatpush1.msra.mxu0 0.0
      %1096 = vmatprep.subr.mxu0 0.0
      %1097 = vmatpush1.msra.mxu0 0.0
      %1098 = vmatprep.subr.mxu0 0.0
      %1099 = vmatpush1.msra.mxu0 0.0
      %1100 = vmatprep.subr.mxu0 0.0
      %1101 = vmatpush1.msra.mxu0 0.0
      %1102 = vmatprep.subr.mxu0 0.0
      %1103 = vmatpush1.msra.mxu0 0.0
      %1104 = vmatprep.subr.mxu0 0.0
      %1105 = vmatpush1.msra.mxu0 0.0
      %1106 = vmatprep.subr.mxu0 0.0
      %1107 = vmatpush1.msra.mxu0 0.0
      %1108 = vmatprep.subr.mxu0 0.0
      %1109 = vmatpush1.msra.mxu0 0.0
      %1110 = vmatprep.subr.mxu0 0.0
      %1111 = vmatpush1.msra.mxu0 0.0
      %1112 = vmatprep.subr.mxu0 0.0
      %1113 = vmatpush1.msra.mxu0 0.0
      %1114 = vmatprep.subr.mxu0 0.0
      %1115 = vmatpush1.msra.mxu0 0.0
      %1116 = vmatprep.subr.mxu0 0.0
      %1117 = vmatpush1.msra.mxu0 0.0
      %1118 = vmatprep.subr.mxu0 0.0
      %1119 = vmatpush1.msra.mxu0 0.0
      %1120 = vmatprep.subr.mxu0 0.0
      %1121 = vmatpush1.msra.mxu0 0.0
      %1122 = vmatprep.subr.mxu0 0.0
      %1123 = vmatpush1.msra.mxu0 0.0
      %1124 = vmatprep.subr.mxu0 0.0
      %1125 = vmatpush1.msra.mxu0 0.0
      %1126 = vmatprep.mubr.f32.mxu0 0.0
      %1127 = vmatmul.mubr.f32.gmra.mrb[0].mxu0 %v1060
      %v1128 = vpop.f32.mrb[0].mxu0
      %v1129 = vadd.f32 %v1057, %v1128
      %v1130 = vpop.f32.mrb[0].mxu0
      %v1131 = vadd.f32 %v1057, %v1130
      %1132 = vdwg.mxu0
      %v1135 = vcombine.low %v1129, %v1131
      %1137 = vst [vmem:[%s666] sm:$0x77] %v1135
      %v1138 = vld [vmem:[%s10] sm:$0xff]
      %v1139 = vld [vmem:[%s10 + $0x8] sm:$0xff]
      %v1140 = vld [vmem:[%s10 + $0x10] sm:$0xff]
      %v1141 = vld [vmem:[%s10 + $0x18] sm:$0xff]
      %v1142 = vld [vmem:[%s11] sm:$0xff]
      %v1143 = vld [vmem:[%s11 + $0x8] sm:$0xff]
      %v1144 = vld [vmem:[%s11 + $0x10] sm:$0xff]
      %v1145 = vld [vmem:[%s11 + $0x18] sm:$0xff]
      %v1147 = vsel %vm722, %v1142, 0
      %v1150 = vsel %vm722, %v1143, 0
      %v1153 = vsel %vm722, %v1144, 0
      %v1156 = vsel %vm722, %v1145, 0
      %1158 = vmatprep.subr.mxu0 %v687
      %1159 = vmatpush1.msra.mxu0 %v686
      %1160 = vmatprep.subr.mxu0 %v689
      %1161 = vmatpush1.msra.mxu0 %v688
      %1162 = vmatprep.subr.mxu0 %v691
      %1163 = vmatpush1.msra.mxu0 %v690
      %1164 = vmatprep.subr.mxu0 %v693
      %1165 = vmatpush1.msra.mxu0 %v692
      %1166 = vmatprep.subr.mxu0 0.0
      %1167 = vmatpush1.msra.mxu0 0.0
      %1168 = vmatprep.subr.mxu0 0.0
      %1169 = vmatpush1.msra.mxu0 0.0
      %1170 = vmatprep.subr.mxu0 0.0
      %1171 = vmatpush1.msra.mxu0 0.0
      %1172 = vmatprep.subr.mxu0 0.0
      %1173 = vmatpush1.msra.mxu0 0.0
      %1174 = vmatprep.subr.mxu0 0.0
      %1175 = vmatpush1.msra.mxu0 0.0
      %1176 = vmatprep.subr.mxu0 0.0
      %1177 = vmatpush1.msra.mxu0 0.0
      %1178 = vmatprep.subr.mxu0 0.0
      %1179 = vmatpush1.msra.mxu0 0.0
      %1180 = vmatprep.subr.mxu0 0.0
      %1181 = vmatpush1.msra.mxu0 0.0
      %1182 = vmatprep.subr.mxu0 0.0
      %1183 = vmatpush1.msra.mxu0 0.0
      %1184 = vmatprep.subr.mxu0 0.0
      %1185 = vmatpush1.msra.mxu0 0.0
      %1186 = vmatprep.subr.mxu0 0.0
      %1187 = vmatpush1.msra.mxu0 0.0
      %1188 = vmatprep.subr.mxu0 0.0
      %1189 = vmatpush1.msra.mxu0 0.0
      %1190 = vmatprep.subr.mxu0 0.0
      %1191 = vmatpush1.msra.mxu0 0.0
      %1192 = vmatprep.subr.mxu0 0.0
      %1193 = vmatpush1.msra.mxu0 0.0
      %1194 = vmatprep.subr.mxu0 0.0
      %1195 = vmatpush1.msra.mxu0 0.0
      %1196 = vmatprep.subr.mxu0 0.0
      %1197 = vmatpush1.msra.mxu0 0.0
      %1198 = vmatprep.subr.mxu0 0.0
      %1199 = vmatpush1.msra.mxu0 0.0
      %1200 = vmatprep.subr.mxu0 0.0
      %1201 = vmatpush1.msra.mxu0 0.0
      %1202 = vmatprep.subr.mxu0 0.0
      %1203 = vmatpush1.msra.mxu0 0.0
      %1204 = vmatprep.subr.mxu0 0.0
      %1205 = vmatpush1.msra.mxu0 0.0
      %1206 = vmatprep.subr.mxu0 0.0
      %1207 = vmatpush1.msra.mxu0 0.0
      %1208 = vmatprep.subr.mxu0 0.0
      %1209 = vmatpush1.msra.mxu0 0.0
      %1210 = vmatprep.subr.mxu0 0.0
      %1211 = vmatpush1.msra.mxu0 0.0
      %1212 = vmatprep.subr.mxu0 0.0
      %1213 = vmatpush1.msra.mxu0 0.0
      %1214 = vmatprep.subr.mxu0 0.0
      %1215 = vmatpush1.msra.mxu0 0.0
      %1216 = vmatprep.subr.mxu0 0.0
      %1217 = vmatpush1.msra.mxu0 0.0
      %1218 = vmatprep.subr.mxu0 0.0
      %1219 = vmatpush1.msra.mxu0 0.0
      %1220 = vmatprep.subr.mxu0 0.0
      %1221 = vmatpush1.msra.mxu0 0.0
      %1222 = vmatprep.mubr.f32.mxu0 0.0
      %1223 = vmatmul.mubr.f32.gmra.mrb[0].mxu0 %v1147
      %v1224 = vpop.f32.mrb[0].mxu0
      %v1225 = vadd.f32 0.0, %v1224
      %v1226 = vpop.f32.mrb[0].mxu0
      %v1227 = vadd.f32 0.0, %v1226
      %1228 = vmatprep.mubr.f32.mxu0 0.0
      %1229 = vmatmul.mubr.f32.gmra.mrb[0].mxu0 %v1150
      %v1230 = vpop.f32.mrb[0].mxu0
      %v1231 = vadd.f32 0.0, %v1230
      %v1232 = vpop.f32.mrb[0].mxu0
      %v1233 = vadd.f32 0.0, %v1232
      %1234 = vmatprep.mubr.f32.mxu0 0.0
      %1235 = vmatmul.mubr.f32.gmra.mrb[0].mxu0 %v1153
      %v1236 = vpop.f32.mrb[0].mxu0
      %v1237 = vadd.f32 0.0, %v1236
      %v1238 = vpop.f32.mrb[0].mxu0
      %v1239 = vadd.f32 0.0, %v1238
      %1240 = vmatprep.mubr.f32.mxu0 0.0
      %1241 = vmatmul.mubr.f32.gmra.mrb[0].mxu0 %v1156
      %v1242 = vpop.f32.mrb[0].mxu0
      %v1243 = vadd.f32 0.0, %v1242
      %v1244 = vpop.f32.mrb[0].mxu0
      %v1245 = vadd.f32 0.0, %v1244
      %1246 = vdwg.mxu0
      %v1248 = vsel %vm722, %v1138, 0
      %v1251 = vsel %vm722, %v1139, 0
      %v1254 = vsel %vm722, %v1140, 0
      %v1257 = vsel %vm722, %v1141, 0
      %1259 = vmatprep.subr.mxu0 %v679
      %1260 = vmatpush1.msra.mxu0 %v678
      %1261 = vmatprep.subr.mxu0 %v681
      %1262 = vmatpush1.msra.mxu0 %v680
      %1263 = vmatprep.subr.mxu0 %v683
      %1264 = vmatpush1.msra.mxu0 %v682
      %1265 = vmatprep.subr.mxu0 %v685
      %1266 = vmatpush1.msra.mxu0 %v684
      %1267 = vmatprep.subr.mxu0 0.0
      %1268 = vmatpush1.msra.mxu0 0.0
      %1269 = vmatprep.subr.mxu0 0.0
      %1270 = vmatpush1.msra.mxu0 0.0
      %1271 = vmatprep.subr.mxu0 0.0
      %1272 = vmatpush1.msra.mxu0 0.0
      %1273 = vmatprep.subr.mxu0 0.0
      %1274 = vmatpush1.msra.mxu0 0.0
      %1275 = vmatprep.subr.mxu0 0.0
      %1276 = vmatpush1.msra.mxu0 0.0
      %1277 = vmatprep.subr.mxu0 0.0
      %1278 = vmatpush1.msra.mxu0 0.0
      %1279 = vmatprep.subr.mxu0 0.0
      %1280 = vmatpush1.msra.mxu0 0.0
      %1281 = vmatprep.subr.mxu0 0.0
      %1282 = vmatpush1.msra.mxu0 0.0
      %1283 = vmatprep.subr.mxu0 0.0
      %1284 = vmatpush1.msra.mxu0 0.0
      %1285 = vmatprep.subr.mxu0 0.0
      %1286 = vmatpush1.msra.mxu0 0.0
      %1287 = vmatprep.subr.mxu0 0.0
      %1288 = vmatpush1.msra.mxu0 0.0
      %1289 = vmatprep.subr.mxu0 0.0
      %1290 = vmatpush1.msra.mxu0 0.0
      %1291 = vmatprep.subr.mxu0 0.0
      %1292 = vmatpush1.msra.mxu0 0.0
      %1293 = vmatprep.subr.mxu0 0.0
      %1294 = vmatpush1.msra.mxu0 0.0
      %1295 = vmatprep.subr.mxu0 0.0
      %1296 = vmatpush1.msra.mxu0 0.0
      %1297 = vmatprep.subr.mxu0 0.0
      %1298 = vmatpush1.msra.mxu0 0.0
      %1299 = vmatprep.subr.mxu0 0.0
      %1300 = vmatpush1.msra.mxu0 0.0
      %1301 = vmatprep.subr.mxu0 0.0
      %1302 = vmatpush1.msra.mxu0 0.0
      %1303 = vmatprep.subr.mxu0 0.0
      %1304 = vmatpush1.msra.mxu0 0.0
      %1305 = vmatprep.subr.mxu0 0.0
      %1306 = vmatpush1.msra.mxu0 0.0
      %1307 = vmatprep.subr.mxu0 0.0
      %1308 = vmatpush1.msra.mxu0 0.0
      %1309 = vmatprep.subr.mxu0 0.0
      %1310 = vmatpush1.msra.mxu0 0.0
      %1311 = vmatprep.subr.mxu0 0.0
      %1312 = vmatpush1.msra.mxu0 0.0
      %1313 = vmatprep.subr.mxu0 0.0
      %1314 = vmatpush1.msra.mxu0 0.0
      %1315 = vmatprep.subr.mxu0 0.0
      %1316 = vmatpush1.msra.mxu0 0.0
      %1317 = vmatprep.subr.mxu0 0.0
      %1318 = vmatpush1.msra.mxu0 0.0
      %1319 = vmatprep.subr.mxu0 0.0
      %1320 = vmatpush1.msra.mxu0 0.0
      %1321 = vmatprep.subr.mxu0 0.0
      %1322 = vmatpush1.msra.mxu0 0.0
      %1323 = vmatprep.mubr.f32.mxu0 0.0
      %1324 = vmatmul.mubr.f32.gmra.mrb[0].mxu0 %v1248
      %v1325 = vpop.f32.mrb[0].mxu0
      %v1326 = vadd.f32 %v1225, %v1325
      %v1327 = vpop.f32.mrb[0].mxu0
      %v1328 = vadd.f32 %v1227, %v1327
      %1329 = vmatprep.mubr.f32.mxu0 0.0
      %1330 = vmatmul.mubr.f32.gmra.mrb[0].mxu0 %v1251
      %v1331 = vpop.f32.mrb[0].mxu0
      %v1332 = vadd.f32 %v1231, %v1331
      %v1333 = vpop.f32.mrb[0].mxu0
      %v1334 = vadd.f32 %v1233, %v1333
      %1335 = vmatprep.mubr.f32.mxu0 0.0
      %1336 = vmatmul.mubr.f32.gmra.mrb[0].mxu0 %v1254
      %v1337 = vpop.f32.mrb[0].mxu0
      %v1338 = vadd.f32 %v1237, %v1337
      %v1339 = vpop.f32.mrb[0].mxu0
      %v1340 = vadd.f32 %v1239, %v1339
      %1341 = vmatprep.mubr.f32.mxu0 0.0
      %1342 = vmatmul.mubr.f32.gmra.mrb[0].mxu0 %v1257
      %v1343 = vpop.f32.mrb[0].mxu0
      %v1344 = vadd.f32 %v1243, %v1343
      %v1345 = vpop.f32.mrb[0].mxu0
      %v1346 = vadd.f32 %v1245, %v1345
      %1347 = vdwg.mxu0
      %v1348 = vld [vmem:[%s12] sm:$0xff]
      %v1349 = vld [vmem:[%s12 + $0x8] sm:$0xff]
      %v1350 = vld [vmem:[%s12 + $0x10] sm:$0xff]
      %v1351 = vld [vmem:[%s12 + $0x18] sm:$0xff]
      %1353 = vset.pattern.permute.xlu0 0
      %1354 = vperm.xlu0 %1353, %v1348
      %v1355 = vpop.permute.xlu0 %1354
      %1358 = vset.pattern.permute.xlu0 0
      %1359 = vperm.xlu0 %1358, %v1349
      %v1360 = vpop.permute.xlu0 %1359
      %1363 = vset.pattern.permute.xlu0 0
      %1364 = vperm.xlu0 %1363, %v1350
      %v1365 = vpop.permute.xlu0 %1364
      %1368 = vset.pattern.permute.xlu0 0
      %1369 = vperm.xlu0 %1368, %v1351
      %v1370 = vpop.permute.xlu0 %1369
      %v1372 = vadd.f32 %v1326, %v1355
      %v1373 = vadd.f32 %v1328, %v1355
      %v1374 = vadd.f32 %v1332, %v1360
      %v1375 = vadd.f32 %v1334, %v1360
      %v1376 = vadd.f32 %v1338, %v1365
      %v1377 = vadd.f32 %v1340, %v1365
      %v1378 = vadd.f32 %v1344, %v1370
      %v1379 = vadd.f32 %v1346, %v1370
      %v1380 = vmax.f32 %v1372, 0.0
      %v1381 = vmax.f32 %v1373, 0.0
      %v1382 = vmax.f32 %v1374, 0.0
      %v1383 = vmax.f32 %v1375, 0.0
      %v1384 = vmax.f32 %v1376, 0.0
      %v1385 = vmax.f32 %v1377, 0.0
      %v1386 = vmax.f32 %v1378, 0.0
      %v1387 = vmax.f32 %v1379, 0.0
      %v1388 = vld [vmem:[%s13] sm:$0x3]
      %v1389 = vld [vmem:[%s14] sm:$0x3]
      %1391 = vset.pattern.permute.xlu0 0
      %1392 = vperm.xlu0 %1391, %v1389
      %v1393 = vpop.permute.xlu0 %1392
      %v1396 = vsel %vm722, %v1388, 0
      %1398 = vmatprep.subr.mxu0 %v1381
      %1399 = vmatpush1.msra.mxu0 %v1380
      %1400 = vmatprep.subr.mxu0 %v1383
      %1401 = vmatpush1.msra.mxu0 %v1382
      %1402 = vmatprep.subr.mxu0 %v1385
      %1403 = vmatpush1.msra.mxu0 %v1384
      %1404 = vmatprep.subr.mxu0 %v1387
      %1405 = vmatpush1.msra.mxu0 %v1386
      %1406 = vmatprep.subr.mxu0 0.0
      %1407 = vmatpush1.msra.mxu0 0.0
      %1408 = vmatprep.subr.mxu0 0.0
      %1409 = vmatpush1.msra.mxu0 0.0
      %1410 = vmatprep.subr.mxu0 0.0
      %1411 = vmatpush1.msra.mxu0 0.0
      %1412 = vmatprep.subr.mxu0 0.0
      %1413 = vmatpush1.msra.mxu0 0.0
      %1414 = vmatprep.subr.mxu0 0.0
      %1415 = vmatpush1.msra.mxu0 0.0
      %1416 = vmatprep.subr.mxu0 0.0
      %1417 = vmatpush1.msra.mxu0 0.0
      %1418 = vmatprep.subr.mxu0 0.0
      %1419 = vmatpush1.msra.mxu0 0.0
      %1420 = vmatprep.subr.mxu0 0.0
      %1421 = vmatpush1.msra.mxu0 0.0
      %1422 = vmatprep.subr.mxu0 0.0
      %1423 = vmatpush1.msra.mxu0 0.0
      %1424 = vmatprep.subr.mxu0 0.0
      %1425 = vmatpush1.msra.mxu0 0.0
      %1426 = vmatprep.subr.mxu0 0.0
      %1427 = vmatpush1.msra.mxu0 0.0
      %1428 = vmatprep.subr.mxu0 0.0
      %1429 = vmatpush1.msra.mxu0 0.0
      %1430 = vmatprep.subr.mxu0 0.0
      %1431 = vmatpush1.msra.mxu0 0.0
      %1432 = vmatprep.subr.mxu0 0.0
      %1433 = vmatpush1.msra.mxu0 0.0
      %1434 = vmatprep.subr.mxu0 0.0
      %1435 = vmatpush1.msra.mxu0 0.0
      %1436 = vmatprep.subr.mxu0 0.0
      %1437 = vmatpush1.msra.mxu0 0.0
      %1438 = vmatprep.subr.mxu0 0.0
      %1439 = vmatpush1.msra.mxu0 0.0
      %1440 = vmatprep.subr.mxu0 0.0
      %1441 = vmatpush1.msra.mxu0 0.0
      %1442 = vmatprep.subr.mxu0 0.0
      %1443 = vmatpush1.msra.mxu0 0.0
      %1444 = vmatprep.subr.mxu0 0.0
      %1445 = vmatpush1.msra.mxu0 0.0
      %1446 = vmatprep.subr.mxu0 0.0
      %1447 = vmatpush1.msra.mxu0 0.0
      %1448 = vmatprep.subr.mxu0 0.0
      %1449 = vmatpush1.msra.mxu0 0.0
      %1450 = vmatprep.subr.mxu0 0.0
      %1451 = vmatpush1.msra.mxu0 0.0
      %1452 = vmatprep.subr.mxu0 0.0
      %1453 = vmatpush1.msra.mxu0 0.0
      %1454 = vmatprep.subr.mxu0 0.0
      %1455 = vmatpush1.msra.mxu0 0.0
      %1456 = vmatprep.subr.mxu0 0.0
      %1457 = vmatpush1.msra.mxu0 0.0
      %1458 = vmatprep.subr.mxu0 0.0
      %1459 = vmatpush1.msra.mxu0 0.0
      %1460 = vmatprep.subr.mxu0 0.0
      %1461 = vmatpush1.msra.mxu0 0.0
      %1462 = vmatprep.mubr.f32.mxu0 0.0
      %1463 = vmatmul.mubr.f32.gmra.mrb[0].mxu0 %v1396
      %v1464 = vpop.f32.mrb[0].mxu0
      %v1465 = vadd.f32 %v1393, %v1464
      %v1466 = vpop.f32.mrb[0].mxu0
      %v1467 = vadd.f32 %v1393, %v1466
      %1468 = vdwg.mxu0
      %v1471 = vcombine.low %v1465, %v1467
      %v1473 = vunpack.c.l.s4 1983009808
      %v1474 = vunpack.c.0.s8 %v1473
      %v1475 = vlaneseq
      %v1476 = vshrl.u32 %v1475, 7
      %v1477 = vsub.s32 %v1474, %v1476
      %v1478 = vrot.slane %v1471, %v1477
      %1480 = vst [vmem:[%s676] sm:$0xf] %v1478
      %s1481 = smul.u32 2, %s34
      %p1482 = scmp.lt.s32.totalorder %s33, 1
      %s1483 = scalar_select %p1482, %s33, 1
      %p1484 = scmp.lt.s32.totalorder %s1481, 1
      %s1485 = scalar_select %p1484, %s1481, 1
      %s1486 = smul.addr %s1483, 2
      %s1487 = sadd.s32 %s1485, %s1486
      %s1488 = smul.addr %s1487, 8
      %s1489 = scalar_lea.vmem %s15, %s1488
      %s1490 = smul.u32 2, %s34
      %p1491 = scmp.lt.s32.totalorder %s33, 1
      %s1492 = scalar_select %p1491, %s33, 1
      %p1493 = scmp.lt.s32.totalorder %s1490, 1
      %s1494 = scalar_select %p1493, %s1490, 1
      %s1495 = smul.addr %s1492, 2
      %s1496 = sadd.s32 %s1494, %s1495
      %s1497 = smul.addr %s1496, 4
      %s1498 = scalar_lea.vmem %s16, %s1497
      %s1499 = smul.u32 2, %s34
      %p1500 = scmp.lt.s32.totalorder %s33, 1
      %s1501 = scalar_select %p1500, %s33, 1
      %p1502 = scmp.lt.s32.totalorder %s1499, 1
      %s1503 = scalar_select %p1502, %s1499, 1
      %s1504 = smul.addr %s1501, 2
      %s1505 = sadd.s32 %s1503, %s1504
      %s1506 = smul.addr %s1505, 2
      %s1507 = scalar_lea.vmem %s17, %s1506
      // Predicated region
      $region81: #{post_forward.3} parent=79 // pred_check
        %p1508 = pneg %p392
      $region82: #{post_forward.3} parent=79 // pred_check_branch
        %1510 = sbr.rel (%p1508) target = $region84
      $region83: #{post_forward.3} parent=79 // pred_region
        %s1511 = smul.u32 2, %s34
      $region84: #{post_forward.3} parent=79 // pred_fallthru
        _
      // Predicated region
      $region85: #{post_forward.3} parent=79 // pred_check
        %p1512 = pneg %p420
      $region86: #{post_forward.3} parent=79 // pred_check_branch
        %1514 = sbr.rel (%p1512) target = $region88
      $region87: #{post_forward.3} parent=79 // pred_region
        %s1515 = smul.u32 2, %s34
      $region88: #{post_forward.3} parent=79 // pred_fallthru
        _
      // Predicated region
      $region89: #{post_forward.3} parent=79 // pred_check
        %p1516 = pneg %p448
      $region90: #{post_forward.3} parent=79 // pred_check_branch
        %1518 = sbr.rel (%p1516) target = $region92
      $region91: #{post_forward.3} parent=79 // pred_region
        %s1519 = smul.u32 2, %s34
      $region92: #{post_forward.3} parent=79 // pred_fallthru
        _
    $region80: #{post_forward.3} parent=5 // pred_fallthru
      _
    %p1520 = scmp.le.s32.totalorder 2, %s24
    // Predicated region
    $region93: #{post_forward.3} parent=5 // pred_check
      %p1521 = pneg %p1520
    $region94: #{post_forward.3} parent=5 // pred_check_branch
      %1523 = sbr.rel (%p1521) target = $region96
    $region95: #{post_forward.3} parent=5 // pred_region
      %s1524 = ssub.s32 %s24, 2
      // Predicated region
      $region97: #{post_forward.3} parent=95 // pred_check
        %p1525 = pneg %p398
      $region98: #{post_forward.3} parent=95 // pred_check_branch
        %1527 = sbr.rel (%p1525) target = $region100
      $region99: #{post_forward.3} parent=95 // pred_region
        %s1528 = smul.u32 2, %s36
        %p1529 = scmp.lt.s32.totalorder %s35, 1
        %s1530 = scalar_select %p1529, %s35, 1
        %p1531 = scmp.lt.s32.totalorder %s1528, 1
        %s1532 = scalar_select %p1531, %s1528, 1
        %s1533 = smul.addr %s1530, 2
        %s1534 = sadd.s32 %s1532, %s1533
        %s1535 = smul.addr %s1534, 8
        %s1536 = scalar_lea.vmem %s15, %s1535
      $region100: #{post_forward.3} parent=95 // pred_fallthru
        _
      // Predicated region
      $region101: #{post_forward.3} parent=95 // pred_check
        %p1537 = pneg %p426
      $region102: #{post_forward.3} parent=95 // pred_check_branch
        %1539 = sbr.rel (%p1537) target = $region104
      $region103: #{post_forward.3} parent=95 // pred_region
        %s1540 = smul.u32 2, %s36
        %p1541 = scmp.lt.s32.totalorder %s35, 1
        %s1542 = scalar_select %p1541, %s35, 1
        %p1543 = scmp.lt.s32.totalorder %s1540, 1
        %s1544 = scalar_select %p1543, %s1540, 1
        %s1545 = smul.addr %s1542, 2
        %s1546 = sadd.s32 %s1544, %s1545
        %s1547 = smul.addr %s1546, 4
        %s1548 = scalar_lea.vmem %s16, %s1547
      $region104: #{post_forward.3} parent=95 // pred_fallthru
        _
      // Predicated region
      $region105: #{post_forward.3} parent=95 // pred_check
        %p1549 = pneg %p454
      $region106: #{post_forward.3} parent=95 // pred_check_branch
        %1551 = sbr.rel (%p1549) target = $region108
      $region107: #{post_forward.3} parent=95 // pred_region
        %s1552 = smul.u32 2, %s36
        %p1553 = scmp.lt.s32.totalorder %s35, 1
        %s1554 = scalar_select %p1553, %s35, 1
        %p1555 = scmp.lt.s32.totalorder %s1552, 1
        %s1556 = scalar_select %p1555, %s1552, 1
        %s1557 = smul.addr %s1554, 2
        %s1558 = sadd.s32 %s1556, %s1557
        %s1559 = smul.addr %s1558, 2
        %s1560 = scalar_lea.vmem %s17, %s1559
      $region108: #{post_forward.3} parent=95 // pred_fallthru
        _
    $region96: #{post_forward.3} parent=5 // pred_fallthru
      _
  $region6: #{post_forward.3} parent=0 // loop_footer
    %s28 = sadd.s32 1, %s24
  $region7: #{post_forward.3} parent=0 // loop_footer_branch
    %23 = sbr.rel target = $region3
  $region8: #{post_forward.3} parent=0 // loop_exit
    _

// kernel: post_forward.2
$region0: #{post_forward.2}
  #allocation0 [shape = 'u32[]', space=smem, size = 0x4, offset = 0x4, fixed_abs, tag = 'smem constant byte address 0x4 - core index']
  #allocation1 [shape = 'u32[144,128]{1,0:T(1,128)}', space=vmem, size = 0x12000, scoped, tag = 'internal scratch']
  %s0 = inlined_call_operand.vmem [shape: f32[4,18,18,8], index: 0, kind: input, shape index: {}]
  %s1 = inlined_call_operand.vmem [shape: f32[72,32], index: 1, kind: input, shape index: {}]
  %s2 = inlined_call_operand.vmem [shape: f32[1,32], index: 2, kind: input, shape index: {}]
  %s3 = inlined_call_operand.vmem [shape: f32[4,32,256], index: 3, kind: output, shape index: {}]
  %s4 = sld [smem:[#allocation0]]
  $region45: #{post_forward.2} parent=0
    _
  %s6 = ssub.s32 1, %s4
  %s7 = scalar_select 0, %s6, %s4
  loop: start=0, step=1, limit=6
  $region2: #{post_forward.2} parent=0 // loop_pre_header
    _
  $region3: #{post_forward.2} parent=0 // loop_header
    %s9 = sphi 0, %s13
    %p10 = scmp.ge.s32.totalorder %s9, 6
    %s19 = sphi 0, %s21
    %s22 = sphi 0, %s19
    %s23 = sphi 0, %s22
    %s39 = sphi 0, %s23
    %s43 = sphi 0, %s43
    %s45 = sphi 0, %s43
    %s46 = sphi 0, %s45
    %s60 = sphi 0, %s46
    %s64 = sphi 0, %s64
    %s66 = sphi 0, %s64
    %s67 = sphi 0, %s66
    %s81 = sphi 0, %s67
    %s87 = sphi 0, %s89
    %s90 = sphi 0, %s87
    %s91 = sphi 0, %s90
    %s107 = sphi 0, %s91
  $region4: #{post_forward.2} parent=0 // loop_header_branch
    %12 = sbr.rel (%p10) target = $region8
  $region5: #{post_forward.2} parent=0 // loop_body
    %s14 = ssub.s32 %s9, 1
    %s15 = ssub.s32 %s9, 2
    %s16 = sadd.s32 %s9, 1
    %s17 = ssub.s32 %s9, %s16
    %p18 = scmp.eq.s32.totalorder %s17, 0
    %s20 = sadd.s32 %s19, 1
    %s21 = scalar_select %p18, %s19, %s20
    %p24 = pneg %p18
    %p25 = scmp.eq.s32.totalorder %s9, 3
    %p26 = por %p24, %p25
    %p27 = scmp.ne.s32.totalorder %s19, %s22
    %p28 = scmp.eq.s32.totalorder %s9, 0
    %p29 = por %p27, %p28
    %p30 = scmp.ne.s32.totalorder %s19, %s22
    %p31 = scmp.eq.s32.totalorder %s14, 3
    %p32 = por %p30, %p31
    %p33 = scmp.ne.s32.totalorder %s22, %s23
    %p34 = scmp.eq.s32.totalorder %s14, 0
    %p35 = por %p33, %p34
    %p36 = scmp.ne.s32.totalorder %s22, %s23
    %p37 = scmp.eq.s32.totalorder %s15, 3
    %p38 = por %p36, %p37
    %p40 = scmp.ne.s32.totalorder %s23, %s39
    %p41 = scmp.eq.s32.totalorder %s15, 0
    %p42 = por %p40, %p41
    %s44 = sadd.s32 %s43, 1
    %p47 = scmp.eq.s32.totalorder %s9, 3
    %p48 = scmp.ne.s32.totalorder %s43, %s45
    %p49 = scmp.eq.s32.totalorder %s9, 0
    %p50 = por %p48, %p49
    %p51 = scmp.ne.s32.totalorder %s43, %s45
    %p52 = scmp.eq.s32.totalorder %s14, 3
    %p53 = por %p51, %p52
    %p54 = scmp.ne.s32.totalorder %s45, %s46
    %p55 = scmp.eq.s32.totalorder %s14, 0
    %p56 = por %p54, %p55
    %p57 = scmp.ne.s32.totalorder %s45, %s46
    %p58 = scmp.eq.s32.totalorder %s15, 3
    %p59 = por %p57, %p58
    %p61 = scmp.ne.s32.totalorder %s46, %s60
    %p62 = scmp.eq.s32.totalorder %s15, 0
    %p63 = por %p61, %p62
    %s65 = sadd.s32 %s64, 1
    %p68 = scmp.eq.s32.totalorder %s9, 3
    %p69 = scmp.ne.s32.totalorder %s64, %s66
    %p70 = scmp.eq.s32.totalorder %s9, 0
    %p71 = por %p69, %p70
    %p72 = scmp.ne.s32.totalorder %s64, %s66
    %p73 = scmp.eq.s32.totalorder %s14, 3
    %p74 = por %p72, %p73
    %p75 = scmp.ne.s32.totalorder %s66, %s67
    %p76 = scmp.eq.s32.totalorder %s14, 0
    %p77 = por %p75, %p76
    %p78 = scmp.ne.s32.totalorder %s66, %s67
    %p79 = scmp.eq.s32.totalorder %s15, 3
    %p80 = por %p78, %p79
    %p82 = scmp.ne.s32.totalorder %s67, %s81
    %p83 = scmp.eq.s32.totalorder %s15, 0
    %p84 = por %p82, %p83
    %s85 = ssub.s32 %s9, %s16
    %p86 = scmp.eq.s32.totalorder %s85, 0
    %s88 = sadd.s32 %s87, 1
    %s89 = scalar_select %p86, %s87, %s88
    %p92 = pneg %p86
    %p93 = scmp.eq.s32.totalorder %s9, 3
    %p94 = por %p92, %p93
    %p95 = scmp.ne.s32.totalorder %s87, %s90
    %p96 = scmp.eq.s32.totalorder %s9, 0
    %p97 = por %p95, %p96
    %p98 = scmp.ne.s32.totalorder %s87, %s90
    %p99 = scmp.eq.s32.totalorder %s14, 3
    %p100 = por %p98, %p99
    %p101 = scmp.ne.s32.totalorder %s90, %s91
    %p102 = scmp.eq.s32.totalorder %s14, 0
    %p103 = por %p101, %p102
    %p104 = scmp.ne.s32.totalorder %s90, %s91
    %p105 = scmp.eq.s32.totalorder %s15, 3
    %p106 = por %p104, %p105
    %p108 = scmp.ne.s32.totalorder %s91, %s107
    %p109 = scmp.eq.s32.totalorder %s15, 0
    %p110 = por %p108, %p109
    %p111 = scmp.le.s32.totalorder 1, %s9
    %p112 = scmp.lt.s32.totalorder %s9, 5
    %p113 = pnand %p111, %p112
    %p114 = pneg %p113
    // Predicated region
    $region9: #{post_forward.2} parent=5 // pred_check
      _
    $region10: #{post_forward.2} parent=5 // pred_check_branch
      %116 = sbr.rel (%p113) target = $region12
    $region11: #{post_forward.2} parent=5 // pred_region
      %s117 = ssub.s32 %s9, 1
      // Predicated region
      $region13: #{post_forward.2} parent=11 // pred_check
        %p118 = pneg %p56
      $region14: #{post_forward.2} parent=11 // pred_check_branch
        %120 = sbr.rel (%p118) target = $region16
      $region15: #{post_forward.2} parent=11 // pred_region
        _
      $region16: #{post_forward.2} parent=11 // pred_fallthru
        _
      // Predicated region
      $region17: #{post_forward.2} parent=11 // pred_check
        %p121 = pneg %p77
      $region18: #{post_forward.2} parent=11 // pred_check_branch
        %123 = sbr.rel (%p121) target = $region20
      $region19: #{post_forward.2} parent=11 // pred_region
        _
      $region20: #{post_forward.2} parent=11 // pred_fallthru
        _
    $region12: #{post_forward.2} parent=5 // pred_fallthru
      _
    %p124 = scmp.lt.s32.totalorder %s9, 4
    // Predicated region
    $region21: #{post_forward.2} parent=5 // pred_check
      %p125 = pneg %p124
    $region22: #{post_forward.2} parent=5 // pred_check_branch
      %127 = sbr.rel (%p125) target = $region24
    $region23: #{post_forward.2} parent=5 // pred_region
      // Predicated region
      $region25: #{post_forward.2} parent=23 // pred_check
        %p128 = pneg %p29
      $region26: #{post_forward.2} parent=23 // pred_check_branch
        %130 = sbr.rel (%p128) target = $region28
      $region27: #{post_forward.2} parent=23 // pred_region
        %p131 = scmp.lt.s32.totalorder %s9, 3
        %s132 = scalar_select %p131, %s9, 3
        %s133 = smul.addr %s132, 54
        %s134 = smul.addr %s133, 8
        %s135 = scalar_lea.vmem %s0, %s134
      $region28: #{post_forward.2} parent=23 // pred_fallthru
        _
    $region24: #{post_forward.2} parent=5 // pred_fallthru
      _
    %p136 = scmp.le.s32.totalorder 1, %s9
    %p137 = scmp.lt.s32.totalorder %s9, 5
    %p138 = pnand %p136, %p137
    %p139 = pneg %p138
    // Predicated region
    $region29: #{post_forward.2} parent=5 // pred_check
      _
    $region30: #{post_forward.2} parent=5 // pred_check_branch
      %141 = sbr.rel (%p138) target = $region32
    $region31: #{post_forward.2} parent=5 // pred_region
      %s142 = ssub.s32 %s9, 1
      %p143 = scmp.lt.s32.totalorder %s14, 3
      %s144 = scalar_select %p143, %s14, 3
      %s145 = smul.addr %s144, 54
      %s146 = smul.addr %s145, 8
      %s147 = scalar_lea.vmem %s0, %s146
      %p148 = pneg %p35
      %p149 = pneg %p32
      %p150 = pneg %p56
      %p151 = pneg %p53
      %p152 = pneg %p77
      %p153 = pneg %p74
      %p154 = pneg %p103
      %p155 = pneg %p100
      %p156 = scmp.lt.s32.totalorder %s14, 3
      %s157 = scalar_select %p156, %s14, 3
      %s158 = smul.addr %s157, 8
      %s159 = smul.addr %s158, 8
      %s160 = scalar_lea.vmem %s3, %s159
      %p161 = scmp.lt.s32.totalorder %s14, 3
      %s162 = scalar_select %p161, %s14, 3
      %s163 = smul.addr %s162, 54
      %s164 = smul.addr %s163, 8
      %s165 = scalar_lea.vmem %s0, %s164
      %p166 = scmp.lt.s32.totalorder %s14, 3
      %s167 = scalar_select %p166, %s14, 3
      %s168 = smul.addr %s167, 8
      %s169 = smul.addr %s168, 8
      %s170 = scalar_lea.vmem %s3, %s169
      %v171 = vld [vmem:[%s165] sm:$0xff]
      %v172 = vld [vmem:[%s165 + $0x8] sm:$0xff]
      %v173 = vld [vmem:[%s165 + $0x10] sm:$0x3]
      %v174 = vld [vmem:[%s165 + $0x18] sm:$0xff]
      %v175 = vld [vmem:[%s165 + $0x20] sm:$0xff]
      %v176 = vld [vmem:[%s165 + $0x28] sm:$0x3]
      %v177 = vld [vmem:[%s165 + $0x30] sm:$0xff]
      %v178 = vld [vmem:[%s165 + $0x38] sm:$0xff]
      %v179 = vld [vmem:[%s165 + $0x40] sm:$0x3]
      %v180 = vld [vmem:[%s165 + $0x48] sm:$0xff]
      %v181 = vld [vmem:[%s165 + $0x50] sm:$0xff]
      %v182 = vld [vmem:[%s165 + $0x58] sm:$0x3]
      %v183 = vld [vmem:[%s165 + $0x60] sm:$0xff]
      %v184 = vld [vmem:[%s165 + $0x68] sm:$0xff]
      %v185 = vld [vmem:[%s165 + $0x70] sm:$0x3]
      %v186 = vld [vmem:[%s165 + $0x78] sm:$0xff]
      %v187 = vld [vmem:[%s165 + $0x80] sm:$0xff]
      %v188 = vld [vmem:[%s165 + $0x88] sm:$0x3]
      %v189 = vld [vmem:[%s165 + $0x90] sm:$0xff]
      %v190 = vld [vmem:[%s165 + $0x98] sm:$0xff]
      %v191 = vld [vmem:[%s165 + $0xa0] sm:$0x3]
      %v192 = vld [vmem:[%s165 + $0xa8] sm:$0xff]
      %v193 = vld [vmem:[%s165 + $0xb0] sm:$0xff]
      %v194 = vld [vmem:[%s165 + $0xb8] sm:$0x3]
      %v195 = vld [vmem:[%s165 + $0xc0] sm:$0xff]
      %v196 = vld [vmem:[%s165 + $0xc8] sm:$0xff]
      %v197 = vld [vmem:[%s165 + $0xd0] sm:$0x3]
      %v198 = vld [vmem:[%s165 + $0xd8] sm:$0xff]
      %v199 = vld [vmem:[%s165 + $0xe0] sm:$0xff]
      %v200 = vld [vmem:[%s165 + $0xe8] sm:$0x3]
      %v201 = vld [vmem:[%s165 + $0xf0] sm:$0xff]
      %v202 = vld [vmem:[%s165 + $0xf8] sm:$0xff]
      %v203 = vld [vmem:[%s165 + $0x100] sm:$0x3]
      %v204 = vld [vmem:[%s165 + $0x108] sm:$0xff]
      %v205 = vld [vmem:[%s165 + $0x110] sm:$0xff]
      %v206 = vld [vmem:[%s165 + $0x118] sm:$0x3]
      %v207 = vld [vmem:[%s165 + $0x120] sm:$0xff]
      %v208 = vld [vmem:[%s165 + $0x128] sm:$0xff]
      %v209 = vld [vmem:[%s165 + $0x130] sm:$0x3]
      %v210 = vld [vmem:[%s165 + $0x138] sm:$0xff]
      %v211 = vld [vmem:[%s165 + $0x140] sm:$0xff]
      %v212 = vld [vmem:[%s165 + $0x148] sm:$0x3]
      %v213 = vld [vmem:[%s165 + $0x150] sm:$0xff]
      %v214 = vld [vmem:[%s165 + $0x158] sm:$0xff]
      %v215 = vld [vmem:[%s165 + $0x160] sm:$0x3]
      %v216 = vld [vmem:[%s165 + $0x168] sm:$0xff]
      %v217 = vld [vmem:[%s165 + $0x170] sm:$0xff]
      %v218 = vld [vmem:[%s165 + $0x178] sm:$0x3]
      %v219 = vld [vmem:[%s165 + $0x180] sm:$0xff]
      %v220 = vld [vmem:[%s165 + $0x188] sm:$0xff]
      %v221 = vld [vmem:[%s165 + $0x190] sm:$0x3]
      %v222 = vld [vmem:[%s165 + $0x198] sm:$0xff]
      %v223 = vld [vmem:[%s165 + $0x1a0] sm:$0xff]
      %v224 = vld [vmem:[%s165 + $0x1a8] sm:$0x3]
      %vm273 = vcmask 1046528
      %v274 = vrot.slane %v171, 1
      %v275 = vrot.slane %v172, 1
      %v276 = vsel %vm273, %v274, %v275
      %v277 = vrot.slane %v173, 1
      %v278 = vsel %vm273, %v275, %v277
      %v279 = vrot.slane %v174, 1
      %v280 = vrot.slane %v175, 1
      %v281 = vsel %vm273, %v279, %v280
      %v282 = vrot.slane %v176, 1
      %v283 = vsel %vm273, %v280, %v282
      %v284 = vrot.slane %v177, 1
      %v285 = vrot.slane %v178, 1
      %v286 = vsel %vm273, %v284, %v285
      %v287 = vrot.slane %v179, 1
      %v288 = vsel %vm273, %v285, %v287
      %v289 = vrot.slane %v180, 1
      %v290 = vrot.slane %v181, 1
      %v291 = vsel %vm273, %v289, %v290
      %v292 = vrot.slane %v182, 1
      %v293 = vsel %vm273, %v290, %v292
      %v294 = vrot.slane %v183, 1
      %v295 = vrot.slane %v184, 1
      %v296 = vsel %vm273, %v294, %v295
      %v297 = vrot.slane %v185, 1
      %v298 = vsel %vm273, %v295, %v297
      %v299 = vrot.slane %v186, 1
      %v300 = vrot.slane %v187, 1
      %v301 = vsel %vm273, %v299, %v300
      %v302 = vrot.slane %v188, 1
      %v303 = vsel %vm273, %v300, %v302
      %v304 = vrot.slane %v189, 1
      %v305 = vrot.slane %v190, 1
      %v306 = vsel %vm273, %v304, %v305
      %v307 = vrot.slane %v191, 1
      %v308 = vsel %vm273, %v305, %v307
      %v309 = vrot.slane %v192, 1
      %v310 = vrot.slane %v193, 1
      %v311 = vsel %vm273, %v309, %v310
      %v312 = vrot.slane %v194, 1
      %v313 = vsel %vm273, %v310, %v312
      %v314 = vrot.slane %v195, 1
      %v315 = vrot.slane %v196, 1
      %v316 = vsel %vm273, %v314, %v315
      %v317 = vrot.slane %v197, 1
      %v318 = vsel %vm273, %v315, %v317
      %v319 = vrot.slane %v198, 1
      %v320 = vrot.slane %v199, 1
      %v321 = vsel %vm273, %v319, %v320
      %v322 = vrot.slane %v200, 1
      %v323 = vsel %vm273, %v320, %v322
      %v324 = vrot.slane %v201, 1
      %v325 = vrot.slane %v202, 1
      %v326 = vsel %vm273, %v324, %v325
      %v327 = vrot.slane %v203, 1
      %v328 = vsel %vm273, %v325, %v327
      %v329 = vrot.slane %v204, 1
      %v330 = vrot.slane %v205, 1
      %v331 = vsel %vm273, %v329, %v330
      %v332 = vrot.slane %v206, 1
      %v333 = vsel %vm273, %v330, %v332
      %v334 = vrot.slane %v207, 1
      %v335 = vrot.slane %v208, 1
      %v336 = vsel %vm273, %v334, %v335
      %v337 = vrot.slane %v209, 1
      %v338 = vsel %vm273, %v335, %v337
      %v339 = vrot.slane %v210, 1
      %v340 = vrot.slane %v211, 1
      %v341 = vsel %vm273, %v339, %v340
      %v342 = vrot.slane %v212, 1
      %v343 = vsel %vm273, %v340, %v342
      %v344 = vrot.slane %v213, 1
      %v345 = vrot.slane %v214, 1
      %v346 = vsel %vm273, %v344, %v345
      %v347 = vrot.slane %v215, 1
      %v348 = vsel %vm273, %v345, %v347
      %v349 = vrot.slane %v216, 1
      %v350 = vrot.slane %v217, 1
      %v351 = vsel %vm273, %v349, %v350
      %v352 = vrot.slane %v218, 1
      %v353 = vsel %vm273, %v350, %v352
      %vm354 = vcmask 1045504
      %v355 = vrot.slane %v171, 2
      %v356 = vrot.slane %v172, 2
      %v357 = vsel %vm354, %v355, %v356
      %v358 = vrot.slane %v173, 2
      %v359 = vsel %vm354, %v356, %v358
      %v360 = vrot.slane %v174, 2
      %v361 = vrot.slane %v175, 2
      %v362 = vsel %vm354, %v360, %v361
      %v363 = vrot.slane %v176, 2
      %v364 = vsel %vm354, %v361, %v363
      %v365 = vrot.slane %v177, 2
      %v366 = vrot.slane %v178, 2
      %v367 = vsel %vm354, %v365, %v366
      %v368 = vrot.slane %v179, 2
      %v369 = vsel %vm354, %v366, %v368
      %v370 = vrot.slane %v180, 2
      %v371 = vrot.slane %v181, 2
      %v372 = vsel %vm354, %v370, %v371
      %v373 = vrot.slane %v182, 2
      %v374 = vsel %vm354, %v371, %v373
      %v375 = vrot.slane %v183, 2
      %v376 = vrot.slane %v184, 2
      %v377 = vsel %vm354, %v375, %v376
      %v378 = vrot.slane %v185, 2
      %v379 = vsel %vm354, %v376, %v378
      %v380 = vrot.slane %v186, 2
      %v381 = vrot.slane %v187, 2
      %v382 = vsel %vm354, %v380, %v381
      %v383 = vrot.slane %v188, 2
      %v384 = vsel %vm354, %v381, %v383
      %v385 = vrot.slane %v189, 2
      %v386 = vrot.slane %v190, 2
      %v387 = vsel %vm354, %v385, %v386
      %v388 = vrot.slane %v191, 2
      %v389 = vsel %vm354, %v386, %v388
      %v390 = vrot.slane %v192, 2
      %v391 = vrot.slane %v193, 2
      %v392 = vsel %vm354, %v390, %v391
      %v393 = vrot.slane %v194, 2
      %v394 = vsel %vm354, %v391, %v393
      %v395 = vrot.slane %v195, 2
      %v396 = vrot.slane %v196, 2
      %v397 = vsel %vm354, %v395, %v396
      %v398 = vrot.slane %v197, 2
      %v399 = vsel %vm354, %v396, %v398
      %v400 = vrot.slane %v198, 2
      %v401 = vrot.slane %v199, 2
      %v402 = vsel %vm354, %v400, %v401
      %v403 = vrot.slane %v200, 2
      %v404 = vsel %vm354, %v401, %v403
      %v405 = vrot.slane %v201, 2
      %v406 = vrot.slane %v202, 2
      %v407 = vsel %vm354, %v405, %v406
      %v408 = vrot.slane %v203, 2
      %v409 = vsel %vm354, %v406, %v408
      %v410 = vrot.slane %v204, 2
      %v411 = vrot.slane %v205, 2
      %v412 = vsel %vm354, %v410, %v411
      %v413 = vrot.slane %v206, 2
      %v414 = vsel %vm354, %v411, %v413
      %v415 = vrot.slane %v207, 2
      %v416 = vrot.slane %v208, 2
      %v417 = vsel %vm354, %v415, %v416
      %v418 = vrot.slane %v209, 2
      %v419 = vsel %vm354, %v416, %v418
      %v420 = vrot.slane %v210, 2
      %v421 = vrot.slane %v211, 2
      %v422 = vsel %vm354, %v420, %v421
      %v423 = vrot.slane %v212, 2
      %v424 = vsel %vm354, %v421, %v423
      %v425 = vrot.slane %v213, 2
      %v426 = vrot.slane %v214, 2
      %v427 = vsel %vm354, %v425, %v426
      %v428 = vrot.slane %v215, 2
      %v429 = vsel %vm354, %v426, %v428
      %v430 = vrot.slane %v216, 2
      %v431 = vrot.slane %v217, 2
      %v432 = vsel %vm354, %v430, %v431
      %v433 = vrot.slane %v218, 2
      %v434 = vsel %vm354, %v431, %v433
      %v438 = vrot.slane %v219, 1
      %v439 = vrot.slane %v220, 1
      %v440 = vsel %vm273, %v438, %v439
      %v441 = vrot.slane %v221, 1
      %v442 = vsel %vm273, %v439, %v441
      %v443 = vrot.slane %v219, 2
      %v444 = vrot.slane %v220, 2
      %v445 = vsel %vm354, %v443, %v444
      %v446 = vrot.slane %v221, 2
      %v447 = vsel %vm354, %v444, %v446
      %v451 = vrot.slane %v222, 1
      %v452 = vrot.slane %v223, 1
      %v453 = vsel %vm273, %v451, %v452
      %v454 = vrot.slane %v224, 1
      %v455 = vsel %vm273, %v452, %v454
      %v456 = vrot.slane %v222, 2
      %v457 = vrot.slane %v223, 2
      %v458 = vsel %vm354, %v456, %v457
      %v459 = vrot.slane %v224, 2
      %v460 = vsel %vm354, %v457, %v459
      %461 = vrot.lane.b32.xlu0 %v276, 8
      %v462 = vpop.permute.xlu0 %461
      %463 = vrot.lane.b32.xlu0 %v278, 8
      %v464 = vpop.permute.xlu0 %463
      %465 = vrot.lane.b32.xlu0 %v281, 8
      %v466 = vpop.permute.xlu0 %465
      %467 = vrot.lane.b32.xlu0 %v283, 8
      %v468 = vpop.permute.xlu0 %467
      %469 = vrot.lane.b32.xlu0 %v286, 8
      %v470 = vpop.permute.xlu0 %469
      %471 = vrot.lane.b32.xlu0 %v288, 8
      %v472 = vpop.permute.xlu0 %471
      %473 = vrot.lane.b32.xlu0 %v291, 8
      %v474 = vpop.permute.xlu0 %473
      %475 = vrot.lane.b32.xlu0 %v293, 8
      %v476 = vpop.permute.xlu0 %475
      %477 = vrot.lane.b32.xlu0 %v296, 8
      %v478 = vpop.permute.xlu0 %477
      %479 = vrot.lane.b32.xlu0 %v298, 8
      %v480 = vpop.permute.xlu0 %479
      %481 = vrot.lane.b32.xlu0 %v301, 8
      %v482 = vpop.permute.xlu0 %481
      %483 = vrot.lane.b32.xlu0 %v303, 8
      %v484 = vpop.permute.xlu0 %483
      %485 = vrot.lane.b32.xlu0 %v306, 8
      %v486 = vpop.permute.xlu0 %485
      %487 = vrot.lane.b32.xlu0 %v308, 8
      %v488 = vpop.permute.xlu0 %487
      %489 = vrot.lane.b32.xlu0 %v311, 8
      %v490 = vpop.permute.xlu0 %489
      %491 = vrot.lane.b32.xlu0 %v313, 8
      %v492 = vpop.permute.xlu0 %491
      %493 = vrot.lane.b32.xlu0 %v316, 8
      %v494 = vpop.permute.xlu0 %493
      %495 = vrot.lane.b32.xlu0 %v318, 8
      %v496 = vpop.permute.xlu0 %495
      %497 = vrot.lane.b32.xlu0 %v321, 8
      %v498 = vpop.permute.xlu0 %497
      %499 = vrot.lane.b32.xlu0 %v323, 8
      %v500 = vpop.permute.xlu0 %499
      %501 = vrot.lane.b32.xlu0 %v326, 8
      %v502 = vpop.permute.xlu0 %501
      %503 = vrot.lane.b32.xlu0 %v328, 8
      %v504 = vpop.permute.xlu0 %503
      %505 = vrot.lane.b32.xlu0 %v331, 8
      %v506 = vpop.permute.xlu0 %505
      %507 = vrot.lane.b32.xlu0 %v333, 8
      %v508 = vpop.permute.xlu0 %507
      %509 = vrot.lane.b32.xlu0 %v336, 8
      %v510 = vpop.permute.xlu0 %509
      %511 = vrot.lane.b32.xlu0 %v338, 8
      %v512 = vpop.permute.xlu0 %511
      %513 = vrot.lane.b32.xlu0 %v341, 8
      %v514 = vpop.permute.xlu0 %513
      %515 = vrot.lane.b32.xlu0 %v343, 8
      %v516 = vpop.permute.xlu0 %515
      %517 = vrot.lane.b32.xlu0 %v346, 8
      %v518 = vpop.permute.xlu0 %517
      %519 = vrot.lane.b32.xlu0 %v348, 8
      %v520 = vpop.permute.xlu0 %519
      %521 = vrot.lane.b32.xlu0 %v351, 8
      %v522 = vpop.permute.xlu0 %521
      %523 = vrot.lane.b32.xlu0 %v353, 8
      %v524 = vpop.permute.xlu0 %523
      %557 = vrot.lane.b32.xlu0 %v357, 16
      %v558 = vpop.permute.xlu0 %557
      %559 = vrot.lane.b32.xlu0 %v359, 16
      %v560 = vpop.permute.xlu0 %559
      %561 = vrot.lane.b32.xlu0 %v362, 16
      %v562 = vpop.permute.xlu0 %561
      %563 = vrot.lane.b32.xlu0 %v364, 16
      %v564 = vpop.permute.xlu0 %563
      %565 = vrot.lane.b32.xlu0 %v367, 16
      %v566 = vpop.permute.xlu0 %565
      %567 = vrot.lane.b32.xlu0 %v369, 16
      %v568 = vpop.permute.xlu0 %567
      %569 = vrot.lane.b32.xlu0 %v372, 16
      %v570 = vpop.permute.xlu0 %569
      %571 = vrot.lane.b32.xlu0 %v374, 16
      %v572 = vpop.permute.xlu0 %571
      %573 = vrot.lane.b32.xlu0 %v377, 16
      %v574 = vpop.permute.xlu0 %573
      %575 = vrot.lane.b32.xlu0 %v379, 16
      %v576 = vpop.permute.xlu0 %575
      %577 = vrot.lane.b32.xlu0 %v382, 16
      %v578 = vpop.permute.xlu0 %577
      %579 = vrot.lane.b32.xlu0 %v384, 16
      %v580 = vpop.permute.xlu0 %579
      %581 = vrot.lane.b32.xlu0 %v387, 16
      %v582 = vpop.permute.xlu0 %581
      %583 = vrot.lane.b32.xlu0 %v389, 16
      %v584 = vpop.permute.xlu0 %583
      %585 = vrot.lane.b32.xlu0 %v392, 16
      %v586 = vpop.permute.xlu0 %585
      %587 = vrot.lane.b32.xlu0 %v394, 16
      %v588 = vpop.permute.xlu0 %587
      %589 = vrot.lane.b32.xlu0 %v397, 16
      %v590 = vpop.permute.xlu0 %589
      %591 = vrot.lane.b32.xlu0 %v399, 16
      %v592 = vpop.permute.xlu0 %591
      %593 = vrot.lane.b32.xlu0 %v402, 16
      %v594 = vpop.permute.xlu0 %593
      %595 = vrot.lane.b32.xlu0 %v404, 16
      %v596 = vpop.permute.xlu0 %595
      %597 = vrot.lane.b32.xlu0 %v407, 16
      %v598 = vpop.permute.xlu0 %597
      %599 = vrot.lane.b32.xlu0 %v409, 16
      %v600 = vpop.permute.xlu0 %599
      %601 = vrot.lane.b32.xlu0 %v412, 16
      %v602 = vpop.permute.xlu0 %601
      %603 = vrot.lane.b32.xlu0 %v414, 16
      %v604 = vpop.permute.xlu0 %603
      %605 = vrot.lane.b32.xlu0 %v417, 16
      %v606 = vpop.permute.xlu0 %605
      %607 = vrot.lane.b32.xlu0 %v419, 16
      %v608 = vpop.permute.xlu0 %607
      %609 = vrot.lane.b32.xlu0 %v422, 16
      %v610 = vpop.permute.xlu0 %609
      %611 = vrot.lane.b32.xlu0 %v424, 16
      %v612 = vpop.permute.xlu0 %611
      %613 = vrot.lane.b32.xlu0 %v427, 16
      %v614 = vpop.permute.xlu0 %613
      %615 = vrot.lane.b32.xlu0 %v429, 16
      %v616 = vpop.permute.xlu0 %615
      %617 = vrot.lane.b32.xlu0 %v432, 16
      %v618 = vpop.permute.xlu0 %617
      %619 = vrot.lane.b32.xlu0 %v434, 16
      %v620 = vpop.permute.xlu0 %619
      %653 = vrot.lane.b32.xlu0 %v174, 24
      %v654 = vpop.permute.xlu0 %653
      %655 = vrot.lane.b32.xlu0 %v175, 24
      %v656 = vpop.permute.xlu0 %655
      %657 = vrot.lane.b32.xlu0 %v177, 24
      %v658 = vpop.permute.xlu0 %657
      %659 = vrot.lane.b32.xlu0 %v178, 24
      %v660 = vpop.permute.xlu0 %659
      %661 = vrot.lane.b32.xlu0 %v180, 24
      %v662 = vpop.permute.xlu0 %661
      %663 = vrot.lane.b32.xlu0 %v181, 24
      %v664 = vpop.permute.xlu0 %663
      %665 = vrot.lane.b32.xlu0 %v183, 24
      %v666 = vpop.permute.xlu0 %665
      %667 = vrot.lane.b32.xlu0 %v184, 24
      %v668 = vpop.permute.xlu0 %667
      %669 = vrot.lane.b32.xlu0 %v186, 24
      %v670 = vpop.permute.xlu0 %669
      %671 = vrot.lane.b32.xlu0 %v187, 24
      %v672 = vpop.permute.xlu0 %671
      %673 = vrot.lane.b32.xlu0 %v189, 24
      %v674 = vpop.permute.xlu0 %673
      %675 = vrot.lane.b32.xlu0 %v190, 24
      %v676 = vpop.permute.xlu0 %675
      %677 = vrot.lane.b32.xlu0 %v192, 24
      %v678 = vpop.permute.xlu0 %677
      %679 = vrot.lane.b32.xlu0 %v193, 24
      %v680 = vpop.permute.xlu0 %679
      %681 = vrot.lane.b32.xlu0 %v195, 24
      %v682 = vpop.permute.xlu0 %681
      %683 = vrot.lane.b32.xlu0 %v196, 24
      %v684 = vpop.permute.xlu0 %683
      %685 = vrot.lane.b32.xlu0 %v198, 24
      %v686 = vpop.permute.xlu0 %685
      %687 = vrot.lane.b32.xlu0 %v199, 24
      %v688 = vpop.permute.xlu0 %687
      %689 = vrot.lane.b32.xlu0 %v201, 24
      %v690 = vpop.permute.xlu0 %689
      %691 = vrot.lane.b32.xlu0 %v202, 24
      %v692 = vpop.permute.xlu0 %691
      %693 = vrot.lane.b32.xlu0 %v204, 24
      %v694 = vpop.permute.xlu0 %693
      %695 = vrot.lane.b32.xlu0 %v205, 24
      %v696 = vpop.permute.xlu0 %695
      %697 = vrot.lane.b32.xlu0 %v207, 24
      %v698 = vpop.permute.xlu0 %697
      %699 = vrot.lane.b32.xlu0 %v208, 24
      %v700 = vpop.permute.xlu0 %699
      %701 = vrot.lane.b32.xlu0 %v210, 24
      %v702 = vpop.permute.xlu0 %701
      %703 = vrot.lane.b32.xlu0 %v211, 24
      %v704 = vpop.permute.xlu0 %703
      %705 = vrot.lane.b32.xlu0 %v213, 24
      %v706 = vpop.permute.xlu0 %705
      %707 = vrot.lane.b32.xlu0 %v214, 24
      %v708 = vpop.permute.xlu0 %707
      %709 = vrot.lane.b32.xlu0 %v216, 24
      %v710 = vpop.permute.xlu0 %709
      %711 = vrot.lane.b32.xlu0 %v217, 24
      %v712 = vpop.permute.xlu0 %711
      %713 = vrot.lane.b32.xlu0 %v219, 24
      %v714 = vpop.permute.xlu0 %713
      %715 = vrot.lane.b32.xlu0 %v220, 24
      %v716 = vpop.permute.xlu0 %715
      %749 = vrot.lane.b32.xlu0 %v281, 32
      %v750 = vpop.permute.xlu0 %749
      %751 = vrot.lane.b32.xlu0 %v283, 32
      %v752 = vpop.permute.xlu0 %751
      %753 = vrot.lane.b32.xlu0 %v286, 32
      %v754 = vpop.permute.xlu0 %753
      %755 = vrot.lane.b32.xlu0 %v288, 32
      %v756 = vpop.permute.xlu0 %755
      %757 = vrot.lane.b32.xlu0 %v291, 32
      %v758 = vpop.permute.xlu0 %757
      %759 = vrot.lane.b32.xlu0 %v293, 32
      %v760 = vpop.permute.xlu0 %759
      %761 = vrot.lane.b32.xlu0 %v296, 32
      %v762 = vpop.permute.xlu0 %761
      %763 = vrot.lane.b32.xlu0 %v298, 32
      %v764 = vpop.permute.xlu0 %763
      %765 = vrot.lane.b32.xlu0 %v301, 32
      %v766 = vpop.permute.xlu0 %765
      %767 = vrot.lane.b32.xlu0 %v303, 32
      %v768 = vpop.permute.xlu0 %767
      %769 = vrot.lane.b32.xlu0 %v306, 32
      %v770 = vpop.permute.xlu0 %769
      %771 = vrot.lane.b32.xlu0 %v308, 32
      %v772 = vpop.permute.xlu0 %771
      %773 = vrot.lane.b32.xlu0 %v311, 32
      %v774 = vpop.permute.xlu0 %773
      %775 = vrot.lane.b32.xlu0 %v313, 32
      %v776 = vpop.permute.xlu0 %775
      %777 = vrot.lane.b32.xlu0 %v316, 32
      %v778 = vpop.permute.xlu0 %777
      %779 = vrot.lane.b32.xlu0 %v318, 32
      %v780 = vpop.permute.xlu0 %779
      %781 = vrot.lane.b32.xlu0 %v321, 32
      %v782 = vpop.permute.xlu0 %781
      %783 = vrot.lane.b32.xlu0 %v323, 32
      %v784 = vpop.permute.xlu0 %783
      %785 = vrot.lane.b32.xlu0 %v326, 32
      %v786 = vpop.permute.xlu0 %785
      %787 = vrot.lane.b32.xlu0 %v328, 32
      %v788 = vpop.permute.xlu0 %787
      %789 = vrot.lane.b32.xlu0 %v331, 32
      %v790 = vpop.permute.xlu0 %789
      %791 = vrot.lane.b32.xlu0 %v333, 32
      %v792 = vpop.permute.xlu0 %791
      %793 = vrot.lane.b32.xlu0 %v336, 32
      %v794 = vpop.permute.xlu0 %793
      %795 = vrot.lane.b32.xlu0 %v338, 32
      %v796 = vpop.permute.xlu0 %795
      %797 = vrot.lane.b32.xlu0 %v341, 32
      %v798 = vpop.permute.xlu0 %797
      %799 = vrot.lane.b32.xlu0 %v343, 32
      %v800 = vpop.permute.xlu0 %799
      %801 = vrot.lane.b32.xlu0 %v346, 32
      %v802 = vpop.permute.xlu0 %801
      %803 = vrot.lane.b32.xlu0 %v348, 32
      %v804 = vpop.permute.xlu0 %803
      %805 = vrot.lane.b32.xlu0 %v351, 32
      %v806 = vpop.permute.xlu0 %805
      %807 = vrot.lane.b32.xlu0 %v353, 32
      %v808 = vpop.permute.xlu0 %807
      %809 = vrot.lane.b32.xlu0 %v440, 32
      %v810 = vpop.permute.xlu0 %809
      %811 = vrot.lane.b32.xlu0 %v442, 32
      %v812 = vpop.permute.xlu0 %811
      %845 = vrot.lane.b32.xlu0 %v362, 40
      %v846 = vpop.permute.xlu0 %845
      %847 = vrot.lane.b32.xlu0 %v364, 40
      %v848 = vpop.permute.xlu0 %847
      %849 = vrot.lane.b32.xlu0 %v367, 40
      %v850 = vpop.permute.xlu0 %849
      %851 = vrot.lane.b32.xlu0 %v369, 40
      %v852 = vpop.permute.xlu0 %851
      %853 = vrot.lane.b32.xlu0 %v372, 40
      %v854 = vpop.permute.xlu0 %853
      %855 = vrot.lane.b32.xlu0 %v374, 40
      %v856 = vpop.permute.xlu0 %855
      %857 = vrot.lane.b32.xlu0 %v377, 40
      %v858 = vpop.permute.xlu0 %857
      %859 = vrot.lane.b32.xlu0 %v379, 40
      %v860 = vpop.permute.xlu0 %859
      %861 = vrot.lane.b32.xlu0 %v382, 40
      %v862 = vpop.permute.xlu0 %861
      %863 = vrot.lane.b32.xlu0 %v384, 40
      %v864 = vpop.permute.xlu0 %863
      %865 = vrot.lane.b32.xlu0 %v387, 40
      %v866 = vpop.permute.xlu0 %865
      %867 = vrot.lane.b32.xlu0 %v389, 40
      %v868 = vpop.permute.xlu0 %867
      %869 = vrot.lane.b32.xlu0 %v392, 40
      %v870 = vpop.permute.xlu0 %869
      %871 = vrot.lane.b32.xlu0 %v394, 40
      %v872 = vpop.permute.xlu0 %871
      %873 = vrot.lane.b32.xlu0 %v397, 40
      %v874 = vpop.permute.xlu0 %873
      %875 = vrot.lane.b32.xlu0 %v399, 40
      %v876 = vpop.permute.xlu0 %875
      %877 = vrot.lane.b32.xlu0 %v402, 40
      %v878 = vpop.permute.xlu0 %877
      %879 = vrot.lane.b32.xlu0 %v404, 40
      %v880 = vpop.permute.xlu0 %879
      %881 = vrot.lane.b32.xlu0 %v407, 40
      %v882 = vpop.permute.xlu0 %881
      %883 = vrot.lane.b32.xlu0 %v409, 40
      %v884 = vpop.permute.xlu0 %883
      %885 = vrot.lane.b32.xlu0 %v412, 40
      %v886 = vpop.permute.xlu0 %885
      %887 = vrot.lane.b32.xlu0 %v414, 40
      %v888 = vpop.permute.xlu0 %887
      %889 = vrot.lane.b32.xlu0 %v417, 40
      %v890 = vpop.permute.xlu0 %889
      %891 = vrot.lane.b32.xlu0 %v419, 40
      %v892 = vpop.permute.xlu0 %891
      %893 = vrot.lane.b32.xlu0 %v422, 40
      %v894 = vpop.permute.xlu0 %893
      %895 = vrot.lane.b32.xlu0 %v424, 40
      %v896 = vpop.permute.xlu0 %895
      %897 = vrot.lane.b32.xlu0 %v427, 40
      %v898 = vpop.permute.xlu0 %897
      %899 = vrot.lane.b32.xlu0 %v429, 40
      %v900 = vpop.permute.xlu0 %899
      %901 = vrot.lane.b32.xlu0 %v432, 40
      %v902 = vpop.permute.xlu0 %901
      %903 = vrot.lane.b32.xlu0 %v434, 40
      %v904 = vpop.permute.xlu0 %903
      %905 = vrot.lane.b32.xlu0 %v445, 40
      %v906 = vpop.permute.xlu0 %905
      %907 = vrot.lane.b32.xlu0 %v447, 40
      %v908 = vpop.permute.xlu0 %907
      %941 = vrot.lane.b32.xlu0 %v177, 48
      %v942 = vpop.permute.xlu0 %941
      %943 = vrot.lane.b32.xlu0 %v178, 48
      %v944 = vpop.permute.xlu0 %943
      %945 = vrot.lane.b32.xlu0 %v180, 48
      %v946 = vpop.permute.xlu0 %945
      %947 = vrot.lane.b32.xlu0 %v181, 48
      %v948 = vpop.permute.xlu0 %947
      %949 = vrot.lane.b32.xlu0 %v183, 48
      %v950 = vpop.permute.xlu0 %949
      %951 = vrot.lane.b32.xlu0 %v184, 48
      %v952 = vpop.permute.xlu0 %951
      %953 = vrot.lane.b32.xlu0 %v186, 48
      %v954 = vpop.permute.xlu0 %953
      %955 = vrot.lane.b32.xlu0 %v187, 48
      %v956 = vpop.permute.xlu0 %955
      %957 = vrot.lane.b32.xlu0 %v189, 48
      %v958 = vpop.permute.xlu0 %957
      %959 = vrot.lane.b32.xlu0 %v190, 48
      %v960 = vpop.permute.xlu0 %959
      %961 = vrot.lane.b32.xlu0 %v192, 48
      %v962 = vpop.permute.xlu0 %961
      %963 = vrot.lane.b32.xlu0 %v193, 48
      %v964 = vpop.permute.xlu0 %963
      %965 = vrot.lane.b32.xlu0 %v195, 48
      %v966 = vpop.permute.xlu0 %965
      %967 = vrot.lane.b32.xlu0 %v196, 48
      %v968 = vpop.permute.xlu0 %967
      %969 = vrot.lane.b32.xlu0 %v198, 48
      %v970 = vpop.permute.xlu0 %969
      %971 = vrot.lane.b32.xlu0 %v199, 48
      %v972 = vpop.permute.xlu0 %971
      %973 = vrot.lane.b32.xlu0 %v201, 48
      %v974 = vpop.permute.xlu0 %973
      %975 = vrot.lane.b32.xlu0 %v202, 48
      %v976 = vpop.permute.xlu0 %975
      %977 = vrot.lane.b32.xlu0 %v204, 48
      %v978 = vpop.permute.xlu0 %977
      %979 = vrot.lane.b32.xlu0 %v205, 48
      %v980 = vpop.permute.xlu0 %979
      %981 = vrot.lane.b32.xlu0 %v207, 48
      %v982 = vpop.permute.xlu0 %981
      %983 = vrot.lane.b32.xlu0 %v208, 48
      %v984 = vpop.permute.xlu0 %983
      %985 = vrot.lane.b32.xlu0 %v210, 48
      %v986 = vpop.permute.xlu0 %985
      %987 = vrot.lane.b32.xlu0 %v211, 48
      %v988 = vpop.permute.xlu0 %987
      %989 = vrot.lane.b32.xlu0 %v213, 48
      %v990 = vpop.permute.xlu0 %989
      %991 = vrot.lane.b32.xlu0 %v214, 48
      %v992 = vpop.permute.xlu0 %991
      %993 = vrot.lane.b32.xlu0 %v216, 48
      %v994 = vpop.permute.xlu0 %993
      %995 = vrot.lane.b32.xlu0 %v217, 48
      %v996 = vpop.permute.xlu0 %995
      %997 = vrot.lane.b32.xlu0 %v219, 48
      %v998 = vpop.permute.xlu0 %997
      %999 = vrot.lane.b32.xlu0 %v220, 48
      %v1000 = vpop.permute.xlu0 %999
      %1001 = vrot.lane.b32.xlu0 %v222, 48
      %v1002 = vpop.permute.xlu0 %1001
      %1003 = vrot.lane.b32.xlu0 %v223, 48
      %v1004 = vpop.permute.xlu0 %1003
      %1037 = vrot.lane.b32.xlu0 %v286, 56
      %v1038 = vpop.permute.xlu0 %1037
      %1039 = vrot.lane.b32.xlu0 %v288, 56
      %v1040 = vpop.permute.xlu0 %1039
      %1041 = vrot.lane.b32.xlu0 %v291, 56
      %v1042 = vpop.permute.xlu0 %1041
      %1043 = vrot.lane.b32.xlu0 %v293, 56
      %v1044 = vpop.permute.xlu0 %1043
      %1045 = vrot.lane.b32.xlu0 %v296, 56
      %v1046 = vpop.permute.xlu0 %1045
      %1047 = vrot.lane.b32.xlu0 %v298, 56
      %v1048 = vpop.permute.xlu0 %1047
      %1049 = vrot.lane.b32.xlu0 %v301, 56
      %v1050 = vpop.permute.xlu0 %1049
      %1051 = vrot.lane.b32.xlu0 %v303, 56
      %v1052 = vpop.permute.xlu0 %1051
      %1053 = vrot.lane.b32.xlu0 %v306, 56
      %v1054 = vpop.permute.xlu0 %1053
      %1055 = vrot.lane.b32.xlu0 %v308, 56
      %v1056 = vpop.permute.xlu0 %1055
      %1057 = vrot.lane.b32.xlu0 %v311, 56
      %v1058 = vpop.permute.xlu0 %1057
      %1059 = vrot.lane.b32.xlu0 %v313, 56
      %v1060 = vpop.permute.xlu0 %1059
      %1061 = vrot.lane.b32.xlu0 %v316, 56
      %v1062 = vpop.permute.xlu0 %1061
      %1063 = vrot.lane.b32.xlu0 %v318, 56
      %v1064 = vpop.permute.xlu0 %1063
      %1065 = vrot.lane.b32.xlu0 %v321, 56
      %v1066 = vpop.permute.xlu0 %1065
      %1067 = vrot.lane.b32.xlu0 %v323, 56
      %v1068 = vpop.permute.xlu0 %1067
      %1069 = vrot.lane.b32.xlu0 %v326, 56
      %v1070 = vpop.permute.xlu0 %1069
      %1071 = vrot.lane.b32.xlu0 %v328, 56
      %v1072 = vpop.permute.xlu0 %1071
      %1073 = vrot.lane.b32.xlu0 %v331, 56
      %v1074 = vpop.permute.xlu0 %1073
      %1075 = vrot.lane.b32.xlu0 %v333, 56
      %v1076 = vpop.permute.xlu0 %1075
      %1077 = vrot.lane.b32.xlu0 %v336, 56
      %v1078 = vpop.permute.xlu0 %1077
      %1079 = vrot.lane.b32.xlu0 %v338, 56
      %v1080 = vpop.permute.xlu0 %1079
      %1081 = vrot.lane.b32.xlu0 %v341, 56
      %v1082 = vpop.permute.xlu0 %1081
      %1083 = vrot.lane.b32.xlu0 %v343, 56
      %v1084 = vpop.permute.xlu0 %1083
      %1085 = vrot.lane.b32.xlu0 %v346, 56
      %v1086 = vpop.permute.xlu0 %1085
      %1087 = vrot.lane.b32.xlu0 %v348, 56
      %v1088 = vpop.permute.xlu0 %1087
      %1089 = vrot.lane.b32.xlu0 %v351, 56
      %v1090 = vpop.permute.xlu0 %1089
      %1091 = vrot.lane.b32.xlu0 %v353, 56
      %v1092 = vpop.permute.xlu0 %1091
      %1093 = vrot.lane.b32.xlu0 %v440, 56
      %v1094 = vpop.permute.xlu0 %1093
      %1095 = vrot.lane.b32.xlu0 %v442, 56
      %v1096 = vpop.permute.xlu0 %1095
      %1097 = vrot.lane.b32.xlu0 %v453, 56
      %v1098 = vpop.permute.xlu0 %1097
      %1099 = vrot.lane.b32.xlu0 %v455, 56
      %v1100 = vpop.permute.xlu0 %1099
      %1133 = vrot.lane.b32.xlu0 %v367, 64
      %v1134 = vpop.permute.xlu0 %1133
      %1135 = vrot.lane.b32.xlu0 %v369, 64
      %v1136 = vpop.permute.xlu0 %1135
      %1137 = vrot.lane.b32.xlu0 %v372, 64
      %v1138 = vpop.permute.xlu0 %1137
      %1139 = vrot.lane.b32.xlu0 %v374, 64
      %v1140 = vpop.permute.xlu0 %1139
      %1141 = vrot.lane.b32.xlu0 %v377, 64
      %v1142 = vpop.permute.xlu0 %1141
      %1143 = vrot.lane.b32.xlu0 %v379, 64
      %v1144 = vpop.permute.xlu0 %1143
      %1145 = vrot.lane.b32.xlu0 %v382, 64
      %v1146 = vpop.permute.xlu0 %1145
      %1147 = vrot.lane.b32.xlu0 %v384, 64
      %v1148 = vpop.permute.xlu0 %1147
      %1149 = vrot.lane.b32.xlu0 %v387, 64
      %v1150 = vpop.permute.xlu0 %1149
      %1151 = vrot.lane.b32.xlu0 %v389, 64
      %v1152 = vpop.permute.xlu0 %1151
      %1153 = vrot.lane.b32.xlu0 %v392, 64
      %v1154 = vpop.permute.xlu0 %1153
      %1155 = vrot.lane.b32.xlu0 %v394, 64
      %v1156 = vpop.permute.xlu0 %1155
      %1157 = vrot.lane.b32.xlu0 %v397, 64
      %v1158 = vpop.permute.xlu0 %1157
      %1159 = vrot.lane.b32.xlu0 %v399, 64
      %v1160 = vpop.permute.xlu0 %1159
      %1161 = vrot.lane.b32.xlu0 %v402, 64
      %v1162 = vpop.permute.xlu0 %1161
      %1163 = vrot.lane.b32.xlu0 %v404, 64
      %v1164 = vpop.permute.xlu0 %1163
      %1165 = vrot.lane.b32.xlu0 %v407, 64
      %v1166 = vpop.permute.xlu0 %1165
      %1167 = vrot.lane.b32.xlu0 %v409, 64
      %v1168 = vpop.permute.xlu0 %1167
      %1169 = vrot.lane.b32.xlu0 %v412, 64
      %v1170 = vpop.permute.xlu0 %1169
      %1171 = vrot.lane.b32.xlu0 %v414, 64
      %v1172 = vpop.permute.xlu0 %1171
      %1173 = vrot.lane.b32.xlu0 %v417, 64
      %v1174 = vpop.permute.xlu0 %1173
      %1175 = vrot.lane.b32.xlu0 %v419, 64
      %v1176 = vpop.permute.xlu0 %1175
      %1177 = vrot.lane.b32.xlu0 %v422, 64
      %v1178 = vpop.permute.xlu0 %1177
      %1179 = vrot.lane.b32.xlu0 %v424, 64
      %v1180 = vpop.permute.xlu0 %1179
      %1181 = vrot.lane.b32.xlu0 %v427, 64
      %v1182 = vpop.permute.xlu0 %1181
      %1183 = vrot.lane.b32.xlu0 %v429, 64
      %v1184 = vpop.permute.xlu0 %1183
      %1185 = vrot.lane.b32.xlu0 %v432, 64
      %v1186 = vpop.permute.xlu0 %1185
      %1187 = vrot.lane.b32.xlu0 %v434, 64
      %v1188 = vpop.permute.xlu0 %1187
      %1189 = vrot.lane.b32.xlu0 %v445, 64
      %v1190 = vpop.permute.xlu0 %1189
      %1191 = vrot.lane.b32.xlu0 %v447, 64
      %v1192 = vpop.permute.xlu0 %1191
      %1193 = vrot.lane.b32.xlu0 %v458, 64
      %v1194 = vpop.permute.xlu0 %1193
      %1195 = vrot.lane.b32.xlu0 %v460, 64
      %v1196 = vpop.permute.xlu0 %1195
      %vm1229 = vcmask 64512
      %v1230 = vsel %vm1229, %v171, %v462
      %v1231 = vsel %vm1229, %v172, %v464
      %v1232 = vsel %vm1229, %v174, %v466
      %v1233 = vsel %vm1229, %v175, %v468
      %v1234 = vsel %vm1229, %v177, %v470
      %v1235 = vsel %vm1229, %v178, %v472
      %v1236 = vsel %vm1229, %v180, %v474
      %v1237 = vsel %vm1229, %v181, %v476
      %v1238 = vsel %vm1229, %v183, %v478
      %v1239 = vsel %vm1229, %v184, %v480
      %v1240 = vsel %vm1229, %v186, %v482
      %v1241 = vsel %vm1229, %v187, %v484
      %v1242 = vsel %vm1229, %v189, %v486
      %v1243 = vsel %vm1229, %v190, %v488
      %v1244 = vsel %vm1229, %v192, %v490
      %v1245 = vsel %vm1229, %v193, %v492
      %v1246 = vsel %vm1229, %v195, %v494
      %v1247 = vsel %vm1229, %v196, %v496
      %v1248 = vsel %vm1229, %v198, %v498
      %v1249 = vsel %vm1229, %v199, %v500
      %v1250 = vsel %vm1229, %v201, %v502
      %v1251 = vsel %vm1229, %v202, %v504
      %v1252 = vsel %vm1229, %v204, %v506
      %v1253 = vsel %vm1229, %v205, %v508
      %v1254 = vsel %vm1229, %v207, %v510
      %v1255 = vsel %vm1229, %v208, %v512
      %v1256 = vsel %vm1229, %v210, %v514
      %v1257 = vsel %vm1229, %v211, %v516
      %v1258 = vsel %vm1229, %v213, %v518
      %v1259 = vsel %vm1229, %v214, %v520
      %v1260 = vsel %vm1229, %v216, %v522
      %v1261 = vsel %vm1229, %v217, %v524
      %vm1262 = vcmask 130048
      %v1263 = vsel %vm1262, %v1230, %v558
      %v1264 = vsel %vm1262, %v1231, %v560
      %v1265 = vsel %vm1262, %v1232, %v562
      %v1266 = vsel %vm1262, %v1233, %v564
      %v1267 = vsel %vm1262, %v1234, %v566
      %v1268 = vsel %vm1262, %v1235, %v568
      %v1269 = vsel %vm1262, %v1236, %v570
      %v1270 = vsel %vm1262, %v1237, %v572
      %v1271 = vsel %vm1262, %v1238, %v574
      %v1272 = vsel %vm1262, %v1239, %v576
      %v1273 = vsel %vm1262, %v1240, %v578
      %v1274 = vsel %vm1262, %v1241, %v580
      %v1275 = vsel %vm1262, %v1242, %v582
      %v1276 = vsel %vm1262, %v1243, %v584
      %v1277 = vsel %vm1262, %v1244, %v586
      %v1278 = vsel %vm1262, %v1245, %v588
      %v1279 = vsel %vm1262, %v1246, %v590
      %v1280 = vsel %vm1262, %v1247, %v592
      %v1281 = vsel %vm1262, %v1248, %v594
      %v1282 = vsel %vm1262, %v1249, %v596
      %v1283 = vsel %vm1262, %v1250, %v598
      %v1284 = vsel %vm1262, %v1251, %v600
      %v1285 = vsel %vm1262, %v1252, %v602
      %v1286 = vsel %vm1262, %v1253, %v604
      %v1287 = vsel %vm1262, %v1254, %v606
      %v1288 = vsel %vm1262, %v1255, %v608
      %v1289 = vsel %vm1262, %v1256, %v610
      %v1290 = vsel %vm1262, %v1257, %v612
      %v1291 = vsel %vm1262, %v1258, %v614
      %v1292 = vsel %vm1262, %v1259, %v616
      %v1293 = vsel %vm1262, %v1260, %v618
      %v1294 = vsel %vm1262, %v1261, %v620
      %vm1295 = vcmask 195584
      %v1296 = vsel %vm1295, %v1263, %v654
      %v1297 = vsel %vm1295, %v1264, %v656
      %v1298 = vsel %vm1295, %v1265, %v658
      %v1299 = vsel %vm1295, %v1266, %v660
      %v1300 = vsel %vm1295, %v1267, %v662
      %v1301 = vsel %vm1295, %v1268, %v664
      %v1302 = vsel %vm1295, %v1269, %v666
      %v1303 = vsel %vm1295, %v1270, %v668
      %v1304 = vsel %vm1295, %v1271, %v670
      %v1305 = vsel %vm1295, %v1272, %v672
      %v1306 = vsel %vm1295, %v1273, %v674
      %v1307 = vsel %vm1295, %v1274, %v676
      %v1308 = vsel %vm1295, %v1275, %v678
      %v1309 = vsel %vm1295, %v1276, %v680
      %v1310 = vsel %vm1295, %v1277, %v682
      %v1311 = vsel %vm1295, %v1278, %v684
      %v1312 = vsel %vm1295, %v1279, %v686
      %v1313 = vsel %vm1295, %v1280, %v688
      %v1314 = vsel %vm1295, %v1281, %v690
      %v1315 = vsel %vm1295, %v1282, %v692
      %v1316 = vsel %vm1295, %v1283, %v694
      %v1317 = vsel %vm1295, %v1284, %v696
      %v1318 = vsel %vm1295, %v1285, %v698
      %v1319 = vsel %vm1295, %v1286, %v700
      %v1320 = vsel %vm1295, %v1287, %v702
      %v1321 = vsel %vm1295, %v1288, %v704
      %v1322 = vsel %vm1295, %v1289, %v706
      %v1323 = vsel %vm1295, %v1290, %v708
      %v1324 = vsel %vm1295, %v1291, %v710
      %v1325 = vsel %vm1295, %v1292, %v712
      %v1326 = vsel %vm1295, %v1293, %v714
      %v1327 = vsel %vm1295, %v1294, %v716
      %vm1328 = vcmask 261120
      %v1329 = vsel %vm1328, %v1296, %v750
      %v1330 = vsel %vm1328, %v1297, %v752
      %v1331 = vsel %vm1328, %v1298, %v754
      %v1332 = vsel %vm1328, %v1299, %v756
      %v1333 = vsel %vm1328, %v1300, %v758
      %v1334 = vsel %vm1328, %v1301, %v760
      %v1335 = vsel %vm1328, %v1302, %v762
      %v1336 = vsel %vm1328, %v1303, %v764
      %v1337 = vsel %vm1328, %v1304, %v766
      %v1338 = vsel %vm1328, %v1305, %v768
      %v1339 = vsel %vm1328, %v1306, %v770
      %v1340 = vsel %vm1328, %v1307, %v772
      %v1341 = vsel %vm1328, %v1308, %v774
      %v1342 = vsel %vm1328, %v1309, %v776
      %v1343 = vsel %vm1328, %v1310, %v778
      %v1344 = vsel %vm1328, %v1311, %v780
      %v1345 = vsel %vm1328, %v1312, %v782
      %v1346 = vsel %vm1328, %v1313, %v784
      %v1347 = vsel %vm1328, %v1314, %v786
      %v1348 = vsel %vm1328, %v1315, %v788
      %v1349 = vsel %vm1328, %v1316, %v790
      %v1350 = vsel %vm1328, %v1317, %v792
      %v1351 = vsel %vm1328, %v1318, %v794
      %v1352 = vsel %vm1328, %v1319, %v796
      %v1353 = vsel %vm1328, %v1320, %v798
      %v1354 = vsel %vm1328, %v1321, %v800
      %v1355 = vsel %vm1328, %v1322, %v802
      %v1356 = vsel %vm1328, %v1323, %v804
      %v1357 = vsel %vm1328, %v1324, %v806
      %v1358 = vsel %vm1328, %v1325, %v808
      %v1359 = vsel %vm1328, %v1326, %v810
      %v1360 = vsel %vm1328, %v1327, %v812
      %vm1361 = vcmask 326656
      %v1362 = vsel %vm1361, %v1329, %v846
      %v1363 = vsel %vm1361, %v1330, %v848
      %v1364 = vsel %vm1361, %v1331, %v850
      %v1365 = vsel %vm1361, %v1332, %v852
      %v1366 = vsel %vm1361, %v1333, %v854
      %v1367 = vsel %vm1361, %v1334, %v856
      %v1368 = vsel %vm1361, %v1335, %v858
      %v1369 = vsel %vm1361, %v1336, %v860
      %v1370 = vsel %vm1361, %v1337, %v862
      %v1371 = vsel %vm1361, %v1338, %v864
      %v1372 = vsel %vm1361, %v1339, %v866
      %v1373 = vsel %vm1361, %v1340, %v868
      %v1374 = vsel %vm1361, %v1341, %v870
      %v1375 = vsel %vm1361, %v1342, %v872
      %v1376 = vsel %vm1361, %v1343, %v874
      %v1377 = vsel %vm1361, %v1344, %v876
      %v1378 = vsel %vm1361, %v1345, %v878
      %v1379 = vsel %vm1361, %v1346, %v880
      %v1380 = vsel %vm1361, %v1347, %v882
      %v1381 = vsel %vm1361, %v1348, %v884
      %v1382 = vsel %vm1361, %v1349, %v886
      %v1383 = vsel %vm1361, %v1350, %v888
      %v1384 = vsel %vm1361, %v1351, %v890
      %v1385 = vsel %vm1361, %v1352, %v892
      %v1386 = vsel %vm1361, %v1353, %v894
      %v1387 = vsel %vm1361, %v1354, %v896
      %v1388 = vsel %vm1361, %v1355, %v898
      %v1389 = vsel %vm1361, %v1356, %v900
      %v1390 = vsel %vm1361, %v1357, %v902
      %v1391 = vsel %vm1361, %v1358, %v904
      %v1392 = vsel %vm1361, %v1359, %v906
      %v1393 = vsel %vm1361, %v1360, %v908
      %vm1394 = vcmask 392192
      %v1395 = vsel %vm1394, %v1362, %v942
      %v1396 = vsel %vm1394, %v1363, %v944
      %v1397 = vsel %vm1394, %v1364, %v946
      %v1398 = vsel %vm1394, %v1365, %v948
      %v1399 = vsel %vm1394, %v1366, %v950
      %v1400 = vsel %vm1394, %v1367, %v952
      %v1401 = vsel %vm1394, %v1368, %v954
      %v1402 = vsel %vm1394, %v1369, %v956
      %v1403 = vsel %vm1394, %v1370, %v958
      %v1404 = vsel %vm1394, %v1371, %v960
      %v1405 = vsel %vm1394, %v1372, %v962
      %v1406 = vsel %vm1394, %v1373, %v964
      %v1407 = vsel %vm1394, %v1374, %v966
      %v1408 = vsel %vm1394, %v1375, %v968
      %v1409 = vsel %vm1394, %v1376, %v970
      %v1410 = vsel %vm1394, %v1377, %v972
      %v1411 = vsel %vm1394, %v1378, %v974
      %v1412 = vsel %vm1394, %v1379, %v976
      %v1413 = vsel %vm1394, %v1380, %v978
      %v1414 = vsel %vm1394, %v1381, %v980
      %v1415 = vsel %vm1394, %v1382, %v982
      %v1416 = vsel %vm1394, %v1383, %v984
      %v1417 = vsel %vm1394, %v1384, %v986
      %v1418 = vsel %vm1394, %v1385, %v988
      %v1419 = vsel %vm1394, %v1386, %v990
      %v1420 = vsel %vm1394, %v1387, %v992
      %v1421 = vsel %vm1394, %v1388, %v994
      %v1422 = vsel %vm1394, %v1389, %v996
      %v1423 = vsel %vm1394, %v1390, %v998
      %v1424 = vsel %vm1394, %v1391, %v1000
      %v1425 = vsel %vm1394, %v1392, %v1002
      %v1426 = vsel %vm1394, %v1393, %v1004
      %vm1427 = vcmask 457728
      %v1428 = vsel %vm1427, %v1395, %v1038
      %v1429 = vsel %vm1427, %v1396, %v1040
      %v1430 = vsel %vm1427, %v1397, %v1042
      %v1431 = vsel %vm1427, %v1398, %v1044
      %v1432 = vsel %vm1427, %v1399, %v1046
      %v1433 = vsel %vm1427, %v1400, %v1048
      %v1434 = vsel %vm1427, %v1401, %v1050
      %v1435 = vsel %vm1427, %v1402, %v1052
      %v1436 = vsel %vm1427, %v1403, %v1054
      %v1437 = vsel %vm1427, %v1404, %v1056
      %v1438 = vsel %vm1427, %v1405, %v1058
      %v1439 = vsel %vm1427, %v1406, %v1060
      %v1440 = vsel %vm1427, %v1407, %v1062
      %v1441 = vsel %vm1427, %v1408, %v1064
      %v1442 = vsel %vm1427, %v1409, %v1066
      %v1443 = vsel %vm1427, %v1410, %v1068
      %v1444 = vsel %vm1427, %v1411, %v1070
      %v1445 = vsel %vm1427, %v1412, %v1072
      %v1446 = vsel %vm1427, %v1413, %v1074
      %v1447 = vsel %vm1427, %v1414, %v1076
      %v1448 = vsel %vm1427, %v1415, %v1078
      %v1449 = vsel %vm1427, %v1416, %v1080
      %v1450 = vsel %vm1427, %v1417, %v1082
      %v1451 = vsel %vm1427, %v1418, %v1084
      %v1452 = vsel %vm1427, %v1419, %v1086
      %v1453 = vsel %vm1427, %v1420, %v1088
      %v1454 = vsel %vm1427, %v1421, %v1090
      %v1455 = vsel %vm1427, %v1422, %v1092
      %v1456 = vsel %vm1427, %v1423, %v1094
      %v1457 = vsel %vm1427, %v1424, %v1096
      %v1458 = vsel %vm1427, %v1425, %v1098
      %v1459 = vsel %vm1427, %v1426, %v1100
      %vm1460 = vcmask 523264
      %v1461 = vsel %vm1460, %v1428, %v1134
      %v1462 = vsel %vm1460, %v1429, %v1136
      %v1463 = vsel %vm1460, %v1430, %v1138
      %v1464 = vsel %vm1460, %v1431, %v1140
      %v1465 = vsel %vm1460, %v1432, %v1142
      %v1466 = vsel %vm1460, %v1433, %v1144
      %v1467 = vsel %vm1460, %v1434, %v1146
      %v1468 = vsel %vm1460, %v1435, %v1148
      %v1469 = vsel %vm1460, %v1436, %v1150
      %v1470 = vsel %vm1460, %v1437, %v1152
      %v1471 = vsel %vm1460, %v1438, %v1154
      %v1472 = vsel %vm1460, %v1439, %v1156
      %v1473 = vsel %vm1460, %v1440, %v1158
      %v1474 = vsel %vm1460, %v1441, %v1160
      %v1475 = vsel %vm1460, %v1442, %v1162
      %v1476 = vsel %vm1460, %v1443, %v1164
      %v1477 = vsel %vm1460, %v1444, %v1166
      %v1478 = vsel %vm1460, %v1445, %v1168
      %v1479 = vsel %vm1460, %v1446, %v1170
      %v1480 = vsel %vm1460, %v1447, %v1172
      %v1481 = vsel %vm1460, %v1448, %v1174
      %v1482 = vsel %vm1460, %v1449, %v1176
      %v1483 = vsel %vm1460, %v1450, %v1178
      %v1484 = vsel %vm1460, %v1451, %v1180
      %v1485 = vsel %vm1460, %v1452, %v1182
      %v1486 = vsel %vm1460, %v1453, %v1184
      %v1487 = vsel %vm1460, %v1454, %v1186
      %v1488 = vsel %vm1460, %v1455, %v1188
      %v1489 = vsel %vm1460, %v1456, %v1190
      %v1490 = vsel %vm1460, %v1457, %v1192
      %v1491 = vsel %vm1460, %v1458, %v1194
      %v1492 = vsel %vm1460, %v1459, %v1196
      %v1493 = vld [vmem:[%s1] sm:$0xff]
      %v1494 = vld [vmem:[%s1 + $0x8] sm:$0xff]
      %v1495 = vld [vmem:[%s1 + $0x10] sm:$0xff]
      %v1496 = vld [vmem:[%s1 + $0x18] sm:$0xff]
      %v1497 = vld [vmem:[%s1 + $0x20] sm:$0xff]
      %v1498 = vld [vmem:[%s1 + $0x28] sm:$0xff]
      %v1499 = vld [vmem:[%s1 + $0x30] sm:$0xff]
      %v1500 = vld [vmem:[%s1 + $0x38] sm:$0xff]
      %v1501 = vld [vmem:[%s1 + $0x40] sm:$0xff]
      %v1502 = vld [vmem:[%s2] sm:$0x1]
      %v1504 = vlaneseq
      %v1505 = vshrl.u32 %v1504, 7
      %v1506 = vsub.s32 0, %v1505
      %v1507 = vrot.slane %v1502, %v1506
      %vm1509 = vcmask 588800
      %v1511 = vsel %vm1509, %v1461, 0
      %v1514 = vsel %vm1509, %v1462, 0
      %v1517 = vsel %vm1509, %v1463, 0
      %v1520 = vsel %vm1509, %v1464, 0
      %v1523 = vsel %vm1509, %v1465, 0
      %v1526 = vsel %vm1509, %v1466, 0
      %v1529 = vsel %vm1509, %v1467, 0
      %v1532 = vsel %vm1509, %v1468, 0
      %v1535 = vsel %vm1509, %v1469, 0
      %v1538 = vsel %vm1509, %v1470, 0
      %v1541 = vsel %vm1509, %v1471, 0
      %v1544 = vsel %vm1509, %v1472, 0
      %v1547 = vsel %vm1509, %v1473, 0
      %v1550 = vsel %vm1509, %v1474, 0
      %v1553 = vsel %vm1509, %v1475, 0
      %v1556 = vsel %vm1509, %v1476, 0
      %v1559 = vsel %vm1509, %v1477, 0
      %v1562 = vsel %vm1509, %v1478, 0
      %v1565 = vsel %vm1509, %v1479, 0
      %v1568 = vsel %vm1509, %v1480, 0
      %v1571 = vsel %vm1509, %v1481, 0
      %v1574 = vsel %vm1509, %v1482, 0
      %v1577 = vsel %vm1509, %v1483, 0
      %v1580 = vsel %vm1509, %v1484, 0
      %v1583 = vsel %vm1509, %v1485, 0
      %v1586 = vsel %vm1509, %v1486, 0
      %v1589 = vsel %vm1509, %v1487, 0
      %v1592 = vsel %vm1509, %v1488, 0
      %v1595 = vsel %vm1509, %v1489, 0
      %v1598 = vsel %vm1509, %v1490, 0
      %v1601 = vsel %vm1509, %v1491, 0
      %v1604 = vsel %vm1509, %v1492, 0
      %1606 = vmatprep.subr.mxu0 0.0
      %1607 = vmatpush1.msra.mxu0 %v1493
      %1608 = vmatprep.subr.mxu0 0.0
      %1609 = vmatpush1.msra.mxu0 %v1494
      %1610 = vmatprep.subr.mxu0 0.0
      %1611 = vmatpush1.msra.mxu0 %v1495
      %1612 = vmatprep.subr.mxu0 0.0
      %1613 = vmatpush1.msra.mxu0 %v1496
      %1614 = vmatprep.subr.mxu0 0.0
      %1615 = vmatpush1.msra.mxu0 %v1497
      %1616 = vmatprep.subr.mxu0 0.0
      %1617 = vmatpush1.msra.mxu0 %v1498
      %1618 = vmatprep.subr.mxu0 0.0
      %1619 = vmatpush1.msra.mxu0 %v1499
      %1620 = vmatprep.subr.mxu0 0.0
      %1621 = vmatpush1.msra.mxu0 %v1500
      %1622 = vmatprep.subr.mxu0 0.0
      %1623 = vmatpush1.msra.mxu0 %v1501
      %1624 = vmatprep.subr.mxu0 0.0
      %1625 = vmatpush1.msra.mxu0 0.0
      %1626 = vmatprep.subr.mxu0 0.0
      %1627 = vmatpush1.msra.mxu0 0.0
      %1628 = vmatprep.subr.mxu0 0.0
      %1629 = vmatpush1.msra.mxu0 0.0
      %1630 = vmatprep.subr.mxu0 0.0
      %1631 = vmatpush1.msra.mxu0 0.0
      %1632 = vmatprep.subr.mxu0 0.0
      %1633 = vmatpush1.msra.mxu0 0.0
      %1634 = vmatprep.subr.mxu0 0.0
      %1635 = vmatpush1.msra.mxu0 0.0
      %1636 = vmatprep.subr.mxu0 0.0
      %1637 = vmatpush1.msra.mxu0 0.0
      %1638 = vmatprep.subr.mxu0 0.0
      %1639 = vmatpush1.msra.mxu0 0.0
      %1640 = vmatprep.subr.mxu0 0.0
      %1641 = vmatpush1.msra.mxu0 0.0
      %1642 = vmatprep.subr.mxu0 0.0
      %1643 = vmatpush1.msra.mxu0 0.0
      %1644 = vmatprep.subr.mxu0 0.0
      %1645 = vmatpush1.msra.mxu0 0.0
      %1646 = vmatprep.subr.mxu0 0.0
      %1647 = vmatpush1.msra.mxu0 0.0
      %1648 = vmatprep.subr.mxu0 0.0
      %1649 = vmatpush1.msra.mxu0 0.0
      %1650 = vmatprep.subr.mxu0 0.0
      %1651 = vmatpush1.msra.mxu0 0.0
      %1652 = vmatprep.subr.mxu0 0.0
      %1653 = vmatpush1.msra.mxu0 0.0
      %1654 = vmatprep.subr.mxu0 0.0
      %1655 = vmatpush1.msra.mxu0 0.0
      %1656 = vmatprep.subr.mxu0 0.0
      %1657 = vmatpush1.msra.mxu0 0.0
      %1658 = vmatprep.subr.mxu0 0.0
      %1659 = vmatpush1.msra.mxu0 0.0
      %1660 = vmatprep.subr.mxu0 0.0
      %1661 = vmatpush1.msra.mxu0 0.0
      %1662 = vmatprep.subr.mxu0 0.0
      %1663 = vmatpush1.msra.mxu0 0.0
      %1664 = vmatprep.subr.mxu0 0.0
      %1665 = vmatpush1.msra.mxu0 0.0
      %1666 = vmatprep.subr.mxu0 0.0
      %1667 = vmatpush1.msra.mxu0 0.0
      %1668 = vmatprep.subr.mxu0 0.0
      %1669 = vmatpush1.msra.mxu0 0.0
      %1670 = vmatprep.mubr.f32.mxu0 0.0
      %1671 = vmatmul.mubr.f32.gmra.mrb[0].mxu0 %v1511
      %v1672 = vpop.f32.mrb[0].mxu0
      %v1673 = vadd.f32 %v1507, %v1672
      %v1674 = vpop.f32.mrb[0].mxu0
      %1675 = vmatprep.mubr.f32.mxu0 0.0
      %1676 = vmatmul.mubr.f32.gmra.mrb[0].mxu0 %v1514
      %v1677 = vpop.f32.mrb[0].mxu0
      %v1678 = vadd.f32 %v1507, %v1677
      %v1679 = vpop.f32.mrb[0].mxu0
      %1680 = vmatprep.mubr.f32.mxu0 0.0
      %1681 = vmatmul.mubr.f32.gmra.mrb[0].mxu0 %v1517
      %v1682 = vpop.f32.mrb[0].mxu0
      %v1683 = vadd.f32 %v1507, %v1682
      %v1684 = vpop.f32.mrb[0].mxu0
      %1685 = vmatprep.mubr.f32.mxu0 0.0
      %1686 = vmatmul.mubr.f32.gmra.mrb[0].mxu0 %v1520
      %v1687 = vpop.f32.mrb[0].mxu0
      %v1688 = vadd.f32 %v1507, %v1687
      %v1689 = vpop.f32.mrb[0].mxu0
      %1690 = vmatprep.mubr.f32.mxu0 0.0
      %1691 = vmatmul.mubr.f32.gmra.mrb[0].mxu0 %v1523
      %v1692 = vpop.f32.mrb[0].mxu0
      %v1693 = vadd.f32 %v1507, %v1692
      %v1694 = vpop.f32.mrb[0].mxu0
      %1695 = vmatprep.mubr.f32.mxu0 0.0
      %1696 = vmatmul.mubr.f32.gmra.mrb[0].mxu0 %v1526
      %v1697 = vpop.f32.mrb[0].mxu0
      %v1698 = vadd.f32 %v1507, %v1697
      %v1699 = vpop.f32.mrb[0].mxu0
      %1700 = vmatprep.mubr.f32.mxu0 0.0
      %1701 = vmatmul.mubr.f32.gmra.mrb[0].mxu0 %v1529
      %v1702 = vpop.f32.mrb[0].mxu0
      %v1703 = vadd.f32 %v1507, %v1702
      %v1704 = vpop.f32.mrb[0].mxu0
      %1705 = vmatprep.mubr.f32.mxu0 0.0
      %1706 = vmatmul.mubr.f32.gmra.mrb[0].mxu0 %v1532
      %v1707 = vpop.f32.mrb[0].mxu0
      %v1708 = vadd.f32 %v1507, %v1707
      %v1709 = vpop.f32.mrb[0].mxu0
      %1710 = vmatprep.mubr.f32.mxu0 0.0
      %1711 = vmatmul.mubr.f32.gmra.mrb[0].mxu0 %v1535
      %v1712 = vpop.f32.mrb[0].mxu0
      %v1713 = vadd.f32 %v1507, %v1712
      %v1714 = vpop.f32.mrb[0].mxu0
      %1715 = vmatprep.mubr.f32.mxu0 0.0
      %1716 = vmatmul.mubr.f32.gmra.mrb[0].mxu0 %v1538
      %v1717 = vpop.f32.mrb[0].mxu0
      %v1718 = vadd.f32 %v1507, %v1717
      %v1719 = vpop.f32.mrb[0].mxu0
      %1720 = vmatprep.mubr.f32.mxu0 0.0
      %1721 = vmatmul.mubr.f32.gmra.mrb[0].mxu0 %v1541
      %v1722 = vpop.f32.mrb[0].mxu0
      %v1723 = vadd.f32 %v1507, %v1722
      %v1724 = vpop.f32.mrb[0].mxu0
      %1725 = vmatprep.mubr.f32.mxu0 0.0
      %1726 = vmatmul.mubr.f32.gmra.mrb[0].mxu0 %v1544
      %v1727 = vpop.f32.mrb[0].mxu0
      %v1728 = vadd.f32 %v1507, %v1727
      %v1729 = vpop.f32.mrb[0].mxu0
      %1730 = vmatprep.mubr.f32.mxu0 0.0
      %1731 = vmatmul.mubr.f32.gmra.mrb[0].mxu0 %v1547
      %v1732 = vpop.f32.mrb[0].mxu0
      %v1733 = vadd.f32 %v1507, %v1732
      %v1734 = vpop.f32.mrb[0].mxu0
      %1735 = vmatprep.mubr.f32.mxu0 0.0
      %1736 = vmatmul.mubr.f32.gmra.mrb[0].mxu0 %v1550
      %v1737 = vpop.f32.mrb[0].mxu0
      %v1738 = vadd.f32 %v1507, %v1737
      %v1739 = vpop.f32.mrb[0].mxu0
      %1740 = vmatprep.mubr.f32.mxu0 0.0
      %1741 = vmatmul.mubr.f32.gmra.mrb[0].mxu0 %v1553
      %v1742 = vpop.f32.mrb[0].mxu0
      %v1743 = vadd.f32 %v1507, %v1742
      %v1744 = vpop.f32.mrb[0].mxu0
      %1745 = vmatprep.mubr.f32.mxu0 0.0
      %1746 = vmatmul.mubr.f32.gmra.mrb[0].mxu0 %v1556
      %v1747 = vpop.f32.mrb[0].mxu0
      %v1748 = vadd.f32 %v1507, %v1747
      %v1749 = vpop.f32.mrb[0].mxu0
      %1750 = vmatprep.mubr.f32.mxu0 0.0
      %1751 = vmatmul.mubr.f32.gmra.mrb[0].mxu0 %v1559
      %v1752 = vpop.f32.mrb[0].mxu0
      %v1753 = vadd.f32 %v1507, %v1752
      %v1754 = vpop.f32.mrb[0].mxu0
      %1755 = vmatprep.mubr.f32.mxu0 0.0
      %1756 = vmatmul.mubr.f32.gmra.mrb[0].mxu0 %v1562
      %v1757 = vpop.f32.mrb[0].mxu0
      %v1758 = vadd.f32 %v1507, %v1757
      %v1759 = vpop.f32.mrb[0].mxu0
      %1760 = vmatprep.mubr.f32.mxu0 0.0
      %1761 = vmatmul.mubr.f32.gmra.mrb[0].mxu0 %v1565
      %v1762 = vpop.f32.mrb[0].mxu0
      %v1763 = vadd.f32 %v1507, %v1762
      %v1764 = vpop.f32.mrb[0].mxu0
      %1765 = vmatprep.mubr.f32.mxu0 0.0
      %1766 = vmatmul.mubr.f32.gmra.mrb[0].mxu0 %v1568
      %v1767 = vpop.f32.mrb[0].mxu0
      %v1768 = vadd.f32 %v1507, %v1767
      %v1769 = vpop.f32.mrb[0].mxu0
      %1770 = vmatprep.mubr.f32.mxu0 0.0
      %1771 = vmatmul.mubr.f32.gmra.mrb[0].mxu0 %v1571
      %v1772 = vpop.f32.mrb[0].mxu0
      %v1773 = vadd.f32 %v1507, %v1772
      %v1774 = vpop.f32.mrb[0].mxu0
      %1775 = vmatprep.mubr.f32.mxu0 0.0
      %1776 = vmatmul.mubr.f32.gmra.mrb[0].mxu0 %v1574
      %v1777 = vpop.f32.mrb[0].mxu0
      %v1778 = vadd.f32 %v1507, %v1777
      %v1779 = vpop.f32.mrb[0].mxu0
      %1780 = vmatprep.mubr.f32.mxu0 0.0
      %1781 = vmatmul.mubr.f32.gmra.mrb[0].mxu0 %v1577
      %v1782 = vpop.f32.mrb[0].mxu0
      %v1783 = vadd.f32 %v1507, %v1782
      %v1784 = vpop.f32.mrb[0].mxu0
      %1785 = vmatprep.mubr.f32.mxu0 0.0
      %1786 = vmatmul.mubr.f32.gmra.mrb[0].mxu0 %v1580
      %v1787 = vpop.f32.mrb[0].mxu0
      %v1788 = vadd.f32 %v1507, %v1787
      %v1789 = vpop.f32.mrb[0].mxu0
      %1790 = vmatprep.mubr.f32.mxu0 0.0
      %1791 = vmatmul.mubr.f32.gmra.mrb[0].mxu0 %v1583
      %v1792 = vpop.f32.mrb[0].mxu0
      %v1793 = vadd.f32 %v1507, %v1792
      %v1794 = vpop.f32.mrb[0].mxu0
      %1795 = vmatprep.mubr.f32.mxu0 0.0
      %1796 = vmatmul.mubr.f32.gmra.mrb[0].mxu0 %v1586
      %v1797 = vpop.f32.mrb[0].mxu0
      %v1798 = vadd.f32 %v1507, %v1797
      %v1799 = vpop.f32.mrb[0].mxu0
      %1800 = vmatprep.mubr.f32.mxu0 0.0
      %1801 = vmatmul.mubr.f32.gmra.mrb[0].mxu0 %v1589
      %v1802 = vpop.f32.mrb[0].mxu0
      %v1803 = vadd.f32 %v1507, %v1802
      %v1804 = vpop.f32.mrb[0].mxu0
      %1805 = vmatprep.mubr.f32.mxu0 0.0
      %1806 = vmatmul.mubr.f32.gmra.mrb[0].mxu0 %v1592
      %v1807 = vpop.f32.mrb[0].mxu0
      %v1808 = vadd.f32 %v1507, %v1807
      %v1809 = vpop.f32.mrb[0].mxu0
      %1810 = vmatprep.mubr.f32.mxu0 0.0
      %1811 = vmatmul.mubr.f32.gmra.mrb[0].mxu0 %v1595
      %v1812 = vpop.f32.mrb[0].mxu0
      %v1813 = vadd.f32 %v1507, %v1812
      %v1814 = vpop.f32.mrb[0].mxu0
      %1815 = vmatprep.mubr.f32.mxu0 0.0
      %1816 = vmatmul.mubr.f32.gmra.mrb[0].mxu0 %v1598
      %v1817 = vpop.f32.mrb[0].mxu0
      %v1818 = vadd.f32 %v1507, %v1817
      %v1819 = vpop.f32.mrb[0].mxu0
      %1820 = vmatprep.mubr.f32.mxu0 0.0
      %1821 = vmatmul.mubr.f32.gmra.mrb[0].mxu0 %v1601
      %v1822 = vpop.f32.mrb[0].mxu0
      %v1823 = vadd.f32 %v1507, %v1822
      %v1824 = vpop.f32.mrb[0].mxu0
      %1825 = vmatprep.mubr.f32.mxu0 0.0
      %1826 = vmatmul.mubr.f32.gmra.mrb[0].mxu0 %v1604
      %v1827 = vpop.f32.mrb[0].mxu0
      %v1828 = vadd.f32 %v1507, %v1827
      %v1829 = vpop.f32.mrb[0].mxu0
      %1830 = vdwg.mxu0
      %v1831 = vmax.f32 %v1673, 0.0
      %v1832 = vmax.f32 %v1678, 0.0
      %v1833 = vmax.f32 %v1683, 0.0
      %v1834 = vmax.f32 %v1688, 0.0
      %v1835 = vmax.f32 %v1693, 0.0
      %v1836 = vmax.f32 %v1698, 0.0
      %v1837 = vmax.f32 %v1703, 0.0
      %v1838 = vmax.f32 %v1708, 0.0
      %v1839 = vmax.f32 %v1713, 0.0
      %v1840 = vmax.f32 %v1718, 0.0
      %v1841 = vmax.f32 %v1723, 0.0
      %v1842 = vmax.f32 %v1728, 0.0
      %v1843 = vmax.f32 %v1733, 0.0
      %v1844 = vmax.f32 %v1738, 0.0
      %v1845 = vmax.f32 %v1743, 0.0
      %v1846 = vmax.f32 %v1748, 0.0
      %v1847 = vmax.f32 %v1753, 0.0
      %v1848 = vmax.f32 %v1758, 0.0
      %v1849 = vmax.f32 %v1763, 0.0
      %v1850 = vmax.f32 %v1768, 0.0
      %v1851 = vmax.f32 %v1773, 0.0
      %v1852 = vmax.f32 %v1778, 0.0
      %v1853 = vmax.f32 %v1783, 0.0
      %v1854 = vmax.f32 %v1788, 0.0
      %v1855 = vmax.f32 %v1793, 0.0
      %v1856 = vmax.f32 %v1798, 0.0
      %v1857 = vmax.f32 %v1803, 0.0
      %v1858 = vmax.f32 %v1808, 0.0
      %v1859 = vmax.f32 %v1813, 0.0
      %v1860 = vmax.f32 %v1818, 0.0
      %v1861 = vmax.f32 %v1823, 0.0
      %v1862 = vmax.f32 %v1828, 0.0
      %1863 = vxpose.xlu0.b32.start [1/16] %v1831, 128
      %1864 = vxpose.xlu0.b32.cont [2/16] %v1832, 128
      %1865 = vxpose.xlu0.b32.cont [3/16] %v1833, 128
      %1866 = vxpose.xlu0.b32.cont [4/16] %v1834, 128
      %1867 = vxpose.xlu0.b32.cont [5/16] %v1835, 128
      %1868 = vxpose.xlu0.b32.cont [6/16] %v1836, 128
      %1869 = vxpose.xlu0.b32.cont [7/16] %v1837, 128
      %1870 = vxpose.xlu0.b32.cont [8/16] %v1838, 128
      %1871 = vxpose.xlu0.b32.cont [9/16] %v1839, 128
      %1872 = vxpose.xlu0.b32.cont [10/16] %v1840, 128
      %1873 = vxpose.xlu0.b32.cont [11/16] %v1841, 128
      %1874 = vxpose.xlu0.b32.cont [12/16] %v1842, 128
      %1875 = vxpose.xlu0.b32.cont [13/16] %v1843, 128
      %1876 = vxpose.xlu0.b32.cont [14/16] %v1844, 128
      %1877 = vxpose.xlu0.b32.cont [15/16] %v1845, 128
      %1878 = vxpose.xlu0.b32.end [16/16] %v1846, 128
      %v1879 = vpop.trf.xlu0
      %v1880 = vpop.trf.xlu0
      %v1881 = vpop.trf.xlu0
      %v1882 = vpop.trf.xlu0
      %v1883 = vpop.trf.xlu0
      %v1884 = vpop.trf.xlu0
      %v1885 = vpop.trf.xlu0
      %v1886 = vpop.trf.xlu0
      %v1887 = vpop.trf.xlu0
      %v1888 = vpop.trf.xlu0
      %v1889 = vpop.trf.xlu0
      %v1890 = vpop.trf.xlu0
      %v1891 = vpop.trf.xlu0
      %v1892 = vpop.trf.xlu0
      %v1893 = vpop.trf.xlu0
      %v1894 = vpop.trf.xlu0
      %1895 = vxpose.xlu0.b32.start [1/16] %v1847, 128
      %1896 = vxpose.xlu0.b32.cont [2/16] %v1848, 128
      %1897 = vxpose.xlu0.b32.cont [3/16] %v1849, 128
      %1898 = vxpose.xlu0.b32.cont [4/16] %v1850, 128
      %1899 = vxpose.xlu0.b32.cont [5/16] %v1851, 128
      %1900 = vxpose.xlu0.b32.cont [6/16] %v1852, 128
      %1901 = vxpose.xlu0.b32.cont [7/16] %v1853, 128
      %1902 = vxpose.xlu0.b32.cont [8/16] %v1854, 128
      %1903 = vxpose.xlu0.b32.cont [9/16] %v1855, 128
      %1904 = vxpose.xlu0.b32.cont [10/16] %v1856, 128
      %1905 = vxpose.xlu0.b32.cont [11/16] %v1857, 128
      %1906 = vxpose.xlu0.b32.cont [12/16] %v1858, 128
      %1907 = vxpose.xlu0.b32.cont [13/16] %v1859, 128
      %1908 = vxpose.xlu0.b32.cont [14/16] %v1860, 128
      %1909 = vxpose.xlu0.b32.cont [15/16] %v1861, 128
      %1910 = vxpose.xlu0.b32.end [16/16] %v1862, 128
      %v1911 = vpop.trf.xlu0
      %v1912 = vpop.trf.xlu0
      %v1913 = vpop.trf.xlu0
      %v1914 = vpop.trf.xlu0
      %v1915 = vpop.trf.xlu0
      %v1916 = vpop.trf.xlu0
      %v1917 = vpop.trf.xlu0
      %v1918 = vpop.trf.xlu0
      %v1919 = vpop.trf.xlu0
      %v1920 = vpop.trf.xlu0
      %v1921 = vpop.trf.xlu0
      %v1922 = vpop.trf.xlu0
      %v1923 = vpop.trf.xlu0
      %v1924 = vpop.trf.xlu0
      %v1925 = vpop.trf.xlu0
      %v1926 = vpop.trf.xlu0
      %1927 = vst [vmem:[%s170] sm:$0xff] %v1879
      %1928 = vst [vmem:[%s170 + $0x8] sm:$0xff] %v1911
      %1929 = vst [vmem:[%s170 + $0x10] sm:$0xff] %v1880
      %1930 = vst [vmem:[%s170 + $0x18] sm:$0xff] %v1912
      %1931 = vst [vmem:[%s170 + $0x20] sm:$0xff] %v1881
      %1932 = vst [vmem:[%s170 + $0x28] sm:$0xff] %v1913
      %1933 = vst [vmem:[%s170 + $0x30] sm:$0xff] %v1882
      %1934 = vst [vmem:[%s170 + $0x38] sm:$0xff] %v1914
      %p1935 = scmp.lt.s32.totalorder %s14, 3
      %s1936 = scalar_select %p1935, %s14, 3
      %s1937 = smul.addr %s1936, 8
      %s1938 = smul.addr %s1937, 8
      %s1939 = scalar_lea.vmem %s3, %s1938
      // Predicated region
      $region33: #{post_forward.2} parent=31 // pred_check
        %p1940 = pneg %p100
      $region34: #{post_forward.2} parent=31 // pred_check_branch
        %1942 = sbr.rel (%p1940) target = $region36
      $region35: #{post_forward.2} parent=31 // pred_region
        _
      $region36: #{post_forward.2} parent=31 // pred_fallthru
        _
    $region32: #{post_forward.2} parent=5 // pred_fallthru
      _
    %p1943 = scmp.le.s32.totalorder 2, %s9
    // Predicated region
    $region37: #{post_forward.2} parent=5 // pred_check
      %p1944 = pneg %p1943
    $region38: #{post_forward.2} parent=5 // pred_check_branch
      %1946 = sbr.rel (%p1944) target = $region40
    $region39: #{post_forward.2} parent=5 // pred_region
      %s1947 = ssub.s32 %s9, 2
      // Predicated region
      $region41: #{post_forward.2} parent=39 // pred_check
        %p1948 = pneg %p106
      $region42: #{post_forward.2} parent=39 // pred_check_branch
        %1950 = sbr.rel (%p1948) target = $region44
      $region43: #{post_forward.2} parent=39 // pred_region
        %p1951 = scmp.lt.s32.totalorder %s15, 3
        %s1952 = scalar_select %p1951, %s15, 3
        %s1953 = smul.addr %s1952, 8
        %s1954 = smul.addr %s1953, 8
        %s1955 = scalar_lea.vmem %s3, %s1954
      $region44: #{post_forward.2} parent=39 // pred_fallthru
        _
    $region40: #{post_forward.2} parent=5 // pred_fallthru
      _
  $region6: #{post_forward.2} parent=0 // loop_footer
    %s13 = sadd.s32 1, %s9
  $region7: #{post_forward.2} parent=0 // loop_footer_branch
    %8 = sbr.rel target = $region3
  $region8: #{post_forward.2} parent=0 // loop_exit
    _

</llo_original>
